<compile_context>
chip_gen: v6e
topology: v6e:2x2x1
jax: 0.10.0
libtpu: 0.0.40
codegen_flags: <defaults>
</compile_context>

<pallas_src>
import functools

import jax
import jax.numpy as jnp
from jax import lax
from jax.experimental import pallas as pl
from jax.experimental.pallas import tpu as pltpu

EPS = 1e-5                 # PyTorch BatchNorm2d default eps
LANE = 128                 # pad OC to the TPU lane width
_TILE_M = 512              # M-tile rows (~85% of HBM roofline for mem-bound tiles)
_STAT_SUB = 8              # sublane rows per per-core stats partial (aligned (8,128) blocks)
_VMEM_LIMIT = 32 * 1024 * 1024   # safe on v5e/v6e (128 MiB) and v7x (64 MiB physical)


def _round_up(x, m):
    return (x + m - 1) // m * m


# ---------------------------------------------------------------------------
# Kernel A: tiled conv-as-matmul + per-core BN statistics accumulation
# ---------------------------------------------------------------------------
def _matmul_stats_kernel(p_ref, w_ref, *out_refs, store_y):
    i = pl.program_id(1)                              # inner ("arbitrary") axis
    # bf16 x bf16 -> f32 accumulation on the MXU; stats taken from this f32 y.
    y = jnp.dot(p_ref[...], w_ref[...], preferred_element_type=jnp.float32)
    if store_y:
        y_ref, sum_ref, ssq_ref = out_refs
        y_ref[...] = y.astype(y_ref.dtype)            # bf16 writeback (halved bytes)
    else:
        sum_ref, ssq_ref = out_refs

    @pl.when(i == 0)
    def _():
        sum_ref[...] = jnp.zeros_like(sum_ref)
        ssq_ref[...] = jnp.zeros_like(ssq_ref)

    # Per-channel partial sums, kept as (8, OCp) per-core partials so the
    # reduction is pure VALU adds (no XLU) and the output block is (8,128)
    # aligned.  Padded rows are exactly zero (no conv bias), contributing 0.
    ysub = y.reshape(-1, _STAT_SUB, y.shape[-1])      # (tm/8, 8, OCp)
    sum_ref[...] += jnp.sum(ysub, axis=0)
    ssq_ref[...] += jnp.sum(ysub * ysub, axis=0)


# ---------------------------------------------------------------------------
# Kernel B: combine per-core partials, fold BN to scale/shift, apply (+ReLU)
# ---------------------------------------------------------------------------
def _bn_scale_shift(sum_ref, ssq_ref, g_ref, beta_ref, inv_m):
    s = jnp.sum(sum_ref[...], axis=0, keepdims=True)      # combine cores + sublanes
    ss = jnp.sum(ssq_ref[...], axis=0, keepdims=True)
    mean = s * inv_m
    var = jnp.maximum(ss * inv_m - mean * mean, 0.0)       # clamp cancellation error
    scale = g_ref[...] * lax.rsqrt(var + EPS)              # rsqrt -> EUP (free slot)
    shift = beta_ref[...] - mean * scale
    return scale, shift


def _bn_apply_y_kernel(y_ref, sum_ref, ssq_ref, g_ref, beta_ref, o_ref, *,
                       inv_m, apply_relu):
    scale, shift = _bn_scale_shift(sum_ref, ssq_ref, g_ref, beta_ref, inv_m)
    y = y_ref[...].astype(jnp.float32) * scale + shift     # BN math in f32
    if apply_relu:
        y = jnp.maximum(y, 0.0)
    o_ref[...] = y.astype(o_ref.dtype)                     # bf16 store


def _bn_apply_recompute_kernel(p_ref, w_ref, sum_ref, ssq_ref, g_ref, beta_ref,
                               o_ref, *, inv_m, apply_relu):
    # Small-K path: redo the (free) matmul instead of round-tripping y via HBM.
    scale, shift = _bn_scale_shift(sum_ref, ssq_ref, g_ref, beta_ref, inv_m)
    y = jnp.dot(p_ref[...], w_ref[...], preferred_element_type=jnp.float32)
    y = y * scale + shift
    if apply_relu:
        y = jnp.maximum(y, 0.0)
    o_ref[...] = y.astype(o_ref.dtype)


# ---------------------------------------------------------------------------
# Host-side glue
# ---------------------------------------------------------------------------
def _im2col_nhwc(x, kh, kw, stride, pad):
    """x: (N, H, W, C) bf16 -> (N*OH*OW, KH*KW*C), columns ordered (kh, kw, c)."""
    n, h, w, c = x.shape
    xp = jnp.pad(x, ((0, 0), (pad, pad), (pad, pad), (0, 0)))
    oh = (h + 2 * pad - kh) // stride + 1
    ow = (w + 2 * pad - kw) // stride + 1
    cols = []
    for i in range(kh):
        for j in range(kw):
            cols.append(xp[:, i:i + stride * oh:stride,
                           j:j + stride * ow:stride, :])
    p = jnp.stack(cols, axis=3)                        # (N, OH, OW, KH*KW, C)
    return p.reshape(n * oh * ow, kh * kw * c), oh, ow


def conv_bn_relu_nhwc(x, w, gamma, beta, *, stride, pad, apply_relu):
    """One Conv2d -> BatchNorm2d(train) -> optional ReLU.  x: NHWC bf16, w: (OC,CIN,KH,KW)."""
    n = x.shape[0]
    oc, cin, kh, kw = w.shape
    patches, oh, ow = _im2col_nhwc(x.astype(jnp.bfloat16), kh, kw, stride, pad)
    m, k = patches.shape

    ocp = _round_up(oc, LANE)                          # lane-dense output channels
    tm = _TILE_M if m >= _TILE_M else _round_up(m, 16)  # bf16 sublane-pack aligned
    m_pad = _round_up(m, 2 * tm)                       # even split over 2 core groups
    inner = m_pad // (2 * tm)
    grid_m = 2 * inner

    # Zero-padded bf16 operands (padding contributes exactly zero everywhere).
    p_pad = jnp.zeros((m_pad, k), jnp.bfloat16).at[:m, :].set(patches)
    w_pad = jnp.zeros((k, ocp), jnp.bfloat16).at[:, :oc].set(
        w.transpose(2, 3, 1, 0).reshape(kh * kw * cin, oc).astype(jnp.bfloat16))
    g_pad = jnp.zeros((1, ocp), jnp.float32).at[:, :oc].set(
        gamma.reshape(1, oc).astype(jnp.float32))
    b_pad = jnp.zeros((1, ocp), jnp.float32).at[:, :oc].set(
        beta.reshape(1, oc).astype(jnp.float32))

    # Re-reading bf16 patches twice is cheaper than y write+read when K < 2*OCp.
    recompute = k < 2 * ocp

    m_map = lambda c, i: (c * inner + i, 0)            # noqa: E731
    stats_map = lambda c, i: (c, 0)                    # noqa: E731  per-core partial rows

    stat_shape = jax.ShapeDtypeStruct((2 * _STAT_SUB, ocp), jnp.float32)
    stat_spec = pl.BlockSpec((_STAT_SUB, ocp), stats_map)
    if recompute:
        out_shape_1 = (stat_shape, stat_shape)
        out_specs_1 = (stat_spec, stat_spec)
    else:
        out_shape_1 = (jax.ShapeDtypeStruct((m_pad, ocp), jnp.bfloat16),
                       stat_shape, stat_shape)
        out_specs_1 = (pl.BlockSpec((tm, ocp), m_map), stat_spec, stat_spec)

    # Pass 1: conv tiles + per-core per-channel sum / sum-of-squares.
    res = pl.pallas_call(
        functools.partial(_matmul_stats_kernel, store_y=not recompute),
        out_shape=out_shape_1,
        grid=(2, inner),
        in_specs=[
            pl.BlockSpec((tm, k), m_map),
            pl.BlockSpec((k, ocp), lambda c, i: (0, 0)),
        ],
        out_specs=out_specs_1,
        compiler_params=pltpu.CompilerParams(
            dimension_semantics=("parallel", "arbitrary"),   # stats accumulate over inner
            vmem_limit_bytes=_VMEM_LIMIT),
    )(p_pad, w_pad)

    if recompute:
        csum, cssq = res
    else:
        y, csum, cssq = res

    # Pass 2: apply folded BN (+ ReLU) tile-by-tile; M tiles are independent.
    flat_map = lambda i: (i, 0)                        # noqa: E731
    const_map = lambda i: (0, 0)                       # noqa: E731
    stat_full_spec = pl.BlockSpec((2 * _STAT_SUB, ocp), const_map)
    if recompute:
        kernel2 = functools.partial(_bn_apply_recompute_kernel,
                                    inv_m=1.0 / m, apply_relu=apply_relu)
        in_specs_2 = [pl.BlockSpec((tm, k), flat_map),
                      pl.BlockSpec((k, ocp), const_map),
                      stat_full_spec, stat_full_spec,
                      pl.BlockSpec((1, ocp), const_map),
                      pl.BlockSpec((1, ocp), const_map)]
        args2 = (p_pad, w_pad, csum, cssq, g_pad, b_pad)
    else:
        kernel2 = functools.partial(_bn_apply_y_kernel,
                                    inv_m=1.0 / m, apply_relu=apply_relu)
        in_specs_2 = [pl.BlockSpec((tm, ocp), flat_map),
                      stat_full_spec, stat_full_spec,
                      pl.BlockSpec((1, ocp), const_map),
                      pl.BlockSpec((1, ocp), const_map)]
        args2 = (y, csum, cssq, g_pad, b_pad)

    out = pl.pallas_call(
        kernel2,
        out_shape=jax.ShapeDtypeStruct((m_pad, ocp), jnp.bfloat16),
        grid=(grid_m,),
        in_specs=in_specs_2,
        out_specs=pl.BlockSpec((tm, ocp), flat_map),
        compiler_params=pltpu.CompilerParams(
            dimension_semantics=("parallel",),
            vmem_limit_bytes=_VMEM_LIMIT),
    )(*args2)

    # Strip M / channel padding; stay bf16 NHWC for the next layer's im2col.
    return out[:m, :oc].reshape(n, oh, ow, oc)


# Layer configs matching the nn.Sequential:
#   Conv2d(1,16,k5,s2,p1)+BN+ReLU, Conv2d(16,32,k5,s2,p1)+BN+ReLU,
#   Conv2d(32,64,k3,s2,p1)+BN+ReLU, Conv2d(64,10,k3,s3,p0)+BN, Flatten
_LAYERS = [
    dict(cin=1,  cout=16, k=5, stride=2, pad=1, relu=True),
    dict(cin=16, cout=32, k=5, stride=2, pad=1, relu=True),
    dict(cin=32, cout=64, k=3, stride=2, pad=1, relu=True),
    dict(cin=64, cout=10, k=3, stride=3, pad=0, relu=False),
]


def init_params(key):
    params = []
    for i, cfg in enumerate(_LAYERS):
        kw_key, kb_key, kg_key, kbeta_key = jax.random.split(
            jax.random.fold_in(key, i), 4)
        fan_in = cfg["cin"] * cfg["k"] * cfg["k"]
        w = jax.random.normal(kw_key, (cfg["cout"], cfg["cin"], cfg["k"], cfg["k"]),
                              jnp.float32) * (2.0 / fan_in) ** 0.5
        b = 0.01 * jax.random.normal(kb_key, (cfg["cout"],), jnp.float32)
        gamma = 1.0 + 0.1 * jax.random.normal(kg_key, (cfg["cout"],), jnp.float32)
        beta = 0.1 * jax.random.normal(kbeta_key, (cfg["cout"],), jnp.float32)
        params.append((w, b, gamma, beta))
    return params


def cnn_forward(x, params):
    # NCHW (PyTorch) -> NHWC once, cast to bf16 once; channels-last bf16 between
    # layers keeps OC on the lane axis and halves every inter-layer byte stream.
    x = x.transpose(0, 2, 3, 1).astype(jnp.bfloat16)
    for (w, b, g, bt), cfg in zip(params, _LAYERS):
        del b  # conv bias cancels exactly against training-mode BN mean subtraction
        x = conv_bn_relu_nhwc(x, w, g, bt, stride=cfg["stride"], pad=cfg["pad"],
                              apply_relu=cfg["relu"])
    # Back to NCHW at the boundary, then nn.Flatten (final map is (N, 10, 1, 1)).
    x = x.transpose(0, 3, 1, 2)
    return x.reshape(x.shape[0], -1).astype(jnp.float32)


if __name__ == "__main__":
    key = jax.random.PRNGKey(0)
    params = init_params(key)
    # MNIST-like input: 28x28 single channel -> final feature map (N, 10, 1, 1)
    x = jax.random.normal(jax.random.fold_in(key, 100), (2, 1, 28, 28), jnp.float32)
    out = jax.jit(cnn_forward)(x, params)
    jax.block_until_ready(out)
    assert out.shape == (2, 10), out.shape
    assert bool(jnp.all(jnp.isfinite(out)))
    print("KERNEL_OK")
</pallas_src>

<mosaic_0001>
module attributes {stable_mosaic.version = 11 : i64} {
  func.func @_bn_apply_recompute_kernel(%arg0: i32, %arg1: memref<352x25xbf16, #tpu.memory_space<vmem>>, %arg2: memref<25x128xbf16, #tpu.memory_space<vmem>>, %arg3: memref<16x128xf32, #tpu.memory_space<vmem>>, %arg4: memref<16x128xf32, #tpu.memory_space<vmem>>, %arg5: memref<1x128xf32, #tpu.memory_space<vmem>>, %arg6: memref<1x128xf32, #tpu.memory_space<vmem>>, %arg7: memref<352x128xbf16, #tpu.memory_space<vmem>>) attributes {dimension_semantics = [#tpu.dimension_semantics<parallel>], iteration_bounds = array<i64: 2>, scalar_prefetch = 0 : i64, scratch_operands = 0 : i64, tpu.core_type = #tpu.core_type<tc>, window_params = [{transform_indices = @transform_0, window_bounds = array<i64: 352, 25>}, {pipeline_mode = #tpu.pipeline_mode<synchronous>, transform_indices = @transform_1, window_bounds = array<i64: 25, 128>}, {pipeline_mode = #tpu.pipeline_mode<synchronous>, transform_indices = @transform_2, window_bounds = array<i64: 16, 128>}, {pipeline_mode = #tpu.pipeline_mode<synchronous>, transform_indices = @transform_3, window_bounds = array<i64: 16, 128>}, {pipeline_mode = #tpu.pipeline_mode<synchronous>, transform_indices = @transform_4, window_bounds = array<i64: 1, 128>}, {pipeline_mode = #tpu.pipeline_mode<synchronous>, transform_indices = @transform_5, window_bounds = array<i64: 1, 128>}, {transform_indices = @transform_6, window_bounds = array<i64: 352, 128>}]} {
    %c0 = arith.constant 0 : index
    %c0_0 = arith.constant 0 : index
    %0 = vector.load %arg3[%c0, %c0_0] : memref<16x128xf32, #tpu.memory_space<vmem>>, vector<16x128xf32>
    %cst = arith.constant dense<0.000000e+00> : vector<128xf32>
    %1 = vector.multi_reduction <add>, %0, %cst [0] : vector<16x128xf32> to vector<128xf32>
    %2 = vector.shape_cast %1 : vector<128xf32> to vector<1x128xf32>
    %c0_1 = arith.constant 0 : index
    %c0_2 = arith.constant 0 : index
    %3 = vector.load %arg4[%c0_1, %c0_2] : memref<16x128xf32, #tpu.memory_space<vmem>>, vector<16x128xf32>
    %cst_3 = arith.constant dense<0.000000e+00> : vector<128xf32>
    %4 = vector.multi_reduction <add>, %3, %cst_3 [0] : vector<16x128xf32> to vector<128xf32>
    %5 = vector.shape_cast %4 : vector<128xf32> to vector<1x128xf32>
    %cst_4 = arith.constant 2.958580e-03 : f32
    %6 = vector.broadcast %cst_4 : f32 to vector<1x128xf32>
    %7 = arith.mulf %2, %6 : vector<1x128xf32>
    %cst_5 = arith.constant 2.958580e-03 : f32
    %8 = vector.broadcast %cst_5 : f32 to vector<1x128xf32>
    %9 = arith.mulf %5, %8 : vector<1x128xf32>
    %10 = arith.mulf %7, %7 : vector<1x128xf32>
    %11 = arith.subf %9, %10 : vector<1x128xf32>
    %cst_6 = arith.constant 0.000000e+00 : f32
    %12 = vector.broadcast %cst_6 : f32 to vector<1x128xf32>
    %13 = arith.maximumf %11, %12 : vector<1x128xf32>
    %c0_7 = arith.constant 0 : index
    %c0_8 = arith.constant 0 : index
    %14 = vector.load %arg5[%c0_7, %c0_8] : memref<1x128xf32, #tpu.memory_space<vmem>>, vector<1x128xf32>
    %cst_9 = arith.constant 9.99999974E-6 : f32
    %15 = vector.broadcast %cst_9 : f32 to vector<1x128xf32>
    %16 = arith.addf %13, %15 : vector<1x128xf32>
    %17 = math.rsqrt %16 : vector<1x128xf32>
    %18 = arith.mulf %14, %17 : vector<1x128xf32>
    %c0_10 = arith.constant 0 : index
    %c0_11 = arith.constant 0 : index
    %19 = vector.load %arg6[%c0_10, %c0_11] : memref<1x128xf32, #tpu.memory_space<vmem>>, vector<1x128xf32>
    %20 = arith.mulf %7, %18 : vector<1x128xf32>
    %21 = arith.subf %19, %20 : vector<1x128xf32>
    %c0_12 = arith.constant 0 : index
    %c0_13 = arith.constant 0 : index
    %22 = vector.load %arg1[%c0_12, %c0_13] : memref<352x25xbf16, #tpu.memory_space<vmem>>, vector<352x25xbf16>
    %c0_14 = arith.constant 0 : index
    %c0_15 = arith.constant 0 : index
    %23 = vector.load %arg2[%c0_14, %c0_15] : memref<25x128xbf16, #tpu.memory_space<vmem>>, vector<25x128xbf16>
    %cst_16 = arith.constant dense<0.000000e+00> : vector<352x128xf32>
    %24 = tpu.matmul %22, %23, %cst_16 {dimension_numbers = #tpu.dot_dimension_numbers<[1], [0], [0], [1], [0, 0, 1, 1], [], []>} : vector<352x25xbf16>, vector<25x128xbf16>, vector<352x128xf32> -> vector<352x128xf32>
    %25 = vector.broadcast %18 : vector<1x128xf32> to vector<352x128xf32>
    %26 = arith.mulf %24, %25 : vector<352x128xf32>
    %27 = vector.broadcast %21 : vector<1x128xf32> to vector<352x128xf32>
    %28 = arith.addf %26, %27 : vector<352x128xf32>
    %cst_17 = arith.constant 0.000000e+00 : f32
    %29 = vector.broadcast %cst_17 : f32 to vector<352x128xf32>
    %30 = arith.maximumf %28, %29 : vector<352x128xf32>
    %31 = arith.truncf %30 : vector<352x128xf32> to vector<352x128xbf16>
    %c0_18 = arith.constant 0 : index
    %c0_19 = arith.constant 0 : index
    %32 = vector.load %arg7[%c0_18, %c0_19] : memref<352x128xbf16, #tpu.memory_space<vmem>>, vector<352x128xbf16>
    tpu.vector_store %arg7[%c0_18, %c0_19], %31 {strides = array<i32>} : memref<352x128xbf16, #tpu.memory_space<vmem>>, vector<352x128xbf16>,
    return
  }
  func.func @transform_0(%arg0: i32) -> (i32, i32) {
    %c0_i32 = arith.constant 0 : i32
    %c0_i32_0 = arith.constant 0 : i32
    return %arg0, %c0_i32 : i32, i32
  }
  func.func @transform_1(%arg0: i32) -> (i32, i32) {
    %c0_i32 = arith.constant 0 : i32
    %c0_i32_0 = arith.constant 0 : i32
    %c0_i32_1 = arith.constant 0 : i32
    return %c0_i32, %c0_i32_0 : i32, i32
  }
  func.func @transform_2(%arg0: i32) -> (i32, i32) {
    %c0_i32 = arith.constant 0 : i32
    %c0_i32_0 = arith.constant 0 : i32
    %c0_i32_1 = arith.constant 0 : i32
    return %c0_i32, %c0_i32_0 : i32, i32
  }
  func.func @transform_3(%arg0: i32) -> (i32, i32) {
    %c0_i32 = arith.constant 0 : i32
    %c0_i32_0 = arith.constant 0 : i32
    %c0_i32_1 = arith.constant 0 : i32
    return %c0_i32, %c0_i32_0 : i32, i32
  }
  func.func @transform_4(%arg0: i32) -> (i32, i32) {
    %c0_i32 = arith.constant 0 : i32
    %c0_i32_0 = arith.constant 0 : i32
    %c0_i32_1 = arith.constant 0 : i32
    return %c0_i32, %c0_i32_0 : i32, i32
  }
  func.func @transform_5(%arg0: i32) -> (i32, i32) {
    %c0_i32 = arith.constant 0 : i32
    %c0_i32_0 = arith.constant 0 : i32
    %c0_i32_1 = arith.constant 0 : i32
    return %c0_i32, %c0_i32_0 : i32, i32
  }
  func.func @transform_6(%arg0: i32) -> (i32, i32) {
    %c0_i32 = arith.constant 0 : i32
    %c0_i32_0 = arith.constant 0 : i32
    return %arg0, %c0_i32 : i32, i32
  }
}

module attributes {stable_mosaic.version = 11 : i64} {
  func.func @_matmul_stats_kernel(%arg0: i32, %arg1: i32, %arg2: memref<352x25xbf16, #tpu.memory_space<vmem>>, %arg3: memref<25x128xbf16, #tpu.memory_space<vmem>>, %arg4: memref<8x128xf32, #tpu.memory_space<vmem>>, %arg5: memref<8x128xf32, #tpu.memory_space<vmem>>) attributes {dimension_semantics = [#tpu.dimension_semantics<parallel>, #tpu.dimension_semantics<arbitrary>], iteration_bounds = array<i64: 2, 1>, scalar_prefetch = 0 : i64, scratch_operands = 0 : i64, tpu.core_type = #tpu.core_type<tc>, window_params = [{transform_indices = @transform_0, window_bounds = array<i64: 352, 25>}, {pipeline_mode = #tpu.pipeline_mode<synchronous>, transform_indices = @transform_1, window_bounds = array<i64: 25, 128>}, {transform_indices = @transform_2, window_bounds = array<i64: 8, 128>}, {transform_indices = @transform_3, window_bounds = array<i64: 8, 128>}]} {
    %c0 = arith.constant 0 : index
    %c0_0 = arith.constant 0 : index
    %0 = vector.load %arg2[%c0, %c0_0] : memref<352x25xbf16, #tpu.memory_space<vmem>>, vector<352x25xbf16>
    %c0_1 = arith.constant 0 : index
    %c0_2 = arith.constant 0 : index
    %1 = vector.load %arg3[%c0_1, %c0_2] : memref<25x128xbf16, #tpu.memory_space<vmem>>, vector<25x128xbf16>
    %cst = arith.constant dense<0.000000e+00> : vector<352x128xf32>
    %2 = tpu.matmul %0, %1, %cst {dimension_numbers = #tpu.dot_dimension_numbers<[1], [0], [0], [1], [0, 0, 1, 1], [], []>} : vector<352x25xbf16>, vector<25x128xbf16>, vector<352x128xf32> -> vector<352x128xf32>
    %c0_i32 = arith.constant 0 : i32
    %3 = arith.cmpi eq, %arg1, %c0_i32 : i32
    %4 = arith.extui %3 : i1 to i32
    %c0_i32_3 = arith.constant 0 : i32
    %5 = arith.cmpi ne, %4, %c0_i32_3 : i32
    scf.if %5 {
      %cst_14 = arith.constant 0.000000e+00 : f32
      %16 = vector.broadcast %cst_14 : f32 to vector<8x128xf32>
      %c0_15 = arith.constant 0 : index
      %c0_16 = arith.constant 0 : index
      %17 = vector.load %arg4[%c0_15, %c0_16] : memref<8x128xf32, #tpu.memory_space<vmem>>, vector<8x128xf32>
      tpu.vector_store %arg4[%c0_15, %c0_16], %16 {strides = array<i32>} : memref<8x128xf32, #tpu.memory_space<vmem>>, vector<8x128xf32>,
      %cst_17 = arith.constant 0.000000e+00 : f32
      %18 = vector.broadcast %cst_17 : f32 to vector<8x128xf32>
      %c0_18 = arith.constant 0 : index
      %c0_19 = arith.constant 0 : index
      %19 = vector.load %arg5[%c0_18, %c0_19] : memref<8x128xf32, #tpu.memory_space<vmem>>, vector<8x128xf32>
      tpu.vector_store %arg5[%c0_18, %c0_19], %18 {strides = array<i32>} : memref<8x128xf32, #tpu.memory_space<vmem>>, vector<8x128xf32>,
    } else {
    }
    %6 = vector.shape_cast %2 : vector<352x128xf32> to vector<44x8x128xf32>
    %c0_4 = arith.constant 0 : index
    %c0_5 = arith.constant 0 : index
    %7 = vector.load %arg4[%c0_4, %c0_5] : memref<8x128xf32, #tpu.memory_space<vmem>>, vector<8x128xf32>
    %cst_6 = arith.constant dense<0.000000e+00> : vector<8x128xf32>
    %8 = vector.multi_reduction <add>, %6, %cst_6 [0] : vector<44x8x128xf32> to vector<8x128xf32>
    %9 = arith.addf %7, %8 : vector<8x128xf32>
    %c0_7 = arith.constant 0 : index
    %c0_8 = arith.constant 0 : index
    %10 = vector.load %arg4[%c0_7, %c0_8] : memref<8x128xf32, #tpu.memory_space<vmem>>, vector<8x128xf32>
    tpu.vector_store %arg4[%c0_7, %c0_8], %9 {strides = array<i32>} : memref<8x128xf32, #tpu.memory_space<vmem>>, vector<8x128xf32>,
    %c0_9 = arith.constant 0 : index
    %c0_10 = arith.constant 0 : index
    %11 = vector.load %arg5[%c0_9, %c0_10] : memref<8x128xf32, #tpu.memory_space<vmem>>, vector<8x128xf32>
    %12 = arith.mulf %6, %6 : vector<44x8x128xf32>
    %cst_11 = arith.constant dense<0.000000e+00> : vector<8x128xf32>
    %13 = vector.multi_reduction <add>, %12, %cst_11 [0] : vector<44x8x128xf32> to vector<8x128xf32>
    %14 = arith.addf %11, %13 : vector<8x128xf32>
    %c0_12 = arith.constant 0 : index
    %c0_13 = arith.constant 0 : index
    %15 = vector.load %arg5[%c0_12, %c0_13] : memref<8x128xf32, #tpu.memory_space<vmem>>, vector<8x128xf32>
    tpu.vector_store %arg5[%c0_12, %c0_13], %14 {strides = array<i32>} : memref<8x128xf32, #tpu.memory_space<vmem>>, vector<8x128xf32>,
    return
  }
  func.func @transform_0(%arg0: i32, %arg1: i32) -> (i32, i32) {
    %c1_i32 = arith.constant 1 : i32
    %0 = arith.muli %arg0, %c1_i32 : i32
    %1 = arith.addi %0, %arg1 : i32
    %c0_i32 = arith.constant 0 : i32
    %c0_i32_0 = arith.constant 0 : i32
    return %1, %c0_i32 : i32, i32
  }
  func.func @transform_1(%arg0: i32, %arg1: i32) -> (i32, i32) {
    %c0_i32 = arith.constant 0 : i32
    %c0_i32_0 = arith.constant 0 : i32
    %c0_i32_1 = arith.constant 0 : i32
    return %c0_i32, %c0_i32_0 : i32, i32
  }
  func.func @transform_2(%arg0: i32, %arg1: i32) -> (i32, i32) {
    %c0_i32 = arith.constant 0 : i32
    %c0_i32_0 = arith.constant 0 : i32
    return %arg0, %c0_i32 : i32, i32
  }
  func.func @transform_3(%arg0: i32, %arg1: i32) -> (i32, i32) {
    %c0_i32 = arith.constant 0 : i32
    %c0_i32_0 = arith.constant 0 : i32
    return %arg0, %c0_i32 : i32, i32
  }
}

module attributes {stable_mosaic.version = 11 : i64} {
  func.func @_matmul_stats_kernel(%arg0: i32, %arg1: i32, %arg2: memref<80x400xbf16, #tpu.memory_space<vmem>>, %arg3: memref<400x128xbf16, #tpu.memory_space<vmem>>, %arg4: memref<80x128xbf16, #tpu.memory_space<vmem>>, %arg5: memref<8x128xf32, #tpu.memory_space<vmem>>, %arg6: memref<8x128xf32, #tpu.memory_space<vmem>>) attributes {dimension_semantics = [#tpu.dimension_semantics<parallel>, #tpu.dimension_semantics<arbitrary>], iteration_bounds = array<i64: 2, 1>, scalar_prefetch = 0 : i64, scratch_operands = 0 : i64, tpu.core_type = #tpu.core_type<tc>, window_params = [{transform_indices = @transform_0, window_bounds = array<i64: 80, 400>}, {pipeline_mode = #tpu.pipeline_mode<synchronous>, transform_indices = @transform_1, window_bounds = array<i64: 400, 128>}, {transform_indices = @transform_2, window_bounds = array<i64: 80, 128>}, {transform_indices = @transform_3, window_bounds = array<i64: 8, 128>}, {transform_indices = @transform_4, window_bounds = array<i64: 8, 128>}]} {
    %c0 = arith.constant 0 : index
    %c0_0 = arith.constant 0 : index
    %0 = vector.load %arg2[%c0, %c0_0] : memref<80x400xbf16, #tpu.memory_space<vmem>>, vector<80x400xbf16>
    %c0_1 = arith.constant 0 : index
    %c0_2 = arith.constant 0 : index
    %1 = vector.load %arg3[%c0_1, %c0_2] : memref<400x128xbf16, #tpu.memory_space<vmem>>, vector<400x128xbf16>
    %cst = arith.constant dense<0.000000e+00> : vector<80x128xf32>
    %2 = tpu.matmul %0, %1, %cst {dimension_numbers = #tpu.dot_dimension_numbers<[1], [0], [0], [1], [0, 0, 1, 1], [], []>} : vector<80x400xbf16>, vector<400x128xbf16>, vector<80x128xf32> -> vector<80x128xf32>
    %3 = arith.truncf %2 : vector<80x128xf32> to vector<80x128xbf16>
    %c0_3 = arith.constant 0 : index
    %c0_4 = arith.constant 0 : index
    %4 = vector.load %arg4[%c0_3, %c0_4] : memref<80x128xbf16, #tpu.memory_space<vmem>>, vector<80x128xbf16>
    tpu.vector_store %arg4[%c0_3, %c0_4], %3 {strides = array<i32>} : memref<80x128xbf16, #tpu.memory_space<vmem>>, vector<80x128xbf16>,
    %c0_i32 = arith.constant 0 : i32
    %5 = arith.cmpi eq, %arg1, %c0_i32 : i32
    %6 = arith.extui %5 : i1 to i32
    %c0_i32_5 = arith.constant 0 : i32
    %7 = arith.cmpi ne, %6, %c0_i32_5 : i32
    scf.if %7 {
      %cst_16 = arith.constant 0.000000e+00 : f32
      %18 = vector.broadcast %cst_16 : f32 to vector<8x128xf32>
      %c0_17 = arith.constant 0 : index
      %c0_18 = arith.constant 0 : index
      %19 = vector.load %arg5[%c0_17, %c0_18] : memref<8x128xf32, #tpu.memory_space<vmem>>, vector<8x128xf32>
      tpu.vector_store %arg5[%c0_17, %c0_18], %18 {strides = array<i32>} : memref<8x128xf32, #tpu.memory_space<vmem>>, vector<8x128xf32>,
      %cst_19 = arith.constant 0.000000e+00 : f32
      %20 = vector.broadcast %cst_19 : f32 to vector<8x128xf32>
      %c0_20 = arith.constant 0 : index
      %c0_21 = arith.constant 0 : index
      %21 = vector.load %arg6[%c0_20, %c0_21] : memref<8x128xf32, #tpu.memory_space<vmem>>, vector<8x128xf32>
      tpu.vector_store %arg6[%c0_20, %c0_21], %20 {strides = array<i32>} : memref<8x128xf32, #tpu.memory_space<vmem>>, vector<8x128xf32>,
    } else {
    }
    %8 = vector.shape_cast %2 : vector<80x128xf32> to vector<10x8x128xf32>
    %c0_6 = arith.constant 0 : index
    %c0_7 = arith.constant 0 : index
    %9 = vector.load %arg5[%c0_6, %c0_7] : memref<8x128xf32, #tpu.memory_space<vmem>>, vector<8x128xf32>
    %cst_8 = arith.constant dense<0.000000e+00> : vector<8x128xf32>
    %10 = vector.multi_reduction <add>, %8, %cst_8 [0] : vector<10x8x128xf32> to vector<8x128xf32>
    %11 = arith.addf %9, %10 : vector<8x128xf32>
    %c0_9 = arith.constant 0 : index
    %c0_10 = arith.constant 0 : index
    %12 = vector.load %arg5[%c0_9, %c0_10] : memref<8x128xf32, #tpu.memory_space<vmem>>, vector<8x128xf32>
    tpu.vector_store %arg5[%c0_9, %c0_10], %11 {strides = array<i32>} : memref<8x128xf32, #tpu.memory_space<vmem>>, vector<8x128xf32>,
    %c0_11 = arith.constant 0 : index
    %c0_12 = arith.constant 0 : index
    %13 = vector.load %arg6[%c0_11, %c0_12] : memref<8x128xf32, #tpu.memory_space<vmem>>, vector<8x128xf32>
    %14 = arith.mulf %8, %8 : vector<10x8x128xf32>
    %cst_13 = arith.constant dense<0.000000e+00> : vector<8x128xf32>
    %15 = vector.multi_reduction <add>, %14, %cst_13 [0] : vector<10x8x128xf32> to vector<8x128xf32>
    %16 = arith.addf %13, %15 : vector<8x128xf32>
    %c0_14 = arith.constant 0 : index
    %c0_15 = arith.constant 0 : index
    %17 = vector.load %arg6[%c0_14, %c0_15] : memref<8x128xf32, #tpu.memory_space<vmem>>, vector<8x128xf32>
    tpu.vector_store %arg6[%c0_14, %c0_15], %16 {strides = array<i32>} : memref<8x128xf32, #tpu.memory_space<vmem>>, vector<8x128xf32>,
    return
  }
  func.func @transform_0(%arg0: i32, %arg1: i32) -> (i32, i32) {
    %c1_i32 = arith.constant 1 : i32
    %0 = arith.muli %arg0, %c1_i32 : i32
    %1 = arith.addi %0, %arg1 : i32
    %c0_i32 = arith.constant 0 : i32
    %c0_i32_0 = arith.constant 0 : i32
    return %1, %c0_i32 : i32, i32
  }
  func.func @transform_1(%arg0: i32, %arg1: i32) -> (i32, i32) {
    %c0_i32 = arith.constant 0 : i32
    %c0_i32_0 = arith.constant 0 : i32
    %c0_i32_1 = arith.constant 0 : i32
    return %c0_i32, %c0_i32_0 : i32, i32
  }
  func.func @transform_2(%arg0: i32, %arg1: i32) -> (i32, i32) {
    %c1_i32 = arith.constant 1 : i32
    %0 = arith.muli %arg0, %c1_i32 : i32
    %1 = arith.addi %0, %arg1 : i32
    %c0_i32 = arith.constant 0 : i32
    %c0_i32_0 = arith.constant 0 : i32
    return %1, %c0_i32 : i32, i32
  }
  func.func @transform_3(%arg0: i32, %arg1: i32) -> (i32, i32) {
    %c0_i32 = arith.constant 0 : i32
    %c0_i32_0 = arith.constant 0 : i32
    return %arg0, %c0_i32 : i32, i32
  }
  func.func @transform_4(%arg0: i32, %arg1: i32) -> (i32, i32) {
    %c0_i32 = arith.constant 0 : i32
    %c0_i32_0 = arith.constant 0 : i32
    return %arg0, %c0_i32 : i32, i32
  }
}

module attributes {stable_mosaic.version = 11 : i64} {
  func.func @_bn_apply_y_kernel(%arg0: i32, %arg1: memref<80x128xbf16, #tpu.memory_space<vmem>>, %arg2: memref<16x128xf32, #tpu.memory_space<vmem>>, %arg3: memref<16x128xf32, #tpu.memory_space<vmem>>, %arg4: memref<1x128xf32, #tpu.memory_space<vmem>>, %arg5: memref<1x128xf32, #tpu.memory_space<vmem>>, %arg6: memref<80x128xbf16, #tpu.memory_space<vmem>>) attributes {dimension_semantics = [#tpu.dimension_semantics<parallel>], iteration_bounds = array<i64: 2>, scalar_prefetch = 0 : i64, scratch_operands = 0 : i64, tpu.core_type = #tpu.core_type<tc>, window_params = [{transform_indices = @transform_0, window_bounds = array<i64: 80, 128>}, {pipeline_mode = #tpu.pipeline_mode<synchronous>, transform_indices = @transform_1, window_bounds = array<i64: 16, 128>}, {pipeline_mode = #tpu.pipeline_mode<synchronous>, transform_indices = @transform_2, window_bounds = array<i64: 16, 128>}, {pipeline_mode = #tpu.pipeline_mode<synchronous>, transform_indices = @transform_3, window_bounds = array<i64: 1, 128>}, {pipeline_mode = #tpu.pipeline_mode<synchronous>, transform_indices = @transform_4, window_bounds = array<i64: 1, 128>}, {transform_indices = @transform_5, window_bounds = array<i64: 80, 128>}]} {
    %c0 = arith.constant 0 : index
    %c0_0 = arith.constant 0 : index
    %0 = vector.load %arg2[%c0, %c0_0] : memref<16x128xf32, #tpu.memory_space<vmem>>, vector<16x128xf32>
    %cst = arith.constant dense<0.000000e+00> : vector<128xf32>
    %1 = vector.multi_reduction <add>, %0, %cst [0] : vector<16x128xf32> to vector<128xf32>
    %2 = vector.shape_cast %1 : vector<128xf32> to vector<1x128xf32>
    %c0_1 = arith.constant 0 : index
    %c0_2 = arith.constant 0 : index
    %3 = vector.load %arg3[%c0_1, %c0_2] : memref<16x128xf32, #tpu.memory_space<vmem>>, vector<16x128xf32>
    %cst_3 = arith.constant dense<0.000000e+00> : vector<128xf32>
    %4 = vector.multi_reduction <add>, %3, %cst_3 [0] : vector<16x128xf32> to vector<128xf32>
    %5 = vector.shape_cast %4 : vector<128xf32> to vector<1x128xf32>
    %cst_4 = arith.constant 0.013888889 : f32
    %6 = vector.broadcast %cst_4 : f32 to vector<1x128xf32>
    %7 = arith.mulf %2, %6 : vector<1x128xf32>
    %cst_5 = arith.constant 0.013888889 : f32
    %8 = vector.broadcast %cst_5 : f32 to vector<1x128xf32>
    %9 = arith.mulf %5, %8 : vector<1x128xf32>
    %10 = arith.mulf %7, %7 : vector<1x128xf32>
    %11 = arith.subf %9, %10 : vector<1x128xf32>
    %cst_6 = arith.constant 0.000000e+00 : f32
    %12 = vector.broadcast %cst_6 : f32 to vector<1x128xf32>
    %13 = arith.maximumf %11, %12 : vector<1x128xf32>
    %c0_7 = arith.constant 0 : index
    %c0_8 = arith.constant 0 : index
    %14 = vector.load %arg4[%c0_7, %c0_8] : memref<1x128xf32, #tpu.memory_space<vmem>>, vector<1x128xf32>
    %cst_9 = arith.constant 9.99999974E-6 : f32
    %15 = vector.broadcast %cst_9 : f32 to vector<1x128xf32>
    %16 = arith.addf %13, %15 : vector<1x128xf32>
    %17 = math.rsqrt %16 : vector<1x128xf32>
    %18 = arith.mulf %14, %17 : vector<1x128xf32>
    %c0_10 = arith.constant 0 : index
    %c0_11 = arith.constant 0 : index
    %19 = vector.load %arg5[%c0_10, %c0_11] : memref<1x128xf32, #tpu.memory_space<vmem>>, vector<1x128xf32>
    %20 = arith.mulf %7, %18 : vector<1x128xf32>
    %21 = arith.subf %19, %20 : vector<1x128xf32>
    %c0_12 = arith.constant 0 : index
    %c0_13 = arith.constant 0 : index
    %22 = vector.load %arg1[%c0_12, %c0_13] : memref<80x128xbf16, #tpu.memory_space<vmem>>, vector<80x128xbf16>
    %23 = arith.extf %22 : vector<80x128xbf16> to vector<80x128xf32>
    %24 = vector.broadcast %18 : vector<1x128xf32> to vector<80x128xf32>
    %25 = arith.mulf %23, %24 : vector<80x128xf32>
    %26 = vector.broadcast %21 : vector<1x128xf32> to vector<80x128xf32>
    %27 = arith.addf %25, %26 : vector<80x128xf32>
    %cst_14 = arith.constant 0.000000e+00 : f32
    %28 = vector.broadcast %cst_14 : f32 to vector<80x128xf32>
    %29 = arith.maximumf %27, %28 : vector<80x128xf32>
    %30 = arith.truncf %29 : vector<80x128xf32> to vector<80x128xbf16>
    %c0_15 = arith.constant 0 : index
    %c0_16 = arith.constant 0 : index
    %31 = vector.load %arg6[%c0_15, %c0_16] : memref<80x128xbf16, #tpu.memory_space<vmem>>, vector<80x128xbf16>
    tpu.vector_store %arg6[%c0_15, %c0_16], %30 {strides = array<i32>} : memref<80x128xbf16, #tpu.memory_space<vmem>>, vector<80x128xbf16>,
    return
  }
  func.func @transform_0(%arg0: i32) -> (i32, i32) {
    %c0_i32 = arith.constant 0 : i32
    %c0_i32_0 = arith.constant 0 : i32
    return %arg0, %c0_i32 : i32, i32
  }
  func.func @transform_1(%arg0: i32) -> (i32, i32) {
    %c0_i32 = arith.constant 0 : i32
    %c0_i32_0 = arith.constant 0 : i32
    %c0_i32_1 = arith.constant 0 : i32
    return %c0_i32, %c0_i32_0 : i32, i32
  }
  func.func @transform_2(%arg0: i32) -> (i32, i32) {
    %c0_i32 = arith.constant 0 : i32
    %c0_i32_0 = arith.constant 0 : i32
    %c0_i32_1 = arith.constant 0 : i32
    return %c0_i32, %c0_i32_0 : i32, i32
  }
  func.func @transform_3(%arg0: i32) -> (i32, i32) {
    %c0_i32 = arith.constant 0 : i32
    %c0_i32_0 = arith.constant 0 : i32
    %c0_i32_1 = arith.constant 0 : i32
    return %c0_i32, %c0_i32_0 : i32, i32
  }
  func.func @transform_4(%arg0: i32) -> (i32, i32) {
    %c0_i32 = arith.constant 0 : i32
    %c0_i32_0 = arith.constant 0 : i32
    %c0_i32_1 = arith.constant 0 : i32
    return %c0_i32, %c0_i32_0 : i32, i32
  }
  func.func @transform_5(%arg0: i32) -> (i32, i32) {
    %c0_i32 = arith.constant 0 : i32
    %c0_i32_0 = arith.constant 0 : i32
    return %arg0, %c0_i32 : i32, i32
  }
}

module attributes {stable_mosaic.version = 11 : i64} {
  func.func @_matmul_stats_kernel(%arg0: i32, %arg1: i32, %arg2: memref<32x288xbf16, #tpu.memory_space<vmem>>, %arg3: memref<288x128xbf16, #tpu.memory_space<vmem>>, %arg4: memref<32x128xbf16, #tpu.memory_space<vmem>>, %arg5: memref<8x128xf32, #tpu.memory_space<vmem>>, %arg6: memref<8x128xf32, #tpu.memory_space<vmem>>) attributes {dimension_semantics = [#tpu.dimension_semantics<parallel>, #tpu.dimension_semantics<arbitrary>], iteration_bounds = array<i64: 2, 1>, scalar_prefetch = 0 : i64, scratch_operands = 0 : i64, tpu.core_type = #tpu.core_type<tc>, window_params = [{transform_indices = @transform_0, window_bounds = array<i64: 32, 288>}, {pipeline_mode = #tpu.pipeline_mode<synchronous>, transform_indices = @transform_1, window_bounds = array<i64: 288, 128>}, {transform_indices = @transform_2, window_bounds = array<i64: 32, 128>}, {transform_indices = @transform_3, window_bounds = array<i64: 8, 128>}, {transform_indices = @transform_4, window_bounds = array<i64: 8, 128>}]} {
    %c0 = arith.constant 0 : index
    %c0_0 = arith.constant 0 : index
    %0 = vector.load %arg2[%c0, %c0_0] : memref<32x288xbf16, #tpu.memory_space<vmem>>, vector<32x288xbf16>
    %c0_1 = arith.constant 0 : index
    %c0_2 = arith.constant 0 : index
    %1 = vector.load %arg3[%c0_1, %c0_2] : memref<288x128xbf16, #tpu.memory_space<vmem>>, vector<288x128xbf16>
    %cst = arith.constant dense<0.000000e+00> : vector<32x128xf32>
    %2 = tpu.matmul %0, %1, %cst {dimension_numbers = #tpu.dot_dimension_numbers<[1], [0], [0], [1], [0, 0, 1, 1], [], []>} : vector<32x288xbf16>, vector<288x128xbf16>, vector<32x128xf32> -> vector<32x128xf32>
    %3 = arith.truncf %2 : vector<32x128xf32> to vector<32x128xbf16>
    %c0_3 = arith.constant 0 : index
    %c0_4 = arith.constant 0 : index
    %4 = vector.load %arg4[%c0_3, %c0_4] : memref<32x128xbf16, #tpu.memory_space<vmem>>, vector<32x128xbf16>
    tpu.vector_store %arg4[%c0_3, %c0_4], %3 {strides = array<i32>} : memref<32x128xbf16, #tpu.memory_space<vmem>>, vector<32x128xbf16>,
    %c0_i32 = arith.constant 0 : i32
    %5 = arith.cmpi eq, %arg1, %c0_i32 : i32
    %6 = arith.extui %5 : i1 to i32
    %c0_i32_5 = arith.constant 0 : i32
    %7 = arith.cmpi ne, %6, %c0_i32_5 : i32
    scf.if %7 {
      %cst_16 = arith.constant 0.000000e+00 : f32
      %18 = vector.broadcast %cst_16 : f32 to vector<8x128xf32>
      %c0_17 = arith.constant 0 : index
      %c0_18 = arith.constant 0 : index
      %19 = vector.load %arg5[%c0_17, %c0_18] : memref<8x128xf32, #tpu.memory_space<vmem>>, vector<8x128xf32>
      tpu.vector_store %arg5[%c0_17, %c0_18], %18 {strides = array<i32>} : memref<8x128xf32, #tpu.memory_space<vmem>>, vector<8x128xf32>,
      %cst_19 = arith.constant 0.000000e+00 : f32
      %20 = vector.broadcast %cst_19 : f32 to vector<8x128xf32>
      %c0_20 = arith.constant 0 : index
      %c0_21 = arith.constant 0 : index
      %21 = vector.load %arg6[%c0_20, %c0_21] : memref<8x128xf32, #tpu.memory_space<vmem>>, vector<8x128xf32>
      tpu.vector_store %arg6[%c0_20, %c0_21], %20 {strides = array<i32>} : memref<8x128xf32, #tpu.memory_space<vmem>>, vector<8x128xf32>,
    } else {
    }
    %8 = vector.shape_cast %2 : vector<32x128xf32> to vector<4x8x128xf32>
    %c0_6 = arith.constant 0 : index
    %c0_7 = arith.constant 0 : index
    %9 = vector.load %arg5[%c0_6, %c0_7] : memref<8x128xf32, #tpu.memory_space<vmem>>, vector<8x128xf32>
    %cst_8 = arith.constant dense<0.000000e+00> : vector<8x128xf32>
    %10 = vector.multi_reduction <add>, %8, %cst_8 [0] : vector<4x8x128xf32> to vector<8x128xf32>
    %11 = arith.addf %9, %10 : vector<8x128xf32>
    %c0_9 = arith.constant 0 : index
    %c0_10 = arith.constant 0 : index
    %12 = vector.load %arg5[%c0_9, %c0_10] : memref<8x128xf32, #tpu.memory_space<vmem>>, vector<8x128xf32>
    tpu.vector_store %arg5[%c0_9, %c0_10], %11 {strides = array<i32>} : memref<8x128xf32, #tpu.memory_space<vmem>>, vector<8x128xf32>,
    %c0_11 = arith.constant 0 : index
    %c0_12 = arith.constant 0 : index
    %13 = vector.load %arg6[%c0_11, %c0_12] : memref<8x128xf32, #tpu.memory_space<vmem>>, vector<8x128xf32>
    %14 = arith.mulf %8, %8 : vector<4x8x128xf32>
    %cst_13 = arith.constant dense<0.000000e+00> : vector<8x128xf32>
    %15 = vector.multi_reduction <add>, %14, %cst_13 [0] : vector<4x8x128xf32> to vector<8x128xf32>
    %16 = arith.addf %13, %15 : vector<8x128xf32>
    %c0_14 = arith.constant 0 : index
    %c0_15 = arith.constant 0 : index
    %17 = vector.load %arg6[%c0_14, %c0_15] : memref<8x128xf32, #tpu.memory_space<vmem>>, vector<8x128xf32>
    tpu.vector_store %arg6[%c0_14, %c0_15], %16 {strides = array<i32>} : memref<8x128xf32, #tpu.memory_space<vmem>>, vector<8x128xf32>,
    return
  }
  func.func @transform_0(%arg0: i32, %arg1: i32) -> (i32, i32) {
    %c1_i32 = arith.constant 1 : i32
    %0 = arith.muli %arg0, %c1_i32 : i32
    %1 = arith.addi %0, %arg1 : i32
    %c0_i32 = arith.constant 0 : i32
    %c0_i32_0 = arith.constant 0 : i32
    return %1, %c0_i32 : i32, i32
  }
  func.func @transform_1(%arg0: i32, %arg1: i32) -> (i32, i32) {
    %c0_i32 = arith.constant 0 : i32
    %c0_i32_0 = arith.constant 0 : i32
    %c0_i32_1 = arith.constant 0 : i32
    return %c0_i32, %c0_i32_0 : i32, i32
  }
  func.func @transform_2(%arg0: i32, %arg1: i32) -> (i32, i32) {
    %c1_i32 = arith.constant 1 : i32
    %0 = arith.muli %arg0, %c1_i32 : i32
    %1 = arith.addi %0, %arg1 : i32
    %c0_i32 = arith.constant 0 : i32
    %c0_i32_0 = arith.constant 0 : i32
    return %1, %c0_i32 : i32, i32
  }
  func.func @transform_3(%arg0: i32, %arg1: i32) -> (i32, i32) {
    %c0_i32 = arith.constant 0 : i32
    %c0_i32_0 = arith.constant 0 : i32
    return %arg0, %c0_i32 : i32, i32
  }
  func.func @transform_4(%arg0: i32, %arg1: i32) -> (i32, i32) {
    %c0_i32 = arith.constant 0 : i32
    %c0_i32_0 = arith.constant 0 : i32
    return %arg0, %c0_i32 : i32, i32
  }
}

module attributes {stable_mosaic.version = 11 : i64} {
  func.func @_bn_apply_y_kernel(%arg0: i32, %arg1: memref<32x128xbf16, #tpu.memory_space<vmem>>, %arg2: memref<16x128xf32, #tpu.memory_space<vmem>>, %arg3: memref<16x128xf32, #tpu.memory_space<vmem>>, %arg4: memref<1x128xf32, #tpu.memory_space<vmem>>, %arg5: memref<1x128xf32, #tpu.memory_space<vmem>>, %arg6: memref<32x128xbf16, #tpu.memory_space<vmem>>) attributes {dimension_semantics = [#tpu.dimension_semantics<parallel>], iteration_bounds = array<i64: 2>, scalar_prefetch = 0 : i64, scratch_operands = 0 : i64, tpu.core_type = #tpu.core_type<tc>, window_params = [{transform_indices = @transform_0, window_bounds = array<i64: 32, 128>}, {pipeline_mode = #tpu.pipeline_mode<synchronous>, transform_indices = @transform_1, window_bounds = array<i64: 16, 128>}, {pipeline_mode = #tpu.pipeline_mode<synchronous>, transform_indices = @transform_2, window_bounds = array<i64: 16, 128>}, {pipeline_mode = #tpu.pipeline_mode<synchronous>, transform_indices = @transform_3, window_bounds = array<i64: 1, 128>}, {pipeline_mode = #tpu.pipeline_mode<synchronous>, transform_indices = @transform_4, window_bounds = array<i64: 1, 128>}, {transform_indices = @transform_5, window_bounds = array<i64: 32, 128>}]} {
    %c0 = arith.constant 0 : index
    %c0_0 = arith.constant 0 : index
    %0 = vector.load %arg2[%c0, %c0_0] : memref<16x128xf32, #tpu.memory_space<vmem>>, vector<16x128xf32>
    %cst = arith.constant dense<0.000000e+00> : vector<128xf32>
    %1 = vector.multi_reduction <add>, %0, %cst [0] : vector<16x128xf32> to vector<128xf32>
    %2 = vector.shape_cast %1 : vector<128xf32> to vector<1x128xf32>
    %c0_1 = arith.constant 0 : index
    %c0_2 = arith.constant 0 : index
    %3 = vector.load %arg3[%c0_1, %c0_2] : memref<16x128xf32, #tpu.memory_space<vmem>>, vector<16x128xf32>
    %cst_3 = arith.constant dense<0.000000e+00> : vector<128xf32>
    %4 = vector.multi_reduction <add>, %3, %cst_3 [0] : vector<16x128xf32> to vector<128xf32>
    %5 = vector.shape_cast %4 : vector<128xf32> to vector<1x128xf32>
    %cst_4 = arith.constant 0.055555556 : f32
    %6 = vector.broadcast %cst_4 : f32 to vector<1x128xf32>
    %7 = arith.mulf %2, %6 : vector<1x128xf32>
    %cst_5 = arith.constant 0.055555556 : f32
    %8 = vector.broadcast %cst_5 : f32 to vector<1x128xf32>
    %9 = arith.mulf %5, %8 : vector<1x128xf32>
    %10 = arith.mulf %7, %7 : vector<1x128xf32>
    %11 = arith.subf %9, %10 : vector<1x128xf32>
    %cst_6 = arith.constant 0.000000e+00 : f32
    %12 = vector.broadcast %cst_6 : f32 to vector<1x128xf32>
    %13 = arith.maximumf %11, %12 : vector<1x128xf32>
    %c0_7 = arith.constant 0 : index
    %c0_8 = arith.constant 0 : index
    %14 = vector.load %arg4[%c0_7, %c0_8] : memref<1x128xf32, #tpu.memory_space<vmem>>, vector<1x128xf32>
    %cst_9 = arith.constant 9.99999974E-6 : f32
    %15 = vector.broadcast %cst_9 : f32 to vector<1x128xf32>
    %16 = arith.addf %13, %15 : vector<1x128xf32>
    %17 = math.rsqrt %16 : vector<1x128xf32>
    %18 = arith.mulf %14, %17 : vector<1x128xf32>
    %c0_10 = arith.constant 0 : index
    %c0_11 = arith.constant 0 : index
    %19 = vector.load %arg5[%c0_10, %c0_11] : memref<1x128xf32, #tpu.memory_space<vmem>>, vector<1x128xf32>
    %20 = arith.mulf %7, %18 : vector<1x128xf32>
    %21 = arith.subf %19, %20 : vector<1x128xf32>
    %c0_12 = arith.constant 0 : index
    %c0_13 = arith.constant 0 : index
    %22 = vector.load %arg1[%c0_12, %c0_13] : memref<32x128xbf16, #tpu.memory_space<vmem>>, vector<32x128xbf16>
    %23 = arith.extf %22 : vector<32x128xbf16> to vector<32x128xf32>
    %24 = vector.broadcast %18 : vector<1x128xf32> to vector<32x128xf32>
    %25 = arith.mulf %23, %24 : vector<32x128xf32>
    %26 = vector.broadcast %21 : vector<1x128xf32> to vector<32x128xf32>
    %27 = arith.addf %25, %26 : vector<32x128xf32>
    %cst_14 = arith.constant 0.000000e+00 : f32
    %28 = vector.broadcast %cst_14 : f32 to vector<32x128xf32>
    %29 = arith.maximumf %27, %28 : vector<32x128xf32>
    %30 = arith.truncf %29 : vector<32x128xf32> to vector<32x128xbf16>
    %c0_15 = arith.constant 0 : index
    %c0_16 = arith.constant 0 : index
    %31 = vector.load %arg6[%c0_15, %c0_16] : memref<32x128xbf16, #tpu.memory_space<vmem>>, vector<32x128xbf16>
    tpu.vector_store %arg6[%c0_15, %c0_16], %30 {strides = array<i32>} : memref<32x128xbf16, #tpu.memory_space<vmem>>, vector<32x128xbf16>,
    return
  }
  func.func @transform_0(%arg0: i32) -> (i32, i32) {
    %c0_i32 = arith.constant 0 : i32
    %c0_i32_0 = arith.constant 0 : i32
    return %arg0, %c0_i32 : i32, i32
  }
  func.func @transform_1(%arg0: i32) -> (i32, i32) {
    %c0_i32 = arith.constant 0 : i32
    %c0_i32_0 = arith.constant 0 : i32
    %c0_i32_1 = arith.constant 0 : i32
    return %c0_i32, %c0_i32_0 : i32, i32
  }
  func.func @transform_2(%arg0: i32) -> (i32, i32) {
    %c0_i32 = arith.constant 0 : i32
    %c0_i32_0 = arith.constant 0 : i32
    %c0_i32_1 = arith.constant 0 : i32
    return %c0_i32, %c0_i32_0 : i32, i32
  }
  func.func @transform_3(%arg0: i32) -> (i32, i32) {
    %c0_i32 = arith.constant 0 : i32
    %c0_i32_0 = arith.constant 0 : i32
    %c0_i32_1 = arith.constant 0 : i32
    return %c0_i32, %c0_i32_0 : i32, i32
  }
  func.func @transform_4(%arg0: i32) -> (i32, i32) {
    %c0_i32 = arith.constant 0 : i32
    %c0_i32_0 = arith.constant 0 : i32
    %c0_i32_1 = arith.constant 0 : i32
    return %c0_i32, %c0_i32_0 : i32, i32
  }
  func.func @transform_5(%arg0: i32) -> (i32, i32) {
    %c0_i32 = arith.constant 0 : i32
    %c0_i32_0 = arith.constant 0 : i32
    return %arg0, %c0_i32 : i32, i32
  }
}

module attributes {stable_mosaic.version = 11 : i64} {
  func.func @_matmul_stats_kernel(%arg0: i32, %arg1: i32, %arg2: memref<16x576xbf16, #tpu.memory_space<vmem>>, %arg3: memref<576x128xbf16, #tpu.memory_space<vmem>>, %arg4: memref<16x128xbf16, #tpu.memory_space<vmem>>, %arg5: memref<8x128xf32, #tpu.memory_space<vmem>>, %arg6: memref<8x128xf32, #tpu.memory_space<vmem>>) attributes {dimension_semantics = [#tpu.dimension_semantics<parallel>, #tpu.dimension_semantics<arbitrary>], iteration_bounds = array<i64: 2, 1>, scalar_prefetch = 0 : i64, scratch_operands = 0 : i64, tpu.core_type = #tpu.core_type<tc>, window_params = [{transform_indices = @transform_0, window_bounds = array<i64: 16, 576>}, {pipeline_mode = #tpu.pipeline_mode<synchronous>, transform_indices = @transform_1, window_bounds = array<i64: 576, 128>}, {transform_indices = @transform_2, window_bounds = array<i64: 16, 128>}, {transform_indices = @transform_3, window_bounds = array<i64: 8, 128>}, {transform_indices = @transform_4, window_bounds = array<i64: 8, 128>}]} {
    %c0 = arith.constant 0 : index
    %c0_0 = arith.constant 0 : index
    %0 = vector.load %arg2[%c0, %c0_0] : memref<16x576xbf16, #tpu.memory_space<vmem>>, vector<16x576xbf16>
    %c0_1 = arith.constant 0 : index
    %c0_2 = arith.constant 0 : index
    %1 = vector.load %arg3[%c0_1, %c0_2] : memref<576x128xbf16, #tpu.memory_space<vmem>>, vector<576x128xbf16>
    %cst = arith.constant dense<0.000000e+00> : vector<16x128xf32>
    %2 = tpu.matmul %0, %1, %cst {dimension_numbers = #tpu.dot_dimension_numbers<[1], [0], [0], [1], [0, 0, 1, 1], [], []>} : vector<16x576xbf16>, vector<576x128xbf16>, vector<16x128xf32> -> vector<16x128xf32>
    %3 = arith.truncf %2 : vector<16x128xf32> to vector<16x128xbf16>
    %c0_3 = arith.constant 0 : index
    %c0_4 = arith.constant 0 : index
    %4 = vector.load %arg4[%c0_3, %c0_4] : memref<16x128xbf16, #tpu.memory_space<vmem>>, vector<16x128xbf16>
    tpu.vector_store %arg4[%c0_3, %c0_4], %3 {strides = array<i32>} : memref<16x128xbf16, #tpu.memory_space<vmem>>, vector<16x128xbf16>,
    %c0_i32 = arith.constant 0 : i32
    %5 = arith.cmpi eq, %arg1, %c0_i32 : i32
    %6 = arith.extui %5 : i1 to i32
    %c0_i32_5 = arith.constant 0 : i32
    %7 = arith.cmpi ne, %6, %c0_i32_5 : i32
    scf.if %7 {
      %cst_16 = arith.constant 0.000000e+00 : f32
      %18 = vector.broadcast %cst_16 : f32 to vector<8x128xf32>
      %c0_17 = arith.constant 0 : index
      %c0_18 = arith.constant 0 : index
      %19 = vector.load %arg5[%c0_17, %c0_18] : memref<8x128xf32, #tpu.memory_space<vmem>>, vector<8x128xf32>
      tpu.vector_store %arg5[%c0_17, %c0_18], %18 {strides = array<i32>} : memref<8x128xf32, #tpu.memory_space<vmem>>, vector<8x128xf32>,
      %cst_19 = arith.constant 0.000000e+00 : f32
      %20 = vector.broadcast %cst_19 : f32 to vector<8x128xf32>
      %c0_20 = arith.constant 0 : index
      %c0_21 = arith.constant 0 : index
      %21 = vector.load %arg6[%c0_20, %c0_21] : memref<8x128xf32, #tpu.memory_space<vmem>>, vector<8x128xf32>
      tpu.vector_store %arg6[%c0_20, %c0_21], %20 {strides = array<i32>} : memref<8x128xf32, #tpu.memory_space<vmem>>, vector<8x128xf32>,
    } else {
    }
    %8 = vector.shape_cast %2 : vector<16x128xf32> to vector<2x8x128xf32>
    %c0_6 = arith.constant 0 : index
    %c0_7 = arith.constant 0 : index
    %9 = vector.load %arg5[%c0_6, %c0_7] : memref<8x128xf32, #tpu.memory_space<vmem>>, vector<8x128xf32>
    %cst_8 = arith.constant dense<0.000000e+00> : vector<8x128xf32>
    %10 = vector.multi_reduction <add>, %8, %cst_8 [0] : vector<2x8x128xf32> to vector<8x128xf32>
    %11 = arith.addf %9, %10 : vector<8x128xf32>
    %c0_9 = arith.constant 0 : index
    %c0_10 = arith.constant 0 : index
    %12 = vector.load %arg5[%c0_9, %c0_10] : memref<8x128xf32, #tpu.memory_space<vmem>>, vector<8x128xf32>
    tpu.vector_store %arg5[%c0_9, %c0_10], %11 {strides = array<i32>} : memref<8x128xf32, #tpu.memory_space<vmem>>, vector<8x128xf32>,
    %c0_11 = arith.constant 0 : index
    %c0_12 = arith.constant 0 : index
    %13 = vector.load %arg6[%c0_11, %c0_12] : memref<8x128xf32, #tpu.memory_space<vmem>>, vector<8x128xf32>
    %14 = arith.mulf %8, %8 : vector<2x8x128xf32>
    %cst_13 = arith.constant dense<0.000000e+00> : vector<8x128xf32>
    %15 = vector.multi_reduction <add>, %14, %cst_13 [0] : vector<2x8x128xf32> to vector<8x128xf32>
    %16 = arith.addf %13, %15 : vector<8x128xf32>
    %c0_14 = arith.constant 0 : index
    %c0_15 = arith.constant 0 : index
    %17 = vector.load %arg6[%c0_14, %c0_15] : memref<8x128xf32, #tpu.memory_space<vmem>>, vector<8x128xf32>
    tpu.vector_store %arg6[%c0_14, %c0_15], %16 {strides = array<i32>} : memref<8x128xf32, #tpu.memory_space<vmem>>, vector<8x128xf32>,
    return
  }
  func.func @transform_0(%arg0: i32, %arg1: i32) -> (i32, i32) {
    %c1_i32 = arith.constant 1 : i32
    %0 = arith.muli %arg0, %c1_i32 : i32
    %1 = arith.addi %0, %arg1 : i32
    %c0_i32 = arith.constant 0 : i32
    %c0_i32_0 = arith.constant 0 : i32
    return %1, %c0_i32 : i32, i32
  }
  func.func @transform_1(%arg0: i32, %arg1: i32) -> (i32, i32) {
    %c0_i32 = arith.constant 0 : i32
    %c0_i32_0 = arith.constant 0 : i32
    %c0_i32_1 = arith.constant 0 : i32
    return %c0_i32, %c0_i32_0 : i32, i32
  }
  func.func @transform_2(%arg0: i32, %arg1: i32) -> (i32, i32) {
    %c1_i32 = arith.constant 1 : i32
    %0 = arith.muli %arg0, %c1_i32 : i32
    %1 = arith.addi %0, %arg1 : i32
    %c0_i32 = arith.constant 0 : i32
    %c0_i32_0 = arith.constant 0 : i32
    return %1, %c0_i32 : i32, i32
  }
  func.func @transform_3(%arg0: i32, %arg1: i32) -> (i32, i32) {
    %c0_i32 = arith.constant 0 : i32
    %c0_i32_0 = arith.constant 0 : i32
    return %arg0, %c0_i32 : i32, i32
  }
  func.func @transform_4(%arg0: i32, %arg1: i32) -> (i32, i32) {
    %c0_i32 = arith.constant 0 : i32
    %c0_i32_0 = arith.constant 0 : i32
    return %arg0, %c0_i32 : i32, i32
  }
}

module attributes {stable_mosaic.version = 11 : i64} {
  func.func @_bn_apply_y_kernel(%arg0: i32, %arg1: memref<16x128xbf16, #tpu.memory_space<vmem>>, %arg2: memref<16x128xf32, #tpu.memory_space<vmem>>, %arg3: memref<16x128xf32, #tpu.memory_space<vmem>>, %arg4: memref<1x128xf32, #tpu.memory_space<vmem>>, %arg5: memref<1x128xf32, #tpu.memory_space<vmem>>, %arg6: memref<16x128xbf16, #tpu.memory_space<vmem>>) attributes {dimension_semantics = [#tpu.dimension_semantics<parallel>], iteration_bounds = array<i64: 2>, scalar_prefetch = 0 : i64, scratch_operands = 0 : i64, tpu.core_type = #tpu.core_type<tc>, window_params = [{transform_indices = @transform_0, window_bounds = array<i64: 16, 128>}, {pipeline_mode = #tpu.pipeline_mode<synchronous>, transform_indices = @transform_1, window_bounds = array<i64: 16, 128>}, {pipeline_mode = #tpu.pipeline_mode<synchronous>, transform_indices = @transform_2, window_bounds = array<i64: 16, 128>}, {pipeline_mode = #tpu.pipeline_mode<synchronous>, transform_indices = @transform_3, window_bounds = array<i64: 1, 128>}, {pipeline_mode = #tpu.pipeline_mode<synchronous>, transform_indices = @transform_4, window_bounds = array<i64: 1, 128>}, {transform_indices = @transform_5, window_bounds = array<i64: 16, 128>}]} {
    %c0 = arith.constant 0 : index
    %c0_0 = arith.constant 0 : index
    %0 = vector.load %arg2[%c0, %c0_0] : memref<16x128xf32, #tpu.memory_space<vmem>>, vector<16x128xf32>
    %cst = arith.constant dense<0.000000e+00> : vector<128xf32>
    %1 = vector.multi_reduction <add>, %0, %cst [0] : vector<16x128xf32> to vector<128xf32>
    %2 = vector.shape_cast %1 : vector<128xf32> to vector<1x128xf32>
    %c0_1 = arith.constant 0 : index
    %c0_2 = arith.constant 0 : index
    %3 = vector.load %arg3[%c0_1, %c0_2] : memref<16x128xf32, #tpu.memory_space<vmem>>, vector<16x128xf32>
    %cst_3 = arith.constant dense<0.000000e+00> : vector<128xf32>
    %4 = vector.multi_reduction <add>, %3, %cst_3 [0] : vector<16x128xf32> to vector<128xf32>
    %5 = vector.shape_cast %4 : vector<128xf32> to vector<1x128xf32>
    %cst_4 = arith.constant 5.000000e-01 : f32
    %6 = vector.broadcast %cst_4 : f32 to vector<1x128xf32>
    %7 = arith.mulf %2, %6 : vector<1x128xf32>
    %cst_5 = arith.constant 5.000000e-01 : f32
    %8 = vector.broadcast %cst_5 : f32 to vector<1x128xf32>
    %9 = arith.mulf %5, %8 : vector<1x128xf32>
    %10 = arith.mulf %7, %7 : vector<1x128xf32>
    %11 = arith.subf %9, %10 : vector<1x128xf32>
    %cst_6 = arith.constant 0.000000e+00 : f32
    %12 = vector.broadcast %cst_6 : f32 to vector<1x128xf32>
    %13 = arith.maximumf %11, %12 : vector<1x128xf32>
    %c0_7 = arith.constant 0 : index
    %c0_8 = arith.constant 0 : index
    %14 = vector.load %arg4[%c0_7, %c0_8] : memref<1x128xf32, #tpu.memory_space<vmem>>, vector<1x128xf32>
    %cst_9 = arith.constant 9.99999974E-6 : f32
    %15 = vector.broadcast %cst_9 : f32 to vector<1x128xf32>
    %16 = arith.addf %13, %15 : vector<1x128xf32>
    %17 = math.rsqrt %16 : vector<1x128xf32>
    %18 = arith.mulf %14, %17 : vector<1x128xf32>
    %c0_10 = arith.constant 0 : index
    %c0_11 = arith.constant 0 : index
    %19 = vector.load %arg5[%c0_10, %c0_11] : memref<1x128xf32, #tpu.memory_space<vmem>>, vector<1x128xf32>
    %20 = arith.mulf %7, %18 : vector<1x128xf32>
    %21 = arith.subf %19, %20 : vector<1x128xf32>
    %c0_12 = arith.constant 0 : index
    %c0_13 = arith.constant 0 : index
    %22 = vector.load %arg1[%c0_12, %c0_13] : memref<16x128xbf16, #tpu.memory_space<vmem>>, vector<16x128xbf16>
    %23 = arith.extf %22 : vector<16x128xbf16> to vector<16x128xf32>
    %24 = vector.broadcast %18 : vector<1x128xf32> to vector<16x128xf32>
    %25 = arith.mulf %23, %24 : vector<16x128xf32>
    %26 = vector.broadcast %21 : vector<1x128xf32> to vector<16x128xf32>
    %27 = arith.addf %25, %26 : vector<16x128xf32>
    %28 = arith.truncf %27 : vector<16x128xf32> to vector<16x128xbf16>
    %c0_14 = arith.constant 0 : index
    %c0_15 = arith.constant 0 : index
    %29 = vector.load %arg6[%c0_14, %c0_15] : memref<16x128xbf16, #tpu.memory_space<vmem>>, vector<16x128xbf16>
    tpu.vector_store %arg6[%c0_14, %c0_15], %28 {strides = array<i32>} : memref<16x128xbf16, #tpu.memory_space<vmem>>, vector<16x128xbf16>,
    return
  }
  func.func @transform_0(%arg0: i32) -> (i32, i32) {
    %c0_i32 = arith.constant 0 : i32
    %c0_i32_0 = arith.constant 0 : i32
    return %arg0, %c0_i32 : i32, i32
  }
  func.func @transform_1(%arg0: i32) -> (i32, i32) {
    %c0_i32 = arith.constant 0 : i32
    %c0_i32_0 = arith.constant 0 : i32
    %c0_i32_1 = arith.constant 0 : i32
    return %c0_i32, %c0_i32_0 : i32, i32
  }
  func.func @transform_2(%arg0: i32) -> (i32, i32) {
    %c0_i32 = arith.constant 0 : i32
    %c0_i32_0 = arith.constant 0 : i32
    %c0_i32_1 = arith.constant 0 : i32
    return %c0_i32, %c0_i32_0 : i32, i32
  }
  func.func @transform_3(%arg0: i32) -> (i32, i32) {
    %c0_i32 = arith.constant 0 : i32
    %c0_i32_0 = arith.constant 0 : i32
    %c0_i32_1 = arith.constant 0 : i32
    return %c0_i32, %c0_i32_0 : i32, i32
  }
  func.func @transform_4(%arg0: i32) -> (i32, i32) {
    %c0_i32 = arith.constant 0 : i32
    %c0_i32_0 = arith.constant 0 : i32
    %c0_i32_1 = arith.constant 0 : i32
    return %c0_i32, %c0_i32_0 : i32, i32
  }
  func.func @transform_5(%arg0: i32) -> (i32, i32) {
    %c0_i32 = arith.constant 0 : i32
    %c0_i32_0 = arith.constant 0 : i32
    return %arg0, %c0_i32 : i32, i32
  }
}

</mosaic_0001>

<llo_original>
// kernel: cnn_forward.8
$region0: #{cnn_forward.8}
  #allocation0 [shape = 'u32[]', space=smem, size = 0x4, offset = 0x4, fixed_abs, tag = 'smem constant byte address 0x4 - core index']
  #allocation1 [shape = 'u32[144,128]{1,0:T(1,128)}', space=vmem, size = 0x12000, scoped, tag = 'internal scratch']
  %s0 = inlined_call_operand.vmem [shape: bf16[704,25], index: 0, kind: input, shape index: {}]
  %s1 = inlined_call_operand.vmem [shape: bf16[25,128], index: 1, kind: input, shape index: {}]
  %s2 = inlined_call_operand.vmem [shape: f32[16,128], index: 2, kind: output, shape index: {0}]
  %s3 = inlined_call_operand.vmem [shape: f32[16,128], index: 3, kind: output, shape index: {1}]
  %4 = xla_tuple %s2, %s3
  %s5 = sld [smem:[#allocation0]]
  $region53: #{cnn_forward.8} parent=0
    _
  %s7 = ssub.s32 1, %s5
  %s8 = scalar_select 0, %s7, %s5
  loop: start=0, step=1, limit=4
  $region2: #{cnn_forward.8} parent=0 // loop_pre_header
    _
  $region3: #{cnn_forward.8} parent=0 // loop_header
    %s10 = sphi 0, %s14
    %p11 = scmp.ge.s32.totalorder %s10, 4
    %s17 = sphi 0, %s29
    %s18 = sphi 0, %s25
    %s19 = sphi 0, %s17
    %s20 = sphi 0, %s18
    %s21 = sphi 0, %s19
    %s22 = sphi 0, %s20
    %s34 = sphi 0, %s36
    %s37 = sphi 0, %s34
    %s38 = sphi 0, %s37
    %s54 = sphi 0, %s38
    %s58 = sphi 0, %s58
    %s60 = sphi 0, %s58
    %s61 = sphi 0, %s60
    %s75 = sphi 0, %s61
    %s81 = sphi 0, %s83
    %s84 = sphi 0, %s81
    %s85 = sphi 0, %s84
    %s101 = sphi 0, %s85
    %s107 = sphi 0, %s109
    %s110 = sphi 0, %s107
    %s111 = sphi 0, %s110
    %s127 = sphi 0, %s111
  $region4: #{cnn_forward.8} parent=0 // loop_header_branch
    %13 = sbr.rel (%p11) target = $region8
  $region5: #{cnn_forward.8} parent=0 // loop_body
    %s15 = ssub.s32 %s10, 1
    %s16 = ssub.s32 %s10, 2
    %s23 = sadd.s32 1, %s18
    %p24 = scmp.ge.s32.totalorder %s23, 1
    %s25 = scalar_select %p24, 0, %s23
    %s26 = sadd.s32 1, %s17
    %s27 = scalar_select %p24, %s26, %s17
    %p28 = scmp.ge.s32.totalorder %s27, 2
    %s29 = scalar_select %p28, 0, %s27
    %s30 = sadd.s32 %s17, %s18
    %s31 = sadd.s32 %s29, %s25
    %s32 = ssub.s32 %s30, %s31
    %p33 = scmp.eq.s32.totalorder %s32, 0
    %s35 = sadd.s32 %s34, 1
    %s36 = scalar_select %p33, %s34, %s35
    %p39 = pneg %p33
    %p40 = scmp.eq.s32.totalorder %s10, 1
    %p41 = por %p39, %p40
    %p42 = scmp.ne.s32.totalorder %s34, %s37
    %p43 = scmp.eq.s32.totalorder %s10, 0
    %p44 = por %p42, %p43
    %p45 = scmp.ne.s32.totalorder %s34, %s37
    %p46 = scmp.eq.s32.totalorder %s15, 1
    %p47 = por %p45, %p46
    %p48 = scmp.ne.s32.totalorder %s37, %s38
    %p49 = scmp.eq.s32.totalorder %s15, 0
    %p50 = por %p48, %p49
    %p51 = scmp.ne.s32.totalorder %s37, %s38
    %p52 = scmp.eq.s32.totalorder %s16, 1
    %p53 = por %p51, %p52
    %p55 = scmp.ne.s32.totalorder %s38, %s54
    %p56 = scmp.eq.s32.totalorder %s16, 0
    %p57 = por %p55, %p56
    %s59 = sadd.s32 %s58, 1
    %p62 = scmp.eq.s32.totalorder %s10, 1
    %p63 = scmp.ne.s32.totalorder %s58, %s60
    %p64 = scmp.eq.s32.totalorder %s10, 0
    %p65 = por %p63, %p64
    %p66 = scmp.ne.s32.totalorder %s58, %s60
    %p67 = scmp.eq.s32.totalorder %s15, 1
    %p68 = por %p66, %p67
    %p69 = scmp.ne.s32.totalorder %s60, %s61
    %p70 = scmp.eq.s32.totalorder %s15, 0
    %p71 = por %p69, %p70
    %p72 = scmp.ne.s32.totalorder %s60, %s61
    %p73 = scmp.eq.s32.totalorder %s16, 1
    %p74 = por %p72, %p73
    %p76 = scmp.ne.s32.totalorder %s61, %s75
    %p77 = scmp.eq.s32.totalorder %s16, 0
    %p78 = por %p76, %p77
    %s79 = ssub.s32 %s17, %s29
    %p80 = scmp.eq.s32.totalorder %s79, 0
    %s82 = sadd.s32 %s81, 1
    %s83 = scalar_select %p80, %s81, %s82
    %p86 = pneg %p80
    %p87 = scmp.eq.s32.totalorder %s10, 1
    %p88 = por %p86, %p87
    %p89 = scmp.ne.s32.totalorder %s81, %s84
    %p90 = scmp.eq.s32.totalorder %s10, 0
    %p91 = por %p89, %p90
    %p92 = scmp.ne.s32.totalorder %s81, %s84
    %p93 = scmp.eq.s32.totalorder %s15, 1
    %p94 = por %p92, %p93
    %p95 = scmp.ne.s32.totalorder %s84, %s85
    %p96 = scmp.eq.s32.totalorder %s15, 0
    %p97 = por %p95, %p96
    %p98 = scmp.ne.s32.totalorder %s84, %s85
    %p99 = scmp.eq.s32.totalorder %s16, 1
    %p100 = por %p98, %p99
    %p102 = scmp.ne.s32.totalorder %s85, %s101
    %p103 = scmp.eq.s32.totalorder %s16, 0
    %p104 = por %p102, %p103
    %s105 = ssub.s32 %s17, %s29
    %p106 = scmp.eq.s32.totalorder %s105, 0
    %s108 = sadd.s32 %s107, 1
    %s109 = scalar_select %p106, %s107, %s108
    %p112 = pneg %p106
    %p113 = scmp.eq.s32.totalorder %s10, 1
    %p114 = por %p112, %p113
    %p115 = scmp.ne.s32.totalorder %s107, %s110
    %p116 = scmp.eq.s32.totalorder %s10, 0
    %p117 = por %p115, %p116
    %p118 = scmp.ne.s32.totalorder %s107, %s110
    %p119 = scmp.eq.s32.totalorder %s15, 1
    %p120 = por %p118, %p119
    %p121 = scmp.ne.s32.totalorder %s110, %s111
    %p122 = scmp.eq.s32.totalorder %s15, 0
    %p123 = por %p121, %p122
    %p124 = scmp.ne.s32.totalorder %s110, %s111
    %p125 = scmp.eq.s32.totalorder %s16, 1
    %p126 = por %p124, %p125
    %p128 = scmp.ne.s32.totalorder %s111, %s127
    %p129 = scmp.eq.s32.totalorder %s16, 0
    %p130 = por %p128, %p129
    %p131 = scmp.le.s32.totalorder 1, %s10
    %p132 = scmp.lt.s32.totalorder %s10, 3
    %p133 = pnand %p131, %p132
    %p134 = pneg %p133
    // Predicated region
    $region9: #{cnn_forward.8} parent=5 // pred_check
      _
    $region10: #{cnn_forward.8} parent=5 // pred_check_branch
      %136 = sbr.rel (%p133) target = $region12
    $region11: #{cnn_forward.8} parent=5 // pred_region
      %s137 = ssub.s32 %s10, 1
      // Predicated region
      $region13: #{cnn_forward.8} parent=11 // pred_check
        %p138 = pneg %p71
      $region14: #{cnn_forward.8} parent=11 // pred_check_branch
        %140 = sbr.rel (%p138) target = $region16
      $region15: #{cnn_forward.8} parent=11 // pred_region
        _
      $region16: #{cnn_forward.8} parent=11 // pred_fallthru
        _
    $region12: #{cnn_forward.8} parent=5 // pred_fallthru
      _
    %p141 = scmp.lt.s32.totalorder %s10, 2
    // Predicated region
    $region17: #{cnn_forward.8} parent=5 // pred_check
      %p142 = pneg %p141
    $region18: #{cnn_forward.8} parent=5 // pred_check_branch
      %144 = sbr.rel (%p142) target = $region20
    $region19: #{cnn_forward.8} parent=5 // pred_region
      // Predicated region
      $region21: #{cnn_forward.8} parent=19 // pred_check
        %p145 = pneg %p44
      $region22: #{cnn_forward.8} parent=19 // pred_check_branch
        %147 = sbr.rel (%p145) target = $region24
      $region23: #{cnn_forward.8} parent=19 // pred_region
        %s148 = sadd.s32 %s17, %s18
        %s149 = smul.u32 44, %s148
        %p150 = scmp.lt.s32.totalorder %s149, 87
        %s151 = scalar_select %p150, %s149, 87
        %s152 = smul.addr %s151, 4
        %s153 = scalar_lea.vmem %s0, %s152
        %s154 = sadd.s32 %s17, %s18
        %s155 = smul.u32 44, %s154
      $region24: #{cnn_forward.8} parent=19 // pred_fallthru
        _
    $region20: #{cnn_forward.8} parent=5 // pred_fallthru
      _
    %p156 = scmp.le.s32.totalorder 1, %s10
    %p157 = scmp.lt.s32.totalorder %s10, 3
    %p158 = pnand %p156, %p157
    %p159 = pneg %p158
    // Predicated region
    $region25: #{cnn_forward.8} parent=5 // pred_check
      _
    $region26: #{cnn_forward.8} parent=5 // pred_check_branch
      %161 = sbr.rel (%p158) target = $region28
    $region27: #{cnn_forward.8} parent=5 // pred_region
      %s162 = ssub.s32 %s10, 1
      %s163 = sadd.s32 %s19, %s20
      %s164 = smul.u32 44, %s163
      %p165 = scmp.lt.s32.totalorder %s164, 87
      %s166 = scalar_select %p165, %s164, 87
      %s167 = smul.addr %s166, 4
      %s168 = scalar_lea.vmem %s0, %s167
      %p169 = pneg %p50
      %p170 = pneg %p47
      %p171 = pneg %p71
      %p172 = pneg %p68
      %p173 = pneg %p97
      %p174 = pneg %p94
      %p175 = scmp.lt.s32.totalorder %s19, 1
      %s176 = scalar_select %p175, %s19, 1
      %s177 = smul.addr %s176, 8
      %s178 = scalar_lea.vmem %s2, %s177
      %p179 = pneg %p123
      %p180 = pneg %p120
      %p181 = scmp.lt.s32.totalorder %s19, 1
      %s182 = scalar_select %p181, %s19, 1
      %s183 = smul.addr %s182, 8
      %s184 = scalar_lea.vmem %s3, %s183
      %s185 = sadd.s32 %s19, %s20
      %s186 = smul.u32 44, %s185
      %p187 = scmp.lt.s32.totalorder %s186, 87
      %s188 = scalar_select %p187, %s186, 87
      %s189 = smul.addr %s188, 4
      %s190 = scalar_lea.vmem %s0, %s189
      %s191 = sadd.s32 %s19, %s20
      %s192 = smul.u32 44, %s191
      %p193 = scmp.lt.s32.totalorder %s19, 1
      %s194 = scalar_select %p193, %s19, 1
      %s195 = smul.addr %s194, 8
      %s196 = scalar_lea.vmem %s2, %s195
      %p197 = scmp.lt.s32.totalorder %s19, 1
      %s198 = scalar_select %p197, %s19, 1
      %s199 = smul.addr %s198, 8
      %s200 = scalar_lea.vmem %s3, %s199
      %v202 = vld [vmem:[%s190] sm:$0xf]
      %v203 = vld [vmem:[%s190 + $0x4] sm:$0xf]
      %v204 = vld [vmem:[%s190 + $0x8] sm:$0xf]
      %v205 = vld [vmem:[%s190 + $0xc] sm:$0xf]
      %v206 = vld [vmem:[%s190 + $0x10] sm:$0xf]
      %v207 = vld [vmem:[%s190 + $0x14] sm:$0xf]
      %v208 = vld [vmem:[%s190 + $0x18] sm:$0xf]
      %v209 = vld [vmem:[%s190 + $0x1c] sm:$0xf]
      %v210 = vld [vmem:[%s190 + $0x20] sm:$0xf]
      %v211 = vld [vmem:[%s190 + $0x24] sm:$0xf]
      %v212 = vld [vmem:[%s190 + $0x28] sm:$0xf]
      %v213 = vld [vmem:[%s190 + $0x2c] sm:$0xf]
      %v214 = vld [vmem:[%s190 + $0x30] sm:$0xf]
      %v215 = vld [vmem:[%s190 + $0x34] sm:$0xf]
      %v216 = vld [vmem:[%s190 + $0x38] sm:$0xf]
      %v217 = vld [vmem:[%s190 + $0x3c] sm:$0xf]
      %v218 = vld [vmem:[%s190 + $0x40] sm:$0xf]
      %v219 = vld [vmem:[%s190 + $0x44] sm:$0xf]
      %v220 = vld [vmem:[%s190 + $0x48] sm:$0xf]
      %v221 = vld [vmem:[%s190 + $0x4c] sm:$0xf]
      %v222 = vld [vmem:[%s190 + $0x50] sm:$0xf]
      %v223 = vld [vmem:[%s190 + $0x54] sm:$0xf]
      %v224 = vld [vmem:[%s190 + $0x58] sm:$0xf]
      %v225 = vld [vmem:[%s190 + $0x5c] sm:$0xf]
      %v226 = vld [vmem:[%s190 + $0x60] sm:$0xf]
      %v227 = vld [vmem:[%s190 + $0x64] sm:$0xf]
      %v228 = vld [vmem:[%s190 + $0x68] sm:$0xf]
      %v229 = vld [vmem:[%s190 + $0x6c] sm:$0xf]
      %v230 = vld [vmem:[%s190 + $0x70] sm:$0xf]
      %v231 = vld [vmem:[%s190 + $0x74] sm:$0xf]
      %v232 = vld [vmem:[%s190 + $0x78] sm:$0xf]
      %v233 = vld [vmem:[%s190 + $0x7c] sm:$0xf]
      %v234 = vld [vmem:[%s190 + $0x80] sm:$0xf]
      %v235 = vld [vmem:[%s190 + $0x84] sm:$0xf]
      %v236 = vld [vmem:[%s190 + $0x88] sm:$0xf]
      %v237 = vld [vmem:[%s190 + $0x8c] sm:$0xf]
      %v238 = vld [vmem:[%s190 + $0x90] sm:$0xf]
      %v239 = vld [vmem:[%s190 + $0x94] sm:$0xf]
      %v240 = vld [vmem:[%s190 + $0x98] sm:$0xf]
      %v241 = vld [vmem:[%s190 + $0x9c] sm:$0xf]
      %v242 = vld [vmem:[%s190 + $0xa0] sm:$0xf]
      %v243 = vld [vmem:[%s190 + $0xa4] sm:$0xf]
      %v244 = vld [vmem:[%s190 + $0xa8] sm:$0xf]
      %v245 = vld [vmem:[%s190 + $0xac] sm:$0xf]
      %v246 = vld [vmem:[%s1] sm:$0xf]
      %v247 = vld [vmem:[%s1 + $0x4] sm:$0xf]
      %v248 = vld [vmem:[%s1 + $0x8] sm:$0xf]
      %v249 = vld [vmem:[%s1 + $0xc] sm:$0x1]
      %v294 = vunpack.c.l.b16 %v202
      %v295 = vunpack.c.l.b16 %v203
      %v296 = vunpack.c.l.b16 %v204
      %v297 = vunpack.c.l.b16 %v205
      %v298 = vunpack.c.l.b16 %v206
      %v299 = vunpack.c.l.b16 %v207
      %v300 = vunpack.c.l.b16 %v208
      %v301 = vunpack.c.l.b16 %v209
      %v302 = vunpack.c.l.b16 %v210
      %v303 = vunpack.c.l.b16 %v211
      %v304 = vunpack.c.l.b16 %v212
      %v305 = vunpack.c.l.b16 %v213
      %v306 = vunpack.c.l.b16 %v214
      %v307 = vunpack.c.l.b16 %v215
      %v308 = vunpack.c.l.b16 %v216
      %v309 = vunpack.c.l.b16 %v217
      %v310 = vunpack.c.l.b16 %v218
      %v311 = vunpack.c.l.b16 %v219
      %v312 = vunpack.c.l.b16 %v220
      %v313 = vunpack.c.l.b16 %v221
      %v314 = vunpack.c.l.b16 %v222
      %v315 = vunpack.c.l.b16 %v223
      %v316 = vunpack.c.l.b16 %v224
      %v317 = vunpack.c.l.b16 %v225
      %v318 = vunpack.c.l.b16 %v226
      %v319 = vunpack.c.l.b16 %v227
      %v320 = vunpack.c.l.b16 %v228
      %v321 = vunpack.c.l.b16 %v229
      %v322 = vunpack.c.l.b16 %v230
      %v323 = vunpack.c.l.b16 %v231
      %v324 = vunpack.c.l.b16 %v232
      %v325 = vunpack.c.l.b16 %v233
      %v326 = vunpack.c.l.b16 %v234
      %v327 = vunpack.c.l.b16 %v235
      %v328 = vunpack.c.l.b16 %v236
      %v329 = vunpack.c.l.b16 %v237
      %v330 = vunpack.c.l.b16 %v238
      %v331 = vunpack.c.l.b16 %v239
      %v332 = vunpack.c.l.b16 %v240
      %v333 = vunpack.c.l.b16 %v241
      %v334 = vunpack.c.l.b16 %v242
      %v335 = vunpack.c.l.b16 %v243
      %v336 = vunpack.c.l.b16 %v244
      %v337 = vunpack.c.l.b16 %v245
      %v338 = vpack.c.b16 %v295, %v294
      %v339 = vpack.c.b16 %v297, %v296
      %v340 = vpack.c.b16 %v299, %v298
      %v341 = vpack.c.b16 %v301, %v300
      %v342 = vpack.c.b16 %v303, %v302
      %v343 = vpack.c.b16 %v305, %v304
      %v344 = vpack.c.b16 %v307, %v306
      %v345 = vpack.c.b16 %v309, %v308
      %v346 = vpack.c.b16 %v311, %v310
      %v347 = vpack.c.b16 %v313, %v312
      %v348 = vpack.c.b16 %v315, %v314
      %v349 = vpack.c.b16 %v317, %v316
      %v350 = vpack.c.b16 %v319, %v318
      %v351 = vpack.c.b16 %v321, %v320
      %v352 = vpack.c.b16 %v323, %v322
      %v353 = vpack.c.b16 %v325, %v324
      %v354 = vpack.c.b16 %v327, %v326
      %v355 = vpack.c.b16 %v329, %v328
      %v356 = vpack.c.b16 %v331, %v330
      %v357 = vpack.c.b16 %v333, %v332
      %v358 = vpack.c.b16 %v335, %v334
      %v359 = vpack.c.b16 %v337, %v336
      %v364 = vunpack.c.l.b16 %v246
      %v365 = vunpack.c.l.b16 %v247
      %v366 = vunpack.c.l.b16 %v248
      %v367 = vunpack.c.l.b16 %v249
      %v368 = vpack.c.b16 %v365, %v364
      %v369 = vpack.c.b16 %v367, %v366
      %vm371 = vcmask 203776
      %v373 = vsel %vm371, %v338, 0
      %v376 = vsel %vm371, %v339, 0
      %v379 = vsel %vm371, %v340, 0
      %v382 = vsel %vm371, %v341, 0
      %v385 = vsel %vm371, %v342, 0
      %v388 = vsel %vm371, %v343, 0
      %v391 = vsel %vm371, %v344, 0
      %v394 = vsel %vm371, %v345, 0
      %v397 = vsel %vm371, %v346, 0
      %v400 = vsel %vm371, %v347, 0
      %v403 = vsel %vm371, %v348, 0
      %v406 = vsel %vm371, %v349, 0
      %v409 = vsel %vm371, %v350, 0
      %v412 = vsel %vm371, %v351, 0
      %v415 = vsel %vm371, %v352, 0
      %v418 = vsel %vm371, %v353, 0
      %v421 = vsel %vm371, %v354, 0
      %v424 = vsel %vm371, %v355, 0
      %v427 = vsel %vm371, %v356, 0
      %v430 = vsel %vm371, %v357, 0
      %v433 = vsel %vm371, %v358, 0
      %v436 = vsel %vm371, %v359, 0
      %vm438 = vcmask 1043456
      %vm439 = vcmask 1044480
      %v440 = vsel %vm438, 4294967295, 65535
      %v441 = vsel %vm439, %v440, 0
      %v443 = vand.u32 %v369, %v441
      %445 = vmatprep.subr.bf16.mxu0 0
      %446 = vmatpush1.bf16.msra.mxu0 0
      %447 = vmatprep.subr.bf16.mxu0 0
      %448 = vmatpush1.bf16.msra.mxu0 0
      %449 = vmatprep.subr.bf16.mxu0 0
      %450 = vmatpush1.bf16.msra.mxu0 0
      %451 = vmatprep.subr.bf16.mxu0 0
      %452 = vmatpush1.bf16.msra.mxu0 0
      %453 = vmatprep.subr.bf16.mxu0 0
      %454 = vmatpush1.bf16.msra.mxu0 0
      %455 = vmatprep.subr.bf16.mxu0 0
      %456 = vmatpush1.bf16.msra.mxu0 0
      %457 = vmatprep.subr.bf16.mxu0 0
      %458 = vmatpush1.bf16.msra.mxu0 %v443
      %459 = vmatprep.subr.bf16.mxu0 0
      %460 = vmatpush1.bf16.msra.mxu0 %v368
      %461 = vmatprep.subr.bf16.mxu0 0
      %462 = vmatpush2.bf16.msra.mxu0 0
      %463 = vmatprep.subr.bf16.mxu0 0
      %464 = vmatpush2.bf16.msra.mxu0 0
      %465 = vmatprep.subr.bf16.mxu0 0
      %466 = vmatpush2.bf16.msra.mxu0 0
      %467 = vmatprep.subr.bf16.mxu0 0
      %468 = vmatpush2.bf16.msra.mxu0 0
      %469 = vmatprep.subr.bf16.mxu0 0
      %470 = vmatpush2.bf16.msra.mxu0 0
      %471 = vmatprep.subr.bf16.mxu0 0
      %472 = vmatpush2.bf16.msra.mxu0 0
      %473 = vmatprep.subr.bf16.mxu0 0
      %474 = vmatpush2.bf16.msra.mxu0 0
      %475 = vmatprep.subr.bf16.mxu0 0
      %476 = vmatpush2.bf16.msra.mxu0 0
      %477 = vmatprep.mubr.bf16.mxu0 0
      %478 = vmatmul.mubr.bf16.gmra.mxu0 %v373
      %v479 = vpop.f32.mrf.mxu0
      %v480 = vadd.f32 0.0, %v479
      %v481 = vpop.f32.mrf.mxu0
      %v482 = vpop.f32.mrf.mxu0
      %v483 = vadd.f32 0.0, %v482
      %v484 = vpop.f32.mrf.mxu0
      %485 = vmatprep.mubr.bf16.mxu0 0
      %486 = vmatmul.mubr.bf16.gmra.mxu0 %v376
      %v487 = vpop.f32.mrf.mxu0
      %v488 = vadd.f32 0.0, %v487
      %v489 = vpop.f32.mrf.mxu0
      %v490 = vpop.f32.mrf.mxu0
      %v491 = vadd.f32 0.0, %v490
      %v492 = vpop.f32.mrf.mxu0
      %493 = vmatprep.mubr.bf16.mxu0 0
      %494 = vmatmul.mubr.bf16.gmra.mxu0 %v379
      %v495 = vpop.f32.mrf.mxu0
      %v496 = vadd.f32 0.0, %v495
      %v497 = vpop.f32.mrf.mxu0
      %v498 = vpop.f32.mrf.mxu0
      %v499 = vadd.f32 0.0, %v498
      %v500 = vpop.f32.mrf.mxu0
      %501 = vmatprep.mubr.bf16.mxu0 0
      %502 = vmatmul.mubr.bf16.gmra.mxu0 %v382
      %v503 = vpop.f32.mrf.mxu0
      %v504 = vadd.f32 0.0, %v503
      %v505 = vpop.f32.mrf.mxu0
      %v506 = vpop.f32.mrf.mxu0
      %v507 = vadd.f32 0.0, %v506
      %v508 = vpop.f32.mrf.mxu0
      %509 = vmatprep.mubr.bf16.mxu0 0
      %510 = vmatmul.mubr.bf16.gmra.mxu0 %v385
      %v511 = vpop.f32.mrf.mxu0
      %v512 = vadd.f32 0.0, %v511
      %v513 = vpop.f32.mrf.mxu0
      %v514 = vpop.f32.mrf.mxu0
      %v515 = vadd.f32 0.0, %v514
      %v516 = vpop.f32.mrf.mxu0
      %517 = vmatprep.mubr.bf16.mxu0 0
      %518 = vmatmul.mubr.bf16.gmra.mxu0 %v388
      %v519 = vpop.f32.mrf.mxu0
      %v520 = vadd.f32 0.0, %v519
      %v521 = vpop.f32.mrf.mxu0
      %v522 = vpop.f32.mrf.mxu0
      %v523 = vadd.f32 0.0, %v522
      %v524 = vpop.f32.mrf.mxu0
      %525 = vmatprep.mubr.bf16.mxu0 0
      %526 = vmatmul.mubr.bf16.gmra.mxu0 %v391
      %v527 = vpop.f32.mrf.mxu0
      %v528 = vadd.f32 0.0, %v527
      %v529 = vpop.f32.mrf.mxu0
      %v530 = vpop.f32.mrf.mxu0
      %v531 = vadd.f32 0.0, %v530
      %v532 = vpop.f32.mrf.mxu0
      %533 = vmatprep.mubr.bf16.mxu0 0
      %534 = vmatmul.mubr.bf16.gmra.mxu0 %v394
      %v535 = vpop.f32.mrf.mxu0
      %v536 = vadd.f32 0.0, %v535
      %v537 = vpop.f32.mrf.mxu0
      %v538 = vpop.f32.mrf.mxu0
      %v539 = vadd.f32 0.0, %v538
      %v540 = vpop.f32.mrf.mxu0
      %541 = vmatprep.mubr.bf16.mxu0 0
      %542 = vmatmul.mubr.bf16.gmra.mxu0 %v397
      %v543 = vpop.f32.mrf.mxu0
      %v544 = vadd.f32 0.0, %v543
      %v545 = vpop.f32.mrf.mxu0
      %v546 = vpop.f32.mrf.mxu0
      %v547 = vadd.f32 0.0, %v546
      %v548 = vpop.f32.mrf.mxu0
      %549 = vmatprep.mubr.bf16.mxu0 0
      %550 = vmatmul.mubr.bf16.gmra.mxu0 %v400
      %v551 = vpop.f32.mrf.mxu0
      %v552 = vadd.f32 0.0, %v551
      %v553 = vpop.f32.mrf.mxu0
      %v554 = vpop.f32.mrf.mxu0
      %v555 = vadd.f32 0.0, %v554
      %v556 = vpop.f32.mrf.mxu0
      %557 = vmatprep.mubr.bf16.mxu0 0
      %558 = vmatmul.mubr.bf16.gmra.mxu0 %v403
      %v559 = vpop.f32.mrf.mxu0
      %v560 = vadd.f32 0.0, %v559
      %v561 = vpop.f32.mrf.mxu0
      %v562 = vpop.f32.mrf.mxu0
      %v563 = vadd.f32 0.0, %v562
      %v564 = vpop.f32.mrf.mxu0
      %565 = vmatprep.mubr.bf16.mxu0 0
      %566 = vmatmul.mubr.bf16.gmra.mxu0 %v406
      %v567 = vpop.f32.mrf.mxu0
      %v568 = vadd.f32 0.0, %v567
      %v569 = vpop.f32.mrf.mxu0
      %v570 = vpop.f32.mrf.mxu0
      %v571 = vadd.f32 0.0, %v570
      %v572 = vpop.f32.mrf.mxu0
      %573 = vmatprep.mubr.bf16.mxu0 0
      %574 = vmatmul.mubr.bf16.gmra.mxu0 %v409
      %v575 = vpop.f32.mrf.mxu0
      %v576 = vadd.f32 0.0, %v575
      %v577 = vpop.f32.mrf.mxu0
      %v578 = vpop.f32.mrf.mxu0
      %v579 = vadd.f32 0.0, %v578
      %v580 = vpop.f32.mrf.mxu0
      %581 = vmatprep.mubr.bf16.mxu0 0
      %582 = vmatmul.mubr.bf16.gmra.mxu0 %v412
      %v583 = vpop.f32.mrf.mxu0
      %v584 = vadd.f32 0.0, %v583
      %v585 = vpop.f32.mrf.mxu0
      %v586 = vpop.f32.mrf.mxu0
      %v587 = vadd.f32 0.0, %v586
      %v588 = vpop.f32.mrf.mxu0
      %589 = vmatprep.mubr.bf16.mxu0 0
      %590 = vmatmul.mubr.bf16.gmra.mxu0 %v415
      %v591 = vpop.f32.mrf.mxu0
      %v592 = vadd.f32 0.0, %v591
      %v593 = vpop.f32.mrf.mxu0
      %v594 = vpop.f32.mrf.mxu0
      %v595 = vadd.f32 0.0, %v594
      %v596 = vpop.f32.mrf.mxu0
      %597 = vmatprep.mubr.bf16.mxu0 0
      %598 = vmatmul.mubr.bf16.gmra.mxu0 %v418
      %v599 = vpop.f32.mrf.mxu0
      %v600 = vadd.f32 0.0, %v599
      %v601 = vpop.f32.mrf.mxu0
      %v602 = vpop.f32.mrf.mxu0
      %v603 = vadd.f32 0.0, %v602
      %v604 = vpop.f32.mrf.mxu0
      %605 = vmatprep.mubr.bf16.mxu0 0
      %606 = vmatmul.mubr.bf16.gmra.mxu0 %v421
      %v607 = vpop.f32.mrf.mxu0
      %v608 = vadd.f32 0.0, %v607
      %v609 = vpop.f32.mrf.mxu0
      %v610 = vpop.f32.mrf.mxu0
      %v611 = vadd.f32 0.0, %v610
      %v612 = vpop.f32.mrf.mxu0
      %613 = vmatprep.mubr.bf16.mxu0 0
      %614 = vmatmul.mubr.bf16.gmra.mxu0 %v424
      %v615 = vpop.f32.mrf.mxu0
      %v616 = vadd.f32 0.0, %v615
      %v617 = vpop.f32.mrf.mxu0
      %v618 = vpop.f32.mrf.mxu0
      %v619 = vadd.f32 0.0, %v618
      %v620 = vpop.f32.mrf.mxu0
      %621 = vmatprep.mubr.bf16.mxu0 0
      %622 = vmatmul.mubr.bf16.gmra.mxu0 %v427
      %v623 = vpop.f32.mrf.mxu0
      %v624 = vadd.f32 0.0, %v623
      %v625 = vpop.f32.mrf.mxu0
      %v626 = vpop.f32.mrf.mxu0
      %v627 = vadd.f32 0.0, %v626
      %v628 = vpop.f32.mrf.mxu0
      %629 = vmatprep.mubr.bf16.mxu0 0
      %630 = vmatmul.mubr.bf16.gmra.mxu0 %v430
      %v631 = vpop.f32.mrf.mxu0
      %v632 = vadd.f32 0.0, %v631
      %v633 = vpop.f32.mrf.mxu0
      %v634 = vpop.f32.mrf.mxu0
      %v635 = vadd.f32 0.0, %v634
      %v636 = vpop.f32.mrf.mxu0
      %637 = vmatprep.mubr.bf16.mxu0 0
      %638 = vmatmul.mubr.bf16.gmra.mxu0 %v433
      %v639 = vpop.f32.mrf.mxu0
      %v640 = vadd.f32 0.0, %v639
      %v641 = vpop.f32.mrf.mxu0
      %v642 = vpop.f32.mrf.mxu0
      %v643 = vadd.f32 0.0, %v642
      %v644 = vpop.f32.mrf.mxu0
      %645 = vmatprep.mubr.bf16.mxu0 0
      %646 = vmatmul.mubr.bf16.gmra.mxu0 %v436
      %v647 = vpop.f32.mrf.mxu0
      %v648 = vadd.f32 0.0, %v647
      %v649 = vpop.f32.mrf.mxu0
      %v650 = vpop.f32.mrf.mxu0
      %v651 = vadd.f32 0.0, %v650
      %v652 = vpop.f32.mrf.mxu0
      %653 = vdwg.mxu0
      %p654 = scmp.eq.s32.totalorder %s20, 0
      // Predicated region
      $region29: #{cnn_forward.8} parent=27 // pred_check
        %p655 = pneg %p654
      $region30: #{cnn_forward.8} parent=27 // pred_check_branch
        %657 = sbr.rel (%p655) target = $region32
      $region31: #{cnn_forward.8} parent=27 // pred_region
        %658 = vst [vmem:[%s196] sm:$0xff] 0.0
        %659 = vst [vmem:[%s200] sm:$0xff] 0.0
      $region32: #{cnn_forward.8} parent=27 // pred_fallthru
        _
      %v660 = vld [vmem:[%s196] sm:$0xff]
      %v661 = vadd.f32 %v480, %v483
      %v662 = vadd.f32 %v661, %v488
      %v663 = vadd.f32 %v662, %v491
      %v664 = vadd.f32 %v663, %v496
      %v665 = vadd.f32 %v664, %v499
      %v666 = vadd.f32 %v665, %v504
      %v667 = vadd.f32 %v666, %v507
      %v668 = vadd.f32 %v667, %v512
      %v669 = vadd.f32 %v668, %v515
      %v670 = vadd.f32 %v669, %v520
      %v671 = vadd.f32 %v670, %v523
      %v672 = vadd.f32 %v671, %v528
      %v673 = vadd.f32 %v672, %v531
      %v674 = vadd.f32 %v673, %v536
      %v675 = vadd.f32 %v674, %v539
      %v676 = vadd.f32 %v675, %v544
      %v677 = vadd.f32 %v676, %v547
      %v678 = vadd.f32 %v677, %v552
      %v679 = vadd.f32 %v678, %v555
      %v680 = vadd.f32 %v679, %v560
      %v681 = vadd.f32 %v680, %v563
      %v682 = vadd.f32 %v681, %v568
      %v683 = vadd.f32 %v682, %v571
      %v684 = vadd.f32 %v683, %v576
      %v685 = vadd.f32 %v684, %v579
      %v686 = vadd.f32 %v685, %v584
      %v687 = vadd.f32 %v686, %v587
      %v688 = vadd.f32 %v687, %v592
      %v689 = vadd.f32 %v688, %v595
      %v690 = vadd.f32 %v689, %v600
      %v691 = vadd.f32 %v690, %v603
      %v692 = vadd.f32 %v691, %v608
      %v693 = vadd.f32 %v692, %v611
      %v694 = vadd.f32 %v693, %v616
      %v695 = vadd.f32 %v694, %v619
      %v696 = vadd.f32 %v695, %v624
      %v697 = vadd.f32 %v696, %v627
      %v698 = vadd.f32 %v697, %v632
      %v699 = vadd.f32 %v698, %v635
      %v700 = vadd.f32 %v699, %v640
      %v701 = vadd.f32 %v700, %v643
      %v702 = vadd.f32 %v701, %v648
      %v703 = vadd.f32 %v702, %v651
      %v704 = vadd.f32 %v660, %v703
      %705 = vst [vmem:[%s196] sm:$0xff] %v704
      %v706 = vld [vmem:[%s200] sm:$0xff]
      %v707 = vmul.f32 %v480, %v480
      %v708 = vmul.f32 %v483, %v483
      %v709 = vmul.f32 %v488, %v488
      %v710 = vmul.f32 %v491, %v491
      %v711 = vmul.f32 %v496, %v496
      %v712 = vmul.f32 %v499, %v499
      %v713 = vmul.f32 %v504, %v504
      %v714 = vmul.f32 %v507, %v507
      %v715 = vmul.f32 %v512, %v512
      %v716 = vmul.f32 %v515, %v515
      %v717 = vmul.f32 %v520, %v520
      %v718 = vmul.f32 %v523, %v523
      %v719 = vmul.f32 %v528, %v528
      %v720 = vmul.f32 %v531, %v531
      %v721 = vmul.f32 %v536, %v536
      %v722 = vmul.f32 %v539, %v539
      %v723 = vmul.f32 %v544, %v544
      %v724 = vmul.f32 %v547, %v547
      %v725 = vmul.f32 %v552, %v552
      %v726 = vmul.f32 %v555, %v555
      %v727 = vmul.f32 %v560, %v560
      %v728 = vmul.f32 %v563, %v563
      %v729 = vmul.f32 %v568, %v568
      %v730 = vmul.f32 %v571, %v571
      %v731 = vmul.f32 %v576, %v576
      %v732 = vmul.f32 %v579, %v579
      %v733 = vmul.f32 %v584, %v584
      %v734 = vmul.f32 %v587, %v587
      %v735 = vmul.f32 %v592, %v592
      %v736 = vmul.f32 %v595, %v595
      %v737 = vmul.f32 %v600, %v600
      %v738 = vmul.f32 %v603, %v603
      %v739 = vmul.f32 %v608, %v608
      %v740 = vmul.f32 %v611, %v611
      %v741 = vmul.f32 %v616, %v616
      %v742 = vmul.f32 %v619, %v619
      %v743 = vmul.f32 %v624, %v624
      %v744 = vmul.f32 %v627, %v627
      %v745 = vmul.f32 %v632, %v632
      %v746 = vmul.f32 %v635, %v635
      %v747 = vmul.f32 %v640, %v640
      %v748 = vmul.f32 %v643, %v643
      %v749 = vmul.f32 %v648, %v648
      %v750 = vmul.f32 %v651, %v651
      %v751 = vadd.f32 %v707, %v708
      %v752 = vadd.f32 %v751, %v709
      %v753 = vadd.f32 %v752, %v710
      %v754 = vadd.f32 %v753, %v711
      %v755 = vadd.f32 %v754, %v712
      %v756 = vadd.f32 %v755, %v713
      %v757 = vadd.f32 %v756, %v714
      %v758 = vadd.f32 %v757, %v715
      %v759 = vadd.f32 %v758, %v716
      %v760 = vadd.f32 %v759, %v717
      %v761 = vadd.f32 %v760, %v718
      %v762 = vadd.f32 %v761, %v719
      %v763 = vadd.f32 %v762, %v720
      %v764 = vadd.f32 %v763, %v721
      %v765 = vadd.f32 %v764, %v722
      %v766 = vadd.f32 %v765, %v723
      %v767 = vadd.f32 %v766, %v724
      %v768 = vadd.f32 %v767, %v725
      %v769 = vadd.f32 %v768, %v726
      %v770 = vadd.f32 %v769, %v727
      %v771 = vadd.f32 %v770, %v728
      %v772 = vadd.f32 %v771, %v729
      %v773 = vadd.f32 %v772, %v730
      %v774 = vadd.f32 %v773, %v731
      %v775 = vadd.f32 %v774, %v732
      %v776 = vadd.f32 %v775, %v733
      %v777 = vadd.f32 %v776, %v734
      %v778 = vadd.f32 %v777, %v735
      %v779 = vadd.f32 %v778, %v736
      %v780 = vadd.f32 %v779, %v737
      %v781 = vadd.f32 %v780, %v738
      %v782 = vadd.f32 %v781, %v739
      %v783 = vadd.f32 %v782, %v740
      %v784 = vadd.f32 %v783, %v741
      %v785 = vadd.f32 %v784, %v742
      %v786 = vadd.f32 %v785, %v743
      %v787 = vadd.f32 %v786, %v744
      %v788 = vadd.f32 %v787, %v745
      %v789 = vadd.f32 %v788, %v746
      %v790 = vadd.f32 %v789, %v747
      %v791 = vadd.f32 %v790, %v748
      %v792 = vadd.f32 %v791, %v749
      %v793 = vadd.f32 %v792, %v750
      %v794 = vadd.f32 %v706, %v793
      %795 = vst [vmem:[%s200] sm:$0xff] %v794
      %p796 = scmp.lt.s32.totalorder %s19, 1
      %s797 = scalar_select %p796, %s19, 1
      %s798 = smul.addr %s797, 8
      %s799 = scalar_lea.vmem %s2, %s798
      %p800 = scmp.lt.s32.totalorder %s19, 1
      %s801 = scalar_select %p800, %s19, 1
      %s802 = smul.addr %s801, 8
      %s803 = scalar_lea.vmem %s3, %s802
      // Predicated region
      $region33: #{cnn_forward.8} parent=27 // pred_check
        %p804 = pneg %p94
      $region34: #{cnn_forward.8} parent=27 // pred_check_branch
        %806 = sbr.rel (%p804) target = $region36
      $region35: #{cnn_forward.8} parent=27 // pred_region
        _
      $region36: #{cnn_forward.8} parent=27 // pred_fallthru
        _
      // Predicated region
      $region37: #{cnn_forward.8} parent=27 // pred_check
        %p807 = pneg %p120
      $region38: #{cnn_forward.8} parent=27 // pred_check_branch
        %809 = sbr.rel (%p807) target = $region40
      $region39: #{cnn_forward.8} parent=27 // pred_region
        _
      $region40: #{cnn_forward.8} parent=27 // pred_fallthru
        _
    $region28: #{cnn_forward.8} parent=5 // pred_fallthru
      _
    %p810 = scmp.le.s32.totalorder 2, %s10
    // Predicated region
    $region41: #{cnn_forward.8} parent=5 // pred_check
      %p811 = pneg %p810
    $region42: #{cnn_forward.8} parent=5 // pred_check_branch
      %813 = sbr.rel (%p811) target = $region44
    $region43: #{cnn_forward.8} parent=5 // pred_region
      %s814 = ssub.s32 %s10, 2
      // Predicated region
      $region45: #{cnn_forward.8} parent=43 // pred_check
        %p815 = pneg %p100
      $region46: #{cnn_forward.8} parent=43 // pred_check_branch
        %817 = sbr.rel (%p815) target = $region48
      $region47: #{cnn_forward.8} parent=43 // pred_region
        %p818 = scmp.lt.s32.totalorder %s21, 1
        %s819 = scalar_select %p818, %s21, 1
        %s820 = smul.addr %s819, 8
        %s821 = scalar_lea.vmem %s2, %s820
      $region48: #{cnn_forward.8} parent=43 // pred_fallthru
        _
      // Predicated region
      $region49: #{cnn_forward.8} parent=43 // pred_check
        %p822 = pneg %p126
      $region50: #{cnn_forward.8} parent=43 // pred_check_branch
        %824 = sbr.rel (%p822) target = $region52
      $region51: #{cnn_forward.8} parent=43 // pred_region
        %p825 = scmp.lt.s32.totalorder %s21, 1
        %s826 = scalar_select %p825, %s21, 1
        %s827 = smul.addr %s826, 8
        %s828 = scalar_lea.vmem %s3, %s827
      $region52: #{cnn_forward.8} parent=43 // pred_fallthru
        _
    $region44: #{cnn_forward.8} parent=5 // pred_fallthru
      _
  $region6: #{cnn_forward.8} parent=0 // loop_footer
    %s14 = sadd.s32 1, %s10
  $region7: #{cnn_forward.8} parent=0 // loop_footer_branch
    %9 = sbr.rel target = $region3
  $region8: #{cnn_forward.8} parent=0 // loop_exit
    _

// kernel: cnn_forward.9
$region0: #{cnn_forward.9}
  #allocation0 [shape = 'u32[]', space=smem, size = 0x4, offset = 0x4, fixed_abs, tag = 'smem constant byte address 0x4 - core index']
  #allocation1 [shape = 'u32[144,128]{1,0:T(1,128)}', space=vmem, size = 0x12000, scoped, tag = 'internal scratch']
  %s0 = inlined_call_operand.vmem [shape: bf16[704,25], index: 0, kind: input, shape index: {}]
  %s1 = inlined_call_operand.vmem [shape: bf16[25,128], index: 1, kind: input, shape index: {}]
  %s2 = inlined_call_operand.vmem [shape: f32[16,128], index: 2, kind: input, shape index: {}]
  %s3 = inlined_call_operand.vmem [shape: f32[16,128], index: 3, kind: input, shape index: {}]
  %s4 = inlined_call_operand.vmem [shape: f32[1,128], index: 4, kind: input, shape index: {}]
  %s5 = inlined_call_operand.vmem [shape: f32[1,128], index: 5, kind: input, shape index: {}]
  %s6 = inlined_call_operand.vmem [shape: bf16[704,128], index: 6, kind: output, shape index: {}]
  %s7 = sld [smem:[#allocation0]]
  $region57: #{cnn_forward.9} parent=0
    _
  %s9 = ssub.s32 1, %s7
  %s10 = scalar_select 0, %s9, %s7
  loop: start=0, step=1, limit=4
  $region2: #{cnn_forward.9} parent=0 // loop_pre_header
    _
  $region3: #{cnn_forward.9} parent=0 // loop_header
    %s12 = sphi 0, %s16
    %p13 = scmp.ge.s32.totalorder %s12, 4
    %s22 = sphi 0, %s24
    %s25 = sphi 0, %s22
    %s26 = sphi 0, %s25
    %s42 = sphi 0, %s26
    %s46 = sphi 0, %s46
    %s48 = sphi 0, %s46
    %s49 = sphi 0, %s48
    %s63 = sphi 0, %s49
    %s67 = sphi 0, %s67
    %s69 = sphi 0, %s67
    %s70 = sphi 0, %s69
    %s84 = sphi 0, %s70
    %s88 = sphi 0, %s88
    %s90 = sphi 0, %s88
    %s91 = sphi 0, %s90
    %s105 = sphi 0, %s91
    %s109 = sphi 0, %s109
    %s111 = sphi 0, %s109
    %s112 = sphi 0, %s111
    %s126 = sphi 0, %s112
    %s130 = sphi 0, %s130
    %s132 = sphi 0, %s130
    %s133 = sphi 0, %s132
    %s147 = sphi 0, %s133
    %s153 = sphi 0, %s155
    %s156 = sphi 0, %s153
    %s157 = sphi 0, %s156
    %s173 = sphi 0, %s157
  $region4: #{cnn_forward.9} parent=0 // loop_header_branch
    %15 = sbr.rel (%p13) target = $region8
  $region5: #{cnn_forward.9} parent=0 // loop_body
    %s17 = ssub.s32 %s12, 1
    %s18 = ssub.s32 %s12, 2
    %s19 = sadd.s32 %s12, 1
    %s20 = ssub.s32 %s12, %s19
    %p21 = scmp.eq.s32.totalorder %s20, 0
    %s23 = sadd.s32 %s22, 1
    %s24 = scalar_select %p21, %s22, %s23
    %p27 = pneg %p21
    %p28 = scmp.eq.s32.totalorder %s12, 1
    %p29 = por %p27, %p28
    %p30 = scmp.ne.s32.totalorder %s22, %s25
    %p31 = scmp.eq.s32.totalorder %s12, 0
    %p32 = por %p30, %p31
    %p33 = scmp.ne.s32.totalorder %s22, %s25
    %p34 = scmp.eq.s32.totalorder %s17, 1
    %p35 = por %p33, %p34
    %p36 = scmp.ne.s32.totalorder %s25, %s26
    %p37 = scmp.eq.s32.totalorder %s17, 0
    %p38 = por %p36, %p37
    %p39 = scmp.ne.s32.totalorder %s25, %s26
    %p40 = scmp.eq.s32.totalorder %s18, 1
    %p41 = por %p39, %p40
    %p43 = scmp.ne.s32.totalorder %s26, %s42
    %p44 = scmp.eq.s32.totalorder %s18, 0
    %p45 = por %p43, %p44
    %s47 = sadd.s32 %s46, 1
    %p50 = scmp.eq.s32.totalorder %s12, 1
    %p51 = scmp.ne.s32.totalorder %s46, %s48
    %p52 = scmp.eq.s32.totalorder %s12, 0
    %p53 = por %p51, %p52
    %p54 = scmp.ne.s32.totalorder %s46, %s48
    %p55 = scmp.eq.s32.totalorder %s17, 1
    %p56 = por %p54, %p55
    %p57 = scmp.ne.s32.totalorder %s48, %s49
    %p58 = scmp.eq.s32.totalorder %s17, 0
    %p59 = por %p57, %p58
    %p60 = scmp.ne.s32.totalorder %s48, %s49
    %p61 = scmp.eq.s32.totalorder %s18, 1
    %p62 = por %p60, %p61
    %p64 = scmp.ne.s32.totalorder %s49, %s63
    %p65 = scmp.eq.s32.totalorder %s18, 0
    %p66 = por %p64, %p65
    %s68 = sadd.s32 %s67, 1
    %p71 = scmp.eq.s32.totalorder %s12, 1
    %p72 = scmp.ne.s32.totalorder %s67, %s69
    %p73 = scmp.eq.s32.totalorder %s12, 0
    %p74 = por %p72, %p73
    %p75 = scmp.ne.s32.totalorder %s67, %s69
    %p76 = scmp.eq.s32.totalorder %s17, 1
    %p77 = por %p75, %p76
    %p78 = scmp.ne.s32.totalorder %s69, %s70
    %p79 = scmp.eq.s32.totalorder %s17, 0
    %p80 = por %p78, %p79
    %p81 = scmp.ne.s32.totalorder %s69, %s70
    %p82 = scmp.eq.s32.totalorder %s18, 1
    %p83 = por %p81, %p82
    %p85 = scmp.ne.s32.totalorder %s70, %s84
    %p86 = scmp.eq.s32.totalorder %s18, 0
    %p87 = por %p85, %p86
    %s89 = sadd.s32 %s88, 1
    %p92 = scmp.eq.s32.totalorder %s12, 1
    %p93 = scmp.ne.s32.totalorder %s88, %s90
    %p94 = scmp.eq.s32.totalorder %s12, 0
    %p95 = por %p93, %p94
    %p96 = scmp.ne.s32.totalorder %s88, %s90
    %p97 = scmp.eq.s32.totalorder %s17, 1
    %p98 = por %p96, %p97
    %p99 = scmp.ne.s32.totalorder %s90, %s91
    %p100 = scmp.eq.s32.totalorder %s17, 0
    %p101 = por %p99, %p100
    %p102 = scmp.ne.s32.totalorder %s90, %s91
    %p103 = scmp.eq.s32.totalorder %s18, 1
    %p104 = por %p102, %p103
    %p106 = scmp.ne.s32.totalorder %s91, %s105
    %p107 = scmp.eq.s32.totalorder %s18, 0
    %p108 = por %p106, %p107
    %s110 = sadd.s32 %s109, 1
    %p113 = scmp.eq.s32.totalorder %s12, 1
    %p114 = scmp.ne.s32.totalorder %s109, %s111
    %p115 = scmp.eq.s32.totalorder %s12, 0
    %p116 = por %p114, %p115
    %p117 = scmp.ne.s32.totalorder %s109, %s111
    %p118 = scmp.eq.s32.totalorder %s17, 1
    %p119 = por %p117, %p118
    %p120 = scmp.ne.s32.totalorder %s111, %s112
    %p121 = scmp.eq.s32.totalorder %s17, 0
    %p122 = por %p120, %p121
    %p123 = scmp.ne.s32.totalorder %s111, %s112
    %p124 = scmp.eq.s32.totalorder %s18, 1
    %p125 = por %p123, %p124
    %p127 = scmp.ne.s32.totalorder %s112, %s126
    %p128 = scmp.eq.s32.totalorder %s18, 0
    %p129 = por %p127, %p128
    %s131 = sadd.s32 %s130, 1
    %p134 = scmp.eq.s32.totalorder %s12, 1
    %p135 = scmp.ne.s32.totalorder %s130, %s132
    %p136 = scmp.eq.s32.totalorder %s12, 0
    %p137 = por %p135, %p136
    %p138 = scmp.ne.s32.totalorder %s130, %s132
    %p139 = scmp.eq.s32.totalorder %s17, 1
    %p140 = por %p138, %p139
    %p141 = scmp.ne.s32.totalorder %s132, %s133
    %p142 = scmp.eq.s32.totalorder %s17, 0
    %p143 = por %p141, %p142
    %p144 = scmp.ne.s32.totalorder %s132, %s133
    %p145 = scmp.eq.s32.totalorder %s18, 1
    %p146 = por %p144, %p145
    %p148 = scmp.ne.s32.totalorder %s133, %s147
    %p149 = scmp.eq.s32.totalorder %s18, 0
    %p150 = por %p148, %p149
    %s151 = ssub.s32 %s12, %s19
    %p152 = scmp.eq.s32.totalorder %s151, 0
    %s154 = sadd.s32 %s153, 1
    %s155 = scalar_select %p152, %s153, %s154
    %p158 = pneg %p152
    %p159 = scmp.eq.s32.totalorder %s12, 1
    %p160 = por %p158, %p159
    %p161 = scmp.ne.s32.totalorder %s153, %s156
    %p162 = scmp.eq.s32.totalorder %s12, 0
    %p163 = por %p161, %p162
    %p164 = scmp.ne.s32.totalorder %s153, %s156
    %p165 = scmp.eq.s32.totalorder %s17, 1
    %p166 = por %p164, %p165
    %p167 = scmp.ne.s32.totalorder %s156, %s157
    %p168 = scmp.eq.s32.totalorder %s17, 0
    %p169 = por %p167, %p168
    %p170 = scmp.ne.s32.totalorder %s156, %s157
    %p171 = scmp.eq.s32.totalorder %s18, 1
    %p172 = por %p170, %p171
    %p174 = scmp.ne.s32.totalorder %s157, %s173
    %p175 = scmp.eq.s32.totalorder %s18, 0
    %p176 = por %p174, %p175
    %p177 = scmp.le.s32.totalorder 1, %s12
    %p178 = scmp.lt.s32.totalorder %s12, 3
    %p179 = pnand %p177, %p178
    %p180 = pneg %p179
    // Predicated region
    $region9: #{cnn_forward.9} parent=5 // pred_check
      _
    $region10: #{cnn_forward.9} parent=5 // pred_check_branch
      %182 = sbr.rel (%p179) target = $region12
    $region11: #{cnn_forward.9} parent=5 // pred_region
      %s183 = ssub.s32 %s12, 1
      // Predicated region
      $region13: #{cnn_forward.9} parent=11 // pred_check
        %p184 = pneg %p59
      $region14: #{cnn_forward.9} parent=11 // pred_check_branch
        %186 = sbr.rel (%p184) target = $region16
      $region15: #{cnn_forward.9} parent=11 // pred_region
        _
      $region16: #{cnn_forward.9} parent=11 // pred_fallthru
        _
      // Predicated region
      $region17: #{cnn_forward.9} parent=11 // pred_check
        %p187 = pneg %p80
      $region18: #{cnn_forward.9} parent=11 // pred_check_branch
        %189 = sbr.rel (%p187) target = $region20
      $region19: #{cnn_forward.9} parent=11 // pred_region
        _
      $region20: #{cnn_forward.9} parent=11 // pred_fallthru
        _
      // Predicated region
      $region21: #{cnn_forward.9} parent=11 // pred_check
        %p190 = pneg %p101
      $region22: #{cnn_forward.9} parent=11 // pred_check_branch
        %192 = sbr.rel (%p190) target = $region24
      $region23: #{cnn_forward.9} parent=11 // pred_region
        _
      $region24: #{cnn_forward.9} parent=11 // pred_fallthru
        _
      // Predicated region
      $region25: #{cnn_forward.9} parent=11 // pred_check
        %p193 = pneg %p122
      $region26: #{cnn_forward.9} parent=11 // pred_check_branch
        %195 = sbr.rel (%p193) target = $region28
      $region27: #{cnn_forward.9} parent=11 // pred_region
        _
      $region28: #{cnn_forward.9} parent=11 // pred_fallthru
        _
      // Predicated region
      $region29: #{cnn_forward.9} parent=11 // pred_check
        %p196 = pneg %p143
      $region30: #{cnn_forward.9} parent=11 // pred_check_branch
        %198 = sbr.rel (%p196) target = $region32
      $region31: #{cnn_forward.9} parent=11 // pred_region
        _
      $region32: #{cnn_forward.9} parent=11 // pred_fallthru
        _
    $region12: #{cnn_forward.9} parent=5 // pred_fallthru
      _
    %p199 = scmp.lt.s32.totalorder %s12, 2
    // Predicated region
    $region33: #{cnn_forward.9} parent=5 // pred_check
      %p200 = pneg %p199
    $region34: #{cnn_forward.9} parent=5 // pred_check_branch
      %202 = sbr.rel (%p200) target = $region36
    $region35: #{cnn_forward.9} parent=5 // pred_region
      // Predicated region
      $region37: #{cnn_forward.9} parent=35 // pred_check
        %p203 = pneg %p32
      $region38: #{cnn_forward.9} parent=35 // pred_check_branch
        %205 = sbr.rel (%p203) target = $region40
      $region39: #{cnn_forward.9} parent=35 // pred_region
        %s206 = smul.u32 44, %s12
        %p207 = scmp.lt.s32.totalorder %s206, 87
        %s208 = scalar_select %p207, %s206, 87
        %s209 = smul.addr %s208, 4
        %s210 = scalar_lea.vmem %s0, %s209
        %s211 = smul.u32 44, %s12
      $region40: #{cnn_forward.9} parent=35 // pred_fallthru
        _
    $region36: #{cnn_forward.9} parent=5 // pred_fallthru
      _
    %p212 = scmp.le.s32.totalorder 1, %s12
    %p213 = scmp.lt.s32.totalorder %s12, 3
    %p214 = pnand %p212, %p213
    %p215 = pneg %p214
    // Predicated region
    $region41: #{cnn_forward.9} parent=5 // pred_check
      _
    $region42: #{cnn_forward.9} parent=5 // pred_check_branch
      %217 = sbr.rel (%p214) target = $region44
    $region43: #{cnn_forward.9} parent=5 // pred_region
      %s218 = ssub.s32 %s12, 1
      %s219 = smul.u32 44, %s17
      %p220 = scmp.lt.s32.totalorder %s219, 87
      %s221 = scalar_select %p220, %s219, 87
      %s222 = smul.addr %s221, 4
      %s223 = scalar_lea.vmem %s0, %s222
      %p224 = pneg %p38
      %p225 = pneg %p35
      %p226 = pneg %p59
      %p227 = pneg %p56
      %p228 = pneg %p80
      %p229 = pneg %p77
      %p230 = pneg %p101
      %p231 = pneg %p98
      %p232 = pneg %p122
      %p233 = pneg %p119
      %p234 = pneg %p143
      %p235 = pneg %p140
      %p236 = pneg %p169
      %p237 = pneg %p166
      %s238 = smul.u32 44, %s17
      %p239 = scmp.lt.s32.totalorder %s238, 87
      %s240 = scalar_select %p239, %s238, 87
      %s241 = smul.addr %s240, 4
      %s242 = scalar_lea.vmem %s6, %s241
      %s243 = smul.u32 44, %s17
      %p244 = scmp.lt.s32.totalorder %s243, 87
      %s245 = scalar_select %p244, %s243, 87
      %s246 = smul.addr %s245, 4
      %s247 = scalar_lea.vmem %s0, %s246
      %s248 = smul.u32 44, %s17
      %s249 = smul.u32 44, %s17
      %p250 = scmp.lt.s32.totalorder %s249, 87
      %s251 = scalar_select %p250, %s249, 87
      %s252 = smul.addr %s251, 4
      %s253 = scalar_lea.vmem %s6, %s252
      %s254 = smul.u32 44, %s17
      %v256 = vld [vmem:[%s2] sm:$0xff]
      %v257 = vld [vmem:[%s2 + $0x8] sm:$0xff]
      %v258 = vadd.f32 %v256, %v257
      %v259 = vrot.slane %v258, 4
      %v260 = vadd.f32 %v258, %v259
      %v261 = vrot.slane %v260, 2
      %v262 = vadd.f32 %v260, %v261
      %v263 = vrot.slane %v262, 1
      %v264 = vadd.f32 %v262, %v263
      %v265 = vld [vmem:[%s3] sm:$0xff]
      %v266 = vld [vmem:[%s3 + $0x8] sm:$0xff]
      %v267 = vadd.f32 %v265, %v266
      %v268 = vrot.slane %v267, 4
      %v269 = vadd.f32 %v267, %v268
      %v270 = vrot.slane %v269, 2
      %v271 = vadd.f32 %v269, %v270
      %v272 = vrot.slane %v271, 1
      %v273 = vadd.f32 %v271, %v272
      %v274 = vmul.f32 %v264, 0.00295858
      %v275 = vmul.f32 %v273, 0.00295858
      %v276 = vmul.f32 %v274, %v274
      %v277 = vsub.f32 %v275, %v276
      %v278 = vmax.f32 %v277, 0.0
      %v279 = vld [vmem:[%s4] sm:$0x1]
      %v280 = vadd.f32 %v278, 1e-05
      %v281 = vrsqrt.pop %v280
      %v282 = vmul.f32 %v279, %v281
      %v283 = vld [vmem:[%s5] sm:$0x1]
      %v284 = vmul.f32 %v274, %v282
      %v285 = vsub.f32 %v283, %v284
      %v286 = vld [vmem:[%s247] sm:$0xf]
      %v287 = vld [vmem:[%s247 + $0x4] sm:$0xf]
      %v288 = vld [vmem:[%s247 + $0x8] sm:$0xf]
      %v289 = vld [vmem:[%s247 + $0xc] sm:$0xf]
      %v290 = vld [vmem:[%s247 + $0x10] sm:$0xf]
      %v291 = vld [vmem:[%s247 + $0x14] sm:$0xf]
      %v292 = vld [vmem:[%s247 + $0x18] sm:$0xf]
      %v293 = vld [vmem:[%s247 + $0x1c] sm:$0xf]
      %v294 = vld [vmem:[%s247 + $0x20] sm:$0xf]
      %v295 = vld [vmem:[%s247 + $0x24] sm:$0xf]
      %v296 = vld [vmem:[%s247 + $0x28] sm:$0xf]
      %v297 = vld [vmem:[%s247 + $0x2c] sm:$0xf]
      %v298 = vld [vmem:[%s247 + $0x30] sm:$0xf]
      %v299 = vld [vmem:[%s247 + $0x34] sm:$0xf]
      %v300 = vld [vmem:[%s247 + $0x38] sm:$0xf]
      %v301 = vld [vmem:[%s247 + $0x3c] sm:$0xf]
      %v302 = vld [vmem:[%s247 + $0x40] sm:$0xf]
      %v303 = vld [vmem:[%s247 + $0x44] sm:$0xf]
      %v304 = vld [vmem:[%s247 + $0x48] sm:$0xf]
      %v305 = vld [vmem:[%s247 + $0x4c] sm:$0xf]
      %v306 = vld [vmem:[%s247 + $0x50] sm:$0xf]
      %v307 = vld [vmem:[%s247 + $0x54] sm:$0xf]
      %v308 = vld [vmem:[%s247 + $0x58] sm:$0xf]
      %v309 = vld [vmem:[%s247 + $0x5c] sm:$0xf]
      %v310 = vld [vmem:[%s247 + $0x60] sm:$0xf]
      %v311 = vld [vmem:[%s247 + $0x64] sm:$0xf]
      %v312 = vld [vmem:[%s247 + $0x68] sm:$0xf]
      %v313 = vld [vmem:[%s247 + $0x6c] sm:$0xf]
      %v314 = vld [vmem:[%s247 + $0x70] sm:$0xf]
      %v315 = vld [vmem:[%s247 + $0x74] sm:$0xf]
      %v316 = vld [vmem:[%s247 + $0x78] sm:$0xf]
      %v317 = vld [vmem:[%s247 + $0x7c] sm:$0xf]
      %v318 = vld [vmem:[%s247 + $0x80] sm:$0xf]
      %v319 = vld [vmem:[%s247 + $0x84] sm:$0xf]
      %v320 = vld [vmem:[%s247 + $0x88] sm:$0xf]
      %v321 = vld [vmem:[%s247 + $0x8c] sm:$0xf]
      %v322 = vld [vmem:[%s247 + $0x90] sm:$0xf]
      %v323 = vld [vmem:[%s247 + $0x94] sm:$0xf]
      %v324 = vld [vmem:[%s247 + $0x98] sm:$0xf]
      %v325 = vld [vmem:[%s247 + $0x9c] sm:$0xf]
      %v326 = vld [vmem:[%s247 + $0xa0] sm:$0xf]
      %v327 = vld [vmem:[%s247 + $0xa4] sm:$0xf]
      %v328 = vld [vmem:[%s247 + $0xa8] sm:$0xf]
      %v329 = vld [vmem:[%s247 + $0xac] sm:$0xf]
      %v330 = vld [vmem:[%s1] sm:$0xf]
      %v331 = vld [vmem:[%s1 + $0x4] sm:$0xf]
      %v332 = vld [vmem:[%s1 + $0x8] sm:$0xf]
      %v333 = vld [vmem:[%s1 + $0xc] sm:$0x1]
      %v378 = vunpack.c.l.b16 %v286
      %v379 = vunpack.c.l.b16 %v287
      %v380 = vunpack.c.l.b16 %v288
      %v381 = vunpack.c.l.b16 %v289
      %v382 = vunpack.c.l.b16 %v290
      %v383 = vunpack.c.l.b16 %v291
      %v384 = vunpack.c.l.b16 %v292
      %v385 = vunpack.c.l.b16 %v293
      %v386 = vunpack.c.l.b16 %v294
      %v387 = vunpack.c.l.b16 %v295
      %v388 = vunpack.c.l.b16 %v296
      %v389 = vunpack.c.l.b16 %v297
      %v390 = vunpack.c.l.b16 %v298
      %v391 = vunpack.c.l.b16 %v299
      %v392 = vunpack.c.l.b16 %v300
      %v393 = vunpack.c.l.b16 %v301
      %v394 = vunpack.c.l.b16 %v302
      %v395 = vunpack.c.l.b16 %v303
      %v396 = vunpack.c.l.b16 %v304
      %v397 = vunpack.c.l.b16 %v305
      %v398 = vunpack.c.l.b16 %v306
      %v399 = vunpack.c.l.b16 %v307
      %v400 = vunpack.c.l.b16 %v308
      %v401 = vunpack.c.l.b16 %v309
      %v402 = vunpack.c.l.b16 %v310
      %v403 = vunpack.c.l.b16 %v311
      %v404 = vunpack.c.l.b16 %v312
      %v405 = vunpack.c.l.b16 %v313
      %v406 = vunpack.c.l.b16 %v314
      %v407 = vunpack.c.l.b16 %v315
      %v408 = vunpack.c.l.b16 %v316
      %v409 = vunpack.c.l.b16 %v317
      %v410 = vunpack.c.l.b16 %v318
      %v411 = vunpack.c.l.b16 %v319
      %v412 = vunpack.c.l.b16 %v320
      %v413 = vunpack.c.l.b16 %v321
      %v414 = vunpack.c.l.b16 %v322
      %v415 = vunpack.c.l.b16 %v323
      %v416 = vunpack.c.l.b16 %v324
      %v417 = vunpack.c.l.b16 %v325
      %v418 = vunpack.c.l.b16 %v326
      %v419 = vunpack.c.l.b16 %v327
      %v420 = vunpack.c.l.b16 %v328
      %v421 = vunpack.c.l.b16 %v329
      %v422 = vpack.c.b16 %v379, %v378
      %v423 = vpack.c.b16 %v381, %v380
      %v424 = vpack.c.b16 %v383, %v382
      %v425 = vpack.c.b16 %v385, %v384
      %v426 = vpack.c.b16 %v387, %v386
      %v427 = vpack.c.b16 %v389, %v388
      %v428 = vpack.c.b16 %v391, %v390
      %v429 = vpack.c.b16 %v393, %v392
      %v430 = vpack.c.b16 %v395, %v394
      %v431 = vpack.c.b16 %v397, %v396
      %v432 = vpack.c.b16 %v399, %v398
      %v433 = vpack.c.b16 %v401, %v400
      %v434 = vpack.c.b16 %v403, %v402
      %v435 = vpack.c.b16 %v405, %v404
      %v436 = vpack.c.b16 %v407, %v406
      %v437 = vpack.c.b16 %v409, %v408
      %v438 = vpack.c.b16 %v411, %v410
      %v439 = vpack.c.b16 %v413, %v412
      %v440 = vpack.c.b16 %v415, %v414
      %v441 = vpack.c.b16 %v417, %v416
      %v442 = vpack.c.b16 %v419, %v418
      %v443 = vpack.c.b16 %v421, %v420
      %v448 = vunpack.c.l.b16 %v330
      %v449 = vunpack.c.l.b16 %v331
      %v450 = vunpack.c.l.b16 %v332
      %v451 = vunpack.c.l.b16 %v333
      %v452 = vpack.c.b16 %v449, %v448
      %v453 = vpack.c.b16 %v451, %v450
      %vm455 = vcmask 203776
      %v457 = vsel %vm455, %v422, 0
      %v460 = vsel %vm455, %v423, 0
      %v463 = vsel %vm455, %v424, 0
      %v466 = vsel %vm455, %v425, 0
      %v469 = vsel %vm455, %v426, 0
      %v472 = vsel %vm455, %v427, 0
      %v475 = vsel %vm455, %v428, 0
      %v478 = vsel %vm455, %v429, 0
      %v481 = vsel %vm455, %v430, 0
      %v484 = vsel %vm455, %v431, 0
      %v487 = vsel %vm455, %v432, 0
      %v490 = vsel %vm455, %v433, 0
      %v493 = vsel %vm455, %v434, 0
      %v496 = vsel %vm455, %v435, 0
      %v499 = vsel %vm455, %v436, 0
      %v502 = vsel %vm455, %v437, 0
      %v505 = vsel %vm455, %v438, 0
      %v508 = vsel %vm455, %v439, 0
      %v511 = vsel %vm455, %v440, 0
      %v514 = vsel %vm455, %v441, 0
      %v517 = vsel %vm455, %v442, 0
      %v520 = vsel %vm455, %v443, 0
      %vm522 = vcmask 1043456
      %vm523 = vcmask 1044480
      %v524 = vsel %vm522, 4294967295, 65535
      %v525 = vsel %vm523, %v524, 0
      %v527 = vand.u32 %v453, %v525
      %529 = vmatprep.subr.bf16.mxu0 0
      %530 = vmatpush1.bf16.msra.mxu0 0
      %531 = vmatprep.subr.bf16.mxu0 0
      %532 = vmatpush1.bf16.msra.mxu0 0
      %533 = vmatprep.subr.bf16.mxu0 0
      %534 = vmatpush1.bf16.msra.mxu0 0
      %535 = vmatprep.subr.bf16.mxu0 0
      %536 = vmatpush1.bf16.msra.mxu0 0
      %537 = vmatprep.subr.bf16.mxu0 0
      %538 = vmatpush1.bf16.msra.mxu0 0
      %539 = vmatprep.subr.bf16.mxu0 0
      %540 = vmatpush1.bf16.msra.mxu0 0
      %541 = vmatprep.subr.bf16.mxu0 0
      %542 = vmatpush1.bf16.msra.mxu0 %v527
      %543 = vmatprep.subr.bf16.mxu0 0
      %544 = vmatpush1.bf16.msra.mxu0 %v452
      %545 = vmatprep.subr.bf16.mxu0 0
      %546 = vmatpush2.bf16.msra.mxu0 0
      %547 = vmatprep.subr.bf16.mxu0 0
      %548 = vmatpush2.bf16.msra.mxu0 0
      %549 = vmatprep.subr.bf16.mxu0 0
      %550 = vmatpush2.bf16.msra.mxu0 0
      %551 = vmatprep.subr.bf16.mxu0 0
      %552 = vmatpush2.bf16.msra.mxu0 0
      %553 = vmatprep.subr.bf16.mxu0 0
      %554 = vmatpush2.bf16.msra.mxu0 0
      %555 = vmatprep.subr.bf16.mxu0 0
      %556 = vmatpush2.bf16.msra.mxu0 0
      %557 = vmatprep.subr.bf16.mxu0 0
      %558 = vmatpush2.bf16.msra.mxu0 0
      %559 = vmatprep.subr.bf16.mxu0 0
      %560 = vmatpush2.bf16.msra.mxu0 0
      %561 = vmatprep.mubr.bf16.mxu0 0
      %562 = vmatmul.mubr.bf16.gmra.mxu0 %v457
      %v563 = vpop.f32.mrf.mxu0
      %v564 = vadd.f32 0.0, %v563
      %v565 = vpop.f32.mrf.mxu0
      %v566 = vpop.f32.mrf.mxu0
      %v567 = vadd.f32 0.0, %v566
      %v568 = vpop.f32.mrf.mxu0
      %569 = vmatprep.mubr.bf16.mxu0 0
      %570 = vmatmul.mubr.bf16.gmra.mxu0 %v460
      %v571 = vpop.f32.mrf.mxu0
      %v572 = vadd.f32 0.0, %v571
      %v573 = vpop.f32.mrf.mxu0
      %v574 = vpop.f32.mrf.mxu0
      %v575 = vadd.f32 0.0, %v574
      %v576 = vpop.f32.mrf.mxu0
      %577 = vmatprep.mubr.bf16.mxu0 0
      %578 = vmatmul.mubr.bf16.gmra.mxu0 %v463
      %v579 = vpop.f32.mrf.mxu0
      %v580 = vadd.f32 0.0, %v579
      %v581 = vpop.f32.mrf.mxu0
      %v582 = vpop.f32.mrf.mxu0
      %v583 = vadd.f32 0.0, %v582
      %v584 = vpop.f32.mrf.mxu0
      %585 = vmatprep.mubr.bf16.mxu0 0
      %586 = vmatmul.mubr.bf16.gmra.mxu0 %v466
      %v587 = vpop.f32.mrf.mxu0
      %v588 = vadd.f32 0.0, %v587
      %v589 = vpop.f32.mrf.mxu0
      %v590 = vpop.f32.mrf.mxu0
      %v591 = vadd.f32 0.0, %v590
      %v592 = vpop.f32.mrf.mxu0
      %593 = vmatprep.mubr.bf16.mxu0 0
      %594 = vmatmul.mubr.bf16.gmra.mxu0 %v469
      %v595 = vpop.f32.mrf.mxu0
      %v596 = vadd.f32 0.0, %v595
      %v597 = vpop.f32.mrf.mxu0
      %v598 = vpop.f32.mrf.mxu0
      %v599 = vadd.f32 0.0, %v598
      %v600 = vpop.f32.mrf.mxu0
      %601 = vmatprep.mubr.bf16.mxu0 0
      %602 = vmatmul.mubr.bf16.gmra.mxu0 %v472
      %v603 = vpop.f32.mrf.mxu0
      %v604 = vadd.f32 0.0, %v603
      %v605 = vpop.f32.mrf.mxu0
      %v606 = vpop.f32.mrf.mxu0
      %v607 = vadd.f32 0.0, %v606
      %v608 = vpop.f32.mrf.mxu0
      %609 = vmatprep.mubr.bf16.mxu0 0
      %610 = vmatmul.mubr.bf16.gmra.mxu0 %v475
      %v611 = vpop.f32.mrf.mxu0
      %v612 = vadd.f32 0.0, %v611
      %v613 = vpop.f32.mrf.mxu0
      %v614 = vpop.f32.mrf.mxu0
      %v615 = vadd.f32 0.0, %v614
      %v616 = vpop.f32.mrf.mxu0
      %617 = vmatprep.mubr.bf16.mxu0 0
      %618 = vmatmul.mubr.bf16.gmra.mxu0 %v478
      %v619 = vpop.f32.mrf.mxu0
      %v620 = vadd.f32 0.0, %v619
      %v621 = vpop.f32.mrf.mxu0
      %v622 = vpop.f32.mrf.mxu0
      %v623 = vadd.f32 0.0, %v622
      %v624 = vpop.f32.mrf.mxu0
      %625 = vmatprep.mubr.bf16.mxu0 0
      %626 = vmatmul.mubr.bf16.gmra.mxu0 %v481
      %v627 = vpop.f32.mrf.mxu0
      %v628 = vadd.f32 0.0, %v627
      %v629 = vpop.f32.mrf.mxu0
      %v630 = vpop.f32.mrf.mxu0
      %v631 = vadd.f32 0.0, %v630
      %v632 = vpop.f32.mrf.mxu0
      %633 = vmatprep.mubr.bf16.mxu0 0
      %634 = vmatmul.mubr.bf16.gmra.mxu0 %v484
      %v635 = vpop.f32.mrf.mxu0
      %v636 = vadd.f32 0.0, %v635
      %v637 = vpop.f32.mrf.mxu0
      %v638 = vpop.f32.mrf.mxu0
      %v639 = vadd.f32 0.0, %v638
      %v640 = vpop.f32.mrf.mxu0
      %641 = vmatprep.mubr.bf16.mxu0 0
      %642 = vmatmul.mubr.bf16.gmra.mxu0 %v487
      %v643 = vpop.f32.mrf.mxu0
      %v644 = vadd.f32 0.0, %v643
      %v645 = vpop.f32.mrf.mxu0
      %v646 = vpop.f32.mrf.mxu0
      %v647 = vadd.f32 0.0, %v646
      %v648 = vpop.f32.mrf.mxu0
      %649 = vmatprep.mubr.bf16.mxu0 0
      %650 = vmatmul.mubr.bf16.gmra.mxu0 %v490
      %v651 = vpop.f32.mrf.mxu0
      %v652 = vadd.f32 0.0, %v651
      %v653 = vpop.f32.mrf.mxu0
      %v654 = vpop.f32.mrf.mxu0
      %v655 = vadd.f32 0.0, %v654
      %v656 = vpop.f32.mrf.mxu0
      %657 = vmatprep.mubr.bf16.mxu0 0
      %658 = vmatmul.mubr.bf16.gmra.mxu0 %v493
      %v659 = vpop.f32.mrf.mxu0
      %v660 = vadd.f32 0.0, %v659
      %v661 = vpop.f32.mrf.mxu0
      %v662 = vpop.f32.mrf.mxu0
      %v663 = vadd.f32 0.0, %v662
      %v664 = vpop.f32.mrf.mxu0
      %665 = vmatprep.mubr.bf16.mxu0 0
      %666 = vmatmul.mubr.bf16.gmra.mxu0 %v496
      %v667 = vpop.f32.mrf.mxu0
      %v668 = vadd.f32 0.0, %v667
      %v669 = vpop.f32.mrf.mxu0
      %v670 = vpop.f32.mrf.mxu0
      %v671 = vadd.f32 0.0, %v670
      %v672 = vpop.f32.mrf.mxu0
      %673 = vmatprep.mubr.bf16.mxu0 0
      %674 = vmatmul.mubr.bf16.gmra.mxu0 %v499
      %v675 = vpop.f32.mrf.mxu0
      %v676 = vadd.f32 0.0, %v675
      %v677 = vpop.f32.mrf.mxu0
      %v678 = vpop.f32.mrf.mxu0
      %v679 = vadd.f32 0.0, %v678
      %v680 = vpop.f32.mrf.mxu0
      %681 = vmatprep.mubr.bf16.mxu0 0
      %682 = vmatmul.mubr.bf16.gmra.mxu0 %v502
      %v683 = vpop.f32.mrf.mxu0
      %v684 = vadd.f32 0.0, %v683
      %v685 = vpop.f32.mrf.mxu0
      %v686 = vpop.f32.mrf.mxu0
      %v687 = vadd.f32 0.0, %v686
      %v688 = vpop.f32.mrf.mxu0
      %689 = vmatprep.mubr.bf16.mxu0 0
      %690 = vmatmul.mubr.bf16.gmra.mxu0 %v505
      %v691 = vpop.f32.mrf.mxu0
      %v692 = vadd.f32 0.0, %v691
      %v693 = vpop.f32.mrf.mxu0
      %v694 = vpop.f32.mrf.mxu0
      %v695 = vadd.f32 0.0, %v694
      %v696 = vpop.f32.mrf.mxu0
      %697 = vmatprep.mubr.bf16.mxu0 0
      %698 = vmatmul.mubr.bf16.gmra.mxu0 %v508
      %v699 = vpop.f32.mrf.mxu0
      %v700 = vadd.f32 0.0, %v699
      %v701 = vpop.f32.mrf.mxu0
      %v702 = vpop.f32.mrf.mxu0
      %v703 = vadd.f32 0.0, %v702
      %v704 = vpop.f32.mrf.mxu0
      %705 = vmatprep.mubr.bf16.mxu0 0
      %706 = vmatmul.mubr.bf16.gmra.mxu0 %v511
      %v707 = vpop.f32.mrf.mxu0
      %v708 = vadd.f32 0.0, %v707
      %v709 = vpop.f32.mrf.mxu0
      %v710 = vpop.f32.mrf.mxu0
      %v711 = vadd.f32 0.0, %v710
      %v712 = vpop.f32.mrf.mxu0
      %713 = vmatprep.mubr.bf16.mxu0 0
      %714 = vmatmul.mubr.bf16.gmra.mxu0 %v514
      %v715 = vpop.f32.mrf.mxu0
      %v716 = vadd.f32 0.0, %v715
      %v717 = vpop.f32.mrf.mxu0
      %v718 = vpop.f32.mrf.mxu0
      %v719 = vadd.f32 0.0, %v718
      %v720 = vpop.f32.mrf.mxu0
      %721 = vmatprep.mubr.bf16.mxu0 0
      %722 = vmatmul.mubr.bf16.gmra.mxu0 %v517
      %v723 = vpop.f32.mrf.mxu0
      %v724 = vadd.f32 0.0, %v723
      %v725 = vpop.f32.mrf.mxu0
      %v726 = vpop.f32.mrf.mxu0
      %v727 = vadd.f32 0.0, %v726
      %v728 = vpop.f32.mrf.mxu0
      %729 = vmatprep.mubr.bf16.mxu0 0
      %730 = vmatmul.mubr.bf16.gmra.mxu0 %v520
      %v731 = vpop.f32.mrf.mxu0
      %v732 = vadd.f32 0.0, %v731
      %v733 = vpop.f32.mrf.mxu0
      %v734 = vpop.f32.mrf.mxu0
      %v735 = vadd.f32 0.0, %v734
      %v736 = vpop.f32.mrf.mxu0
      %737 = vdwg.mxu0
      %v739 = vlaneseq
      %v740 = vshrl.u32 %v739, 7
      %v741 = vsub.s32 0, %v740
      %v742 = vrot.slane %v282, %v741
      %v744 = vmul.f32 %v564, %v742
      %v745 = vmul.f32 %v567, %v742
      %v746 = vmul.f32 %v572, %v742
      %v747 = vmul.f32 %v575, %v742
      %v748 = vmul.f32 %v580, %v742
      %v749 = vmul.f32 %v583, %v742
      %v750 = vmul.f32 %v588, %v742
      %v751 = vmul.f32 %v591, %v742
      %v752 = vmul.f32 %v596, %v742
      %v753 = vmul.f32 %v599, %v742
      %v754 = vmul.f32 %v604, %v742
      %v755 = vmul.f32 %v607, %v742
      %v756 = vmul.f32 %v612, %v742
      %v757 = vmul.f32 %v615, %v742
      %v758 = vmul.f32 %v620, %v742
      %v759 = vmul.f32 %v623, %v742
      %v760 = vmul.f32 %v628, %v742
      %v761 = vmul.f32 %v631, %v742
      %v762 = vmul.f32 %v636, %v742
      %v763 = vmul.f32 %v639, %v742
      %v764 = vmul.f32 %v644, %v742
      %v765 = vmul.f32 %v647, %v742
      %v766 = vmul.f32 %v652, %v742
      %v767 = vmul.f32 %v655, %v742
      %v768 = vmul.f32 %v660, %v742
      %v769 = vmul.f32 %v663, %v742
      %v770 = vmul.f32 %v668, %v742
      %v771 = vmul.f32 %v671, %v742
      %v772 = vmul.f32 %v676, %v742
      %v773 = vmul.f32 %v679, %v742
      %v774 = vmul.f32 %v684, %v742
      %v775 = vmul.f32 %v687, %v742
      %v776 = vmul.f32 %v692, %v742
      %v777 = vmul.f32 %v695, %v742
      %v778 = vmul.f32 %v700, %v742
      %v779 = vmul.f32 %v703, %v742
      %v780 = vmul.f32 %v708, %v742
      %v781 = vmul.f32 %v711, %v742
      %v782 = vmul.f32 %v716, %v742
      %v783 = vmul.f32 %v719, %v742
      %v784 = vmul.f32 %v724, %v742
      %v785 = vmul.f32 %v727, %v742
      %v786 = vmul.f32 %v732, %v742
      %v787 = vmul.f32 %v735, %v742
      %v789 = vlaneseq
      %v790 = vshrl.u32 %v789, 7
      %v791 = vsub.s32 0, %v790
      %v792 = vrot.slane %v285, %v791
      %v794 = vadd.f32 %v744, %v792
      %v795 = vadd.f32 %v745, %v792
      %v796 = vadd.f32 %v746, %v792
      %v797 = vadd.f32 %v747, %v792
      %v798 = vadd.f32 %v748, %v792
      %v799 = vadd.f32 %v749, %v792
      %v800 = vadd.f32 %v750, %v792
      %v801 = vadd.f32 %v751, %v792
      %v802 = vadd.f32 %v752, %v792
      %v803 = vadd.f32 %v753, %v792
      %v804 = vadd.f32 %v754, %v792
      %v805 = vadd.f32 %v755, %v792
      %v806 = vadd.f32 %v756, %v792
      %v807 = vadd.f32 %v757, %v792
      %v808 = vadd.f32 %v758, %v792
      %v809 = vadd.f32 %v759, %v792
      %v810 = vadd.f32 %v760, %v792
      %v811 = vadd.f32 %v761, %v792
      %v812 = vadd.f32 %v762, %v792
      %v813 = vadd.f32 %v763, %v792
      %v814 = vadd.f32 %v764, %v792
      %v815 = vadd.f32 %v765, %v792
      %v816 = vadd.f32 %v766, %v792
      %v817 = vadd.f32 %v767, %v792
      %v818 = vadd.f32 %v768, %v792
      %v819 = vadd.f32 %v769, %v792
      %v820 = vadd.f32 %v770, %v792
      %v821 = vadd.f32 %v771, %v792
      %v822 = vadd.f32 %v772, %v792
      %v823 = vadd.f32 %v773, %v792
      %v824 = vadd.f32 %v774, %v792
      %v825 = vadd.f32 %v775, %v792
      %v826 = vadd.f32 %v776, %v792
      %v827 = vadd.f32 %v777, %v792
      %v828 = vadd.f32 %v778, %v792
      %v829 = vadd.f32 %v779, %v792
      %v830 = vadd.f32 %v780, %v792
      %v831 = vadd.f32 %v781, %v792
      %v832 = vadd.f32 %v782, %v792
      %v833 = vadd.f32 %v783, %v792
      %v834 = vadd.f32 %v784, %v792
      %v835 = vadd.f32 %v785, %v792
      %v836 = vadd.f32 %v786, %v792
      %v837 = vadd.f32 %v787, %v792
      %v838 = vmax.f32 %v794, 0.0
      %v839 = vmax.f32 %v795, 0.0
      %v840 = vmax.f32 %v796, 0.0
      %v841 = vmax.f32 %v797, 0.0
      %v842 = vmax.f32 %v798, 0.0
      %v843 = vmax.f32 %v799, 0.0
      %v844 = vmax.f32 %v800, 0.0
      %v845 = vmax.f32 %v801, 0.0
      %v846 = vmax.f32 %v802, 0.0
      %v847 = vmax.f32 %v803, 0.0
      %v848 = vmax.f32 %v804, 0.0
      %v849 = vmax.f32 %v805, 0.0
      %v850 = vmax.f32 %v806, 0.0
      %v851 = vmax.f32 %v807, 0.0
      %v852 = vmax.f32 %v808, 0.0
      %v853 = vmax.f32 %v809, 0.0
      %v854 = vmax.f32 %v810, 0.0
      %v855 = vmax.f32 %v811, 0.0
      %v856 = vmax.f32 %v812, 0.0
      %v857 = vmax.f32 %v813, 0.0
      %v858 = vmax.f32 %v814, 0.0
      %v859 = vmax.f32 %v815, 0.0
      %v860 = vmax.f32 %v816, 0.0
      %v861 = vmax.f32 %v817, 0.0
      %v862 = vmax.f32 %v818, 0.0
      %v863 = vmax.f32 %v819, 0.0
      %v864 = vmax.f32 %v820, 0.0
      %v865 = vmax.f32 %v821, 0.0
      %v866 = vmax.f32 %v822, 0.0
      %v867 = vmax.f32 %v823, 0.0
      %v868 = vmax.f32 %v824, 0.0
      %v869 = vmax.f32 %v825, 0.0
      %v870 = vmax.f32 %v826, 0.0
      %v871 = vmax.f32 %v827, 0.0
      %v872 = vmax.f32 %v828, 0.0
      %v873 = vmax.f32 %v829, 0.0
      %v874 = vmax.f32 %v830, 0.0
      %v875 = vmax.f32 %v831, 0.0
      %v876 = vmax.f32 %v832, 0.0
      %v877 = vmax.f32 %v833, 0.0
      %v878 = vmax.f32 %v834, 0.0
      %v879 = vmax.f32 %v835, 0.0
      %v880 = vmax.f32 %v836, 0.0
      %v881 = vmax.f32 %v837, 0.0
      %v882 = vpack.c.bf16 %v839, %v838
      %v883 = vpack.c.bf16 %v841, %v840
      %v884 = vpack.c.bf16 %v843, %v842
      %v885 = vpack.c.bf16 %v845, %v844
      %v886 = vpack.c.bf16 %v847, %v846
      %v887 = vpack.c.bf16 %v849, %v848
      %v888 = vpack.c.bf16 %v851, %v850
      %v889 = vpack.c.bf16 %v853, %v852
      %v890 = vpack.c.bf16 %v855, %v854
      %v891 = vpack.c.bf16 %v857, %v856
      %v892 = vpack.c.bf16 %v859, %v858
      %v893 = vpack.c.bf16 %v861, %v860
      %v894 = vpack.c.bf16 %v863, %v862
      %v895 = vpack.c.bf16 %v865, %v864
      %v896 = vpack.c.bf16 %v867, %v866
      %v897 = vpack.c.bf16 %v869, %v868
      %v898 = vpack.c.bf16 %v871, %v870
      %v899 = vpack.c.bf16 %v873, %v872
      %v900 = vpack.c.bf16 %v875, %v874
      %v901 = vpack.c.bf16 %v877, %v876
      %v902 = vpack.c.bf16 %v879, %v878
      %v903 = vpack.c.bf16 %v881, %v880
      %v926 = vunpack.c.l.b16 %v882
      %v927 = vunpack.c.h.b16 %v882
      %v928 = vunpack.c.l.b16 %v883
      %v929 = vunpack.c.h.b16 %v883
      %v930 = vunpack.c.l.b16 %v884
      %v931 = vunpack.c.h.b16 %v884
      %v932 = vunpack.c.l.b16 %v885
      %v933 = vunpack.c.h.b16 %v885
      %v934 = vunpack.c.l.b16 %v886
      %v935 = vunpack.c.h.b16 %v886
      %v936 = vunpack.c.l.b16 %v887
      %v937 = vunpack.c.h.b16 %v887
      %v938 = vunpack.c.l.b16 %v888
      %v939 = vunpack.c.h.b16 %v888
      %v940 = vunpack.c.l.b16 %v889
      %v941 = vunpack.c.h.b16 %v889
      %v942 = vunpack.c.l.b16 %v890
      %v943 = vunpack.c.h.b16 %v890
      %v944 = vunpack.c.l.b16 %v891
      %v945 = vunpack.c.h.b16 %v891
      %v946 = vunpack.c.l.b16 %v892
      %v947 = vunpack.c.h.b16 %v892
      %v948 = vunpack.c.l.b16 %v893
      %v949 = vunpack.c.h.b16 %v893
      %v950 = vunpack.c.l.b16 %v894
      %v951 = vunpack.c.h.b16 %v894
      %v952 = vunpack.c.l.b16 %v895
      %v953 = vunpack.c.h.b16 %v895
      %v954 = vunpack.c.l.b16 %v896
      %v955 = vunpack.c.h.b16 %v896
      %v956 = vunpack.c.l.b16 %v897
      %v957 = vunpack.c.h.b16 %v897
      %v958 = vunpack.c.l.b16 %v898
      %v959 = vunpack.c.h.b16 %v898
      %v960 = vunpack.c.l.b16 %v899
      %v961 = vunpack.c.h.b16 %v899
      %v962 = vunpack.c.l.b16 %v900
      %v963 = vunpack.c.h.b16 %v900
      %v964 = vunpack.c.l.b16 %v901
      %v965 = vunpack.c.h.b16 %v901
      %v966 = vunpack.c.l.b16 %v902
      %v967 = vunpack.c.h.b16 %v902
      %v968 = vunpack.c.l.b16 %v903
      %v969 = vunpack.c.h.b16 %v903
      %v970 = vpack.c.b16 %v926, %v926
      %v971 = vpack.c.b16 %v927, %v927
      %v972 = vpack.c.b16 %v928, %v928
      %v973 = vpack.c.b16 %v929, %v929
      %v974 = vpack.c.b16 %v930, %v930
      %v975 = vpack.c.b16 %v931, %v931
      %v976 = vpack.c.b16 %v932, %v932
      %v977 = vpack.c.b16 %v933, %v933
      %v978 = vpack.c.b16 %v934, %v934
      %v979 = vpack.c.b16 %v935, %v935
      %v980 = vpack.c.b16 %v936, %v936
      %v981 = vpack.c.b16 %v937, %v937
      %v982 = vpack.c.b16 %v938, %v938
      %v983 = vpack.c.b16 %v939, %v939
      %v984 = vpack.c.b16 %v940, %v940
      %v985 = vpack.c.b16 %v941, %v941
      %v986 = vpack.c.b16 %v942, %v942
      %v987 = vpack.c.b16 %v943, %v943
      %v988 = vpack.c.b16 %v944, %v944
      %v989 = vpack.c.b16 %v945, %v945
      %v990 = vpack.c.b16 %v946, %v946
      %v991 = vpack.c.b16 %v947, %v947
      %v992 = vpack.c.b16 %v948, %v948
      %v993 = vpack.c.b16 %v949, %v949
      %v994 = vpack.c.b16 %v950, %v950
      %v995 = vpack.c.b16 %v951, %v951
      %v996 = vpack.c.b16 %v952, %v952
      %v997 = vpack.c.b16 %v953, %v953
      %v998 = vpack.c.b16 %v954, %v954
      %v999 = vpack.c.b16 %v955, %v955
      %v1000 = vpack.c.b16 %v956, %v956
      %v1001 = vpack.c.b16 %v957, %v957
      %v1002 = vpack.c.b16 %v958, %v958
      %v1003 = vpack.c.b16 %v959, %v959
      %v1004 = vpack.c.b16 %v960, %v960
      %v1005 = vpack.c.b16 %v961, %v961
      %v1006 = vpack.c.b16 %v962, %v962
      %v1007 = vpack.c.b16 %v963, %v963
      %v1008 = vpack.c.b16 %v964, %v964
      %v1009 = vpack.c.b16 %v965, %v965
      %v1010 = vpack.c.b16 %v966, %v966
      %v1011 = vpack.c.b16 %v967, %v967
      %v1012 = vpack.c.b16 %v968, %v968
      %v1013 = vpack.c.b16 %v969, %v969
      %1058 = vst [vmem:[%s253] sm:$0xf] %v970
      %1059 = vst [vmem:[%s253 + $0x4] sm:$0xf] %v971
      %1060 = vst [vmem:[%s253 + $0x8] sm:$0xf] %v972
      %1061 = vst [vmem:[%s253 + $0xc] sm:$0xf] %v973
      %1062 = vst [vmem:[%s253 + $0x10] sm:$0xf] %v974
      %1063 = vst [vmem:[%s253 + $0x14] sm:$0xf] %v975
      %1064 = vst [vmem:[%s253 + $0x18] sm:$0xf] %v976
      %1065 = vst [vmem:[%s253 + $0x1c] sm:$0xf] %v977
      %1066 = vst [vmem:[%s253 + $0x20] sm:$0xf] %v978
      %1067 = vst [vmem:[%s253 + $0x24] sm:$0xf] %v979
      %1068 = vst [vmem:[%s253 + $0x28] sm:$0xf] %v980
      %1069 = vst [vmem:[%s253 + $0x2c] sm:$0xf] %v981
      %1070 = vst [vmem:[%s253 + $0x30] sm:$0xf] %v982
      %1071 = vst [vmem:[%s253 + $0x34] sm:$0xf] %v983
      %1072 = vst [vmem:[%s253 + $0x38] sm:$0xf] %v984
      %1073 = vst [vmem:[%s253 + $0x3c] sm:$0xf] %v985
      %1074 = vst [vmem:[%s253 + $0x40] sm:$0xf] %v986
      %1075 = vst [vmem:[%s253 + $0x44] sm:$0xf] %v987
      %1076 = vst [vmem:[%s253 + $0x48] sm:$0xf] %v988
      %1077 = vst [vmem:[%s253 + $0x4c] sm:$0xf] %v989
      %1078 = vst [vmem:[%s253 + $0x50] sm:$0xf] %v990
      %1079 = vst [vmem:[%s253 + $0x54] sm:$0xf] %v991
      %1080 = vst [vmem:[%s253 + $0x58] sm:$0xf] %v992
      %1081 = vst [vmem:[%s253 + $0x5c] sm:$0xf] %v993
      %1082 = vst [vmem:[%s253 + $0x60] sm:$0xf] %v994
      %1083 = vst [vmem:[%s253 + $0x64] sm:$0xf] %v995
      %1084 = vst [vmem:[%s253 + $0x68] sm:$0xf] %v996
      %1085 = vst [vmem:[%s253 + $0x6c] sm:$0xf] %v997
      %1086 = vst [vmem:[%s253 + $0x70] sm:$0xf] %v998
      %1087 = vst [vmem:[%s253 + $0x74] sm:$0xf] %v999
      %1088 = vst [vmem:[%s253 + $0x78] sm:$0xf] %v1000
      %1089 = vst [vmem:[%s253 + $0x7c] sm:$0xf] %v1001
      %1090 = vst [vmem:[%s253 + $0x80] sm:$0xf] %v1002
      %1091 = vst [vmem:[%s253 + $0x84] sm:$0xf] %v1003
      %1092 = vst [vmem:[%s253 + $0x88] sm:$0xf] %v1004
      %1093 = vst [vmem:[%s253 + $0x8c] sm:$0xf] %v1005
      %1094 = vst [vmem:[%s253 + $0x90] sm:$0xf] %v1006
      %1095 = vst [vmem:[%s253 + $0x94] sm:$0xf] %v1007
      %1096 = vst [vmem:[%s253 + $0x98] sm:$0xf] %v1008
      %1097 = vst [vmem:[%s253 + $0x9c] sm:$0xf] %v1009
      %1098 = vst [vmem:[%s253 + $0xa0] sm:$0xf] %v1010
      %1099 = vst [vmem:[%s253 + $0xa4] sm:$0xf] %v1011
      %1100 = vst [vmem:[%s253 + $0xa8] sm:$0xf] %v1012
      %1101 = vst [vmem:[%s253 + $0xac] sm:$0xf] %v1013
      %s1102 = smul.u32 44, %s17
      %p1103 = scmp.lt.s32.totalorder %s1102, 87
      %s1104 = scalar_select %p1103, %s1102, 87
      %s1105 = smul.addr %s1104, 4
      %s1106 = scalar_lea.vmem %s6, %s1105
      // Predicated region
      $region45: #{cnn_forward.9} parent=43 // pred_check
        %p1107 = pneg %p166
      $region46: #{cnn_forward.9} parent=43 // pred_check_branch
        %1109 = sbr.rel (%p1107) target = $region48
      $region47: #{cnn_forward.9} parent=43 // pred_region
        %s1110 = smul.u32 44, %s17
      $region48: #{cnn_forward.9} parent=43 // pred_fallthru
        _
    $region44: #{cnn_forward.9} parent=5 // pred_fallthru
      _
    %p1111 = scmp.le.s32.totalorder 2, %s12
    // Predicated region
    $region49: #{cnn_forward.9} parent=5 // pred_check
      %p1112 = pneg %p1111
    $region50: #{cnn_forward.9} parent=5 // pred_check_branch
      %1114 = sbr.rel (%p1112) target = $region52
    $region51: #{cnn_forward.9} parent=5 // pred_region
      %s1115 = ssub.s32 %s12, 2
      // Predicated region
      $region53: #{cnn_forward.9} parent=51 // pred_check
        %p1116 = pneg %p172
      $region54: #{cnn_forward.9} parent=51 // pred_check_branch
        %1118 = sbr.rel (%p1116) target = $region56
      $region55: #{cnn_forward.9} parent=51 // pred_region
        %s1119 = smul.u32 44, %s18
        %p1120 = scmp.lt.s32.totalorder %s1119, 87
        %s1121 = scalar_select %p1120, %s1119, 87
        %s1122 = smul.addr %s1121, 4
        %s1123 = scalar_lea.vmem %s6, %s1122
      $region56: #{cnn_forward.9} parent=51 // pred_fallthru
        _
    $region52: #{cnn_forward.9} parent=5 // pred_fallthru
      _
  $region6: #{cnn_forward.9} parent=0 // loop_footer
    %s16 = sadd.s32 1, %s12
  $region7: #{cnn_forward.9} parent=0 // loop_footer_branch
    %11 = sbr.rel target = $region3
  $region8: #{cnn_forward.9} parent=0 // loop_exit
    _

// kernel: cnn_forward.11
$region0: #{cnn_forward.11}
  #allocation0 [shape = 'u32[]', space=smem, size = 0x4, offset = 0x4, fixed_abs, tag = 'smem constant byte address 0x4 - core index']
  #allocation1 [shape = 'u32[144,128]{1,0:T(1,128)}', space=vmem, size = 0x12000, scoped, tag = 'internal scratch']
  %s0 = inlined_call_operand.vmem [shape: bf16[160,128], index: 0, kind: input, shape index: {}]
  %s1 = inlined_call_operand.vmem [shape: f32[16,128], index: 1, kind: input, shape index: {}]
  %s2 = inlined_call_operand.vmem [shape: f32[16,128], index: 2, kind: input, shape index: {}]
  %s3 = inlined_call_operand.vmem [shape: f32[1,128], index: 3, kind: input, shape index: {}]
  %s4 = inlined_call_operand.vmem [shape: f32[1,128], index: 4, kind: input, shape index: {}]
  %s5 = inlined_call_operand.vmem [shape: bf16[160,128], index: 5, kind: output, shape index: {}]
  %s6 = sld [smem:[#allocation0]]
  $region53: #{cnn_forward.11} parent=0
    _
  %s8 = ssub.s32 1, %s6
  %s9 = scalar_select 0, %s8, %s6
  loop: start=0, step=1, limit=4
  $region2: #{cnn_forward.11} parent=0 // loop_pre_header
    _
  $region3: #{cnn_forward.11} parent=0 // loop_header
    %s11 = sphi 0, %s15
    %p12 = scmp.ge.s32.totalorder %s11, 4
    %s21 = sphi 0, %s23
    %s24 = sphi 0, %s21
    %s25 = sphi 0, %s24
    %s41 = sphi 0, %s25
    %s45 = sphi 0, %s45
    %s47 = sphi 0, %s45
    %s48 = sphi 0, %s47
    %s62 = sphi 0, %s48
    %s66 = sphi 0, %s66
    %s68 = sphi 0, %s66
    %s69 = sphi 0, %s68
    %s83 = sphi 0, %s69
    %s87 = sphi 0, %s87
    %s89 = sphi 0, %s87
    %s90 = sphi 0, %s89
    %s104 = sphi 0, %s90
    %s108 = sphi 0, %s108
    %s110 = sphi 0, %s108
    %s111 = sphi 0, %s110
    %s125 = sphi 0, %s111
    %s131 = sphi 0, %s133
    %s134 = sphi 0, %s131
    %s135 = sphi 0, %s134
    %s151 = sphi 0, %s135
  $region4: #{cnn_forward.11} parent=0 // loop_header_branch
    %14 = sbr.rel (%p12) target = $region8
  $region5: #{cnn_forward.11} parent=0 // loop_body
    %s16 = ssub.s32 %s11, 1
    %s17 = ssub.s32 %s11, 2
    %s18 = sadd.s32 %s11, 1
    %s19 = ssub.s32 %s11, %s18
    %p20 = scmp.eq.s32.totalorder %s19, 0
    %s22 = sadd.s32 %s21, 1
    %s23 = scalar_select %p20, %s21, %s22
    %p26 = pneg %p20
    %p27 = scmp.eq.s32.totalorder %s11, 1
    %p28 = por %p26, %p27
    %p29 = scmp.ne.s32.totalorder %s21, %s24
    %p30 = scmp.eq.s32.totalorder %s11, 0
    %p31 = por %p29, %p30
    %p32 = scmp.ne.s32.totalorder %s21, %s24
    %p33 = scmp.eq.s32.totalorder %s16, 1
    %p34 = por %p32, %p33
    %p35 = scmp.ne.s32.totalorder %s24, %s25
    %p36 = scmp.eq.s32.totalorder %s16, 0
    %p37 = por %p35, %p36
    %p38 = scmp.ne.s32.totalorder %s24, %s25
    %p39 = scmp.eq.s32.totalorder %s17, 1
    %p40 = por %p38, %p39
    %p42 = scmp.ne.s32.totalorder %s25, %s41
    %p43 = scmp.eq.s32.totalorder %s17, 0
    %p44 = por %p42, %p43
    %s46 = sadd.s32 %s45, 1
    %p49 = scmp.eq.s32.totalorder %s11, 1
    %p50 = scmp.ne.s32.totalorder %s45, %s47
    %p51 = scmp.eq.s32.totalorder %s11, 0
    %p52 = por %p50, %p51
    %p53 = scmp.ne.s32.totalorder %s45, %s47
    %p54 = scmp.eq.s32.totalorder %s16, 1
    %p55 = por %p53, %p54
    %p56 = scmp.ne.s32.totalorder %s47, %s48
    %p57 = scmp.eq.s32.totalorder %s16, 0
    %p58 = por %p56, %p57
    %p59 = scmp.ne.s32.totalorder %s47, %s48
    %p60 = scmp.eq.s32.totalorder %s17, 1
    %p61 = por %p59, %p60
    %p63 = scmp.ne.s32.totalorder %s48, %s62
    %p64 = scmp.eq.s32.totalorder %s17, 0
    %p65 = por %p63, %p64
    %s67 = sadd.s32 %s66, 1
    %p70 = scmp.eq.s32.totalorder %s11, 1
    %p71 = scmp.ne.s32.totalorder %s66, %s68
    %p72 = scmp.eq.s32.totalorder %s11, 0
    %p73 = por %p71, %p72
    %p74 = scmp.ne.s32.totalorder %s66, %s68
    %p75 = scmp.eq.s32.totalorder %s16, 1
    %p76 = por %p74, %p75
    %p77 = scmp.ne.s32.totalorder %s68, %s69
    %p78 = scmp.eq.s32.totalorder %s16, 0
    %p79 = por %p77, %p78
    %p80 = scmp.ne.s32.totalorder %s68, %s69
    %p81 = scmp.eq.s32.totalorder %s17, 1
    %p82 = por %p80, %p81
    %p84 = scmp.ne.s32.totalorder %s69, %s83
    %p85 = scmp.eq.s32.totalorder %s17, 0
    %p86 = por %p84, %p85
    %s88 = sadd.s32 %s87, 1
    %p91 = scmp.eq.s32.totalorder %s11, 1
    %p92 = scmp.ne.s32.totalorder %s87, %s89
    %p93 = scmp.eq.s32.totalorder %s11, 0
    %p94 = por %p92, %p93
    %p95 = scmp.ne.s32.totalorder %s87, %s89
    %p96 = scmp.eq.s32.totalorder %s16, 1
    %p97 = por %p95, %p96
    %p98 = scmp.ne.s32.totalorder %s89, %s90
    %p99 = scmp.eq.s32.totalorder %s16, 0
    %p100 = por %p98, %p99
    %p101 = scmp.ne.s32.totalorder %s89, %s90
    %p102 = scmp.eq.s32.totalorder %s17, 1
    %p103 = por %p101, %p102
    %p105 = scmp.ne.s32.totalorder %s90, %s104
    %p106 = scmp.eq.s32.totalorder %s17, 0
    %p107 = por %p105, %p106
    %s109 = sadd.s32 %s108, 1
    %p112 = scmp.eq.s32.totalorder %s11, 1
    %p113 = scmp.ne.s32.totalorder %s108, %s110
    %p114 = scmp.eq.s32.totalorder %s11, 0
    %p115 = por %p113, %p114
    %p116 = scmp.ne.s32.totalorder %s108, %s110
    %p117 = scmp.eq.s32.totalorder %s16, 1
    %p118 = por %p116, %p117
    %p119 = scmp.ne.s32.totalorder %s110, %s111
    %p120 = scmp.eq.s32.totalorder %s16, 0
    %p121 = por %p119, %p120
    %p122 = scmp.ne.s32.totalorder %s110, %s111
    %p123 = scmp.eq.s32.totalorder %s17, 1
    %p124 = por %p122, %p123
    %p126 = scmp.ne.s32.totalorder %s111, %s125
    %p127 = scmp.eq.s32.totalorder %s17, 0
    %p128 = por %p126, %p127
    %s129 = ssub.s32 %s11, %s18
    %p130 = scmp.eq.s32.totalorder %s129, 0
    %s132 = sadd.s32 %s131, 1
    %s133 = scalar_select %p130, %s131, %s132
    %p136 = pneg %p130
    %p137 = scmp.eq.s32.totalorder %s11, 1
    %p138 = por %p136, %p137
    %p139 = scmp.ne.s32.totalorder %s131, %s134
    %p140 = scmp.eq.s32.totalorder %s11, 0
    %p141 = por %p139, %p140
    %p142 = scmp.ne.s32.totalorder %s131, %s134
    %p143 = scmp.eq.s32.totalorder %s16, 1
    %p144 = por %p142, %p143
    %p145 = scmp.ne.s32.totalorder %s134, %s135
    %p146 = scmp.eq.s32.totalorder %s16, 0
    %p147 = por %p145, %p146
    %p148 = scmp.ne.s32.totalorder %s134, %s135
    %p149 = scmp.eq.s32.totalorder %s17, 1
    %p150 = por %p148, %p149
    %p152 = scmp.ne.s32.totalorder %s135, %s151
    %p153 = scmp.eq.s32.totalorder %s17, 0
    %p154 = por %p152, %p153
    %p155 = scmp.le.s32.totalorder 1, %s11
    %p156 = scmp.lt.s32.totalorder %s11, 3
    %p157 = pnand %p155, %p156
    %p158 = pneg %p157
    // Predicated region
    $region9: #{cnn_forward.11} parent=5 // pred_check
      _
    $region10: #{cnn_forward.11} parent=5 // pred_check_branch
      %160 = sbr.rel (%p157) target = $region12
    $region11: #{cnn_forward.11} parent=5 // pred_region
      %s161 = ssub.s32 %s11, 1
      // Predicated region
      $region13: #{cnn_forward.11} parent=11 // pred_check
        %p162 = pneg %p58
      $region14: #{cnn_forward.11} parent=11 // pred_check_branch
        %164 = sbr.rel (%p162) target = $region16
      $region15: #{cnn_forward.11} parent=11 // pred_region
        _
      $region16: #{cnn_forward.11} parent=11 // pred_fallthru
        _
      // Predicated region
      $region17: #{cnn_forward.11} parent=11 // pred_check
        %p165 = pneg %p79
      $region18: #{cnn_forward.11} parent=11 // pred_check_branch
        %167 = sbr.rel (%p165) target = $region20
      $region19: #{cnn_forward.11} parent=11 // pred_region
        _
      $region20: #{cnn_forward.11} parent=11 // pred_fallthru
        _
      // Predicated region
      $region21: #{cnn_forward.11} parent=11 // pred_check
        %p168 = pneg %p100
      $region22: #{cnn_forward.11} parent=11 // pred_check_branch
        %170 = sbr.rel (%p168) target = $region24
      $region23: #{cnn_forward.11} parent=11 // pred_region
        _
      $region24: #{cnn_forward.11} parent=11 // pred_fallthru
        _
      // Predicated region
      $region25: #{cnn_forward.11} parent=11 // pred_check
        %p171 = pneg %p121
      $region26: #{cnn_forward.11} parent=11 // pred_check_branch
        %173 = sbr.rel (%p171) target = $region28
      $region27: #{cnn_forward.11} parent=11 // pred_region
        _
      $region28: #{cnn_forward.11} parent=11 // pred_fallthru
        _
    $region12: #{cnn_forward.11} parent=5 // pred_fallthru
      _
    %p174 = scmp.lt.s32.totalorder %s11, 2
    // Predicated region
    $region29: #{cnn_forward.11} parent=5 // pred_check
      %p175 = pneg %p174
    $region30: #{cnn_forward.11} parent=5 // pred_check_branch
      %177 = sbr.rel (%p175) target = $region32
    $region31: #{cnn_forward.11} parent=5 // pred_region
      // Predicated region
      $region33: #{cnn_forward.11} parent=31 // pred_check
        %p178 = pneg %p31
      $region34: #{cnn_forward.11} parent=31 // pred_check_branch
        %180 = sbr.rel (%p178) target = $region36
      $region35: #{cnn_forward.11} parent=31 // pred_region
        %s181 = smul.u32 10, %s11
        %p182 = scmp.lt.s32.totalorder %s181, 19
        %s183 = scalar_select %p182, %s181, 19
        %s184 = smul.addr %s183, 4
        %s185 = scalar_lea.vmem %s0, %s184
        %s186 = smul.u32 10, %s11
      $region36: #{cnn_forward.11} parent=31 // pred_fallthru
        _
    $region32: #{cnn_forward.11} parent=5 // pred_fallthru
      _
    %p187 = scmp.le.s32.totalorder 1, %s11
    %p188 = scmp.lt.s32.totalorder %s11, 3
    %p189 = pnand %p187, %p188
    %p190 = pneg %p189
    // Predicated region
    $region37: #{cnn_forward.11} parent=5 // pred_check
      _
    $region38: #{cnn_forward.11} parent=5 // pred_check_branch
      %192 = sbr.rel (%p189) target = $region40
    $region39: #{cnn_forward.11} parent=5 // pred_region
      %s193 = ssub.s32 %s11, 1
      %s194 = smul.u32 10, %s16
      %p195 = scmp.lt.s32.totalorder %s194, 19
      %s196 = scalar_select %p195, %s194, 19
      %s197 = smul.addr %s196, 4
      %s198 = scalar_lea.vmem %s0, %s197
      %p199 = pneg %p37
      %p200 = pneg %p34
      %p201 = pneg %p58
      %p202 = pneg %p55
      %p203 = pneg %p79
      %p204 = pneg %p76
      %p205 = pneg %p100
      %p206 = pneg %p97
      %p207 = pneg %p121
      %p208 = pneg %p118
      %p209 = pneg %p147
      %p210 = pneg %p144
      %s211 = smul.u32 10, %s16
      %p212 = scmp.lt.s32.totalorder %s211, 19
      %s213 = scalar_select %p212, %s211, 19
      %s214 = smul.addr %s213, 4
      %s215 = scalar_lea.vmem %s5, %s214
      %s216 = smul.u32 10, %s16
      %p217 = scmp.lt.s32.totalorder %s216, 19
      %s218 = scalar_select %p217, %s216, 19
      %s219 = smul.addr %s218, 4
      %s220 = scalar_lea.vmem %s0, %s219
      %s221 = smul.u32 10, %s16
      %s222 = smul.u32 10, %s16
      %p223 = scmp.lt.s32.totalorder %s222, 19
      %s224 = scalar_select %p223, %s222, 19
      %s225 = smul.addr %s224, 4
      %s226 = scalar_lea.vmem %s5, %s225
      %s227 = smul.u32 10, %s16
      %v228 = vld [vmem:[%s1] sm:$0xff]
      %v229 = vld [vmem:[%s1 + $0x8] sm:$0xff]
      %v230 = vadd.f32 %v228, %v229
      %v231 = vrot.slane %v230, 4
      %v232 = vadd.f32 %v230, %v231
      %v233 = vrot.slane %v232, 2
      %v234 = vadd.f32 %v232, %v233
      %v235 = vrot.slane %v234, 1
      %v236 = vadd.f32 %v234, %v235
      %v237 = vld [vmem:[%s2] sm:$0xff]
      %v238 = vld [vmem:[%s2 + $0x8] sm:$0xff]
      %v239 = vadd.f32 %v237, %v238
      %v240 = vrot.slane %v239, 4
      %v241 = vadd.f32 %v239, %v240
      %v242 = vrot.slane %v241, 2
      %v243 = vadd.f32 %v241, %v242
      %v244 = vrot.slane %v243, 1
      %v245 = vadd.f32 %v243, %v244
      %v246 = vmul.f32 %v236, 0.013888889
      %v247 = vmul.f32 %v245, 0.013888889
      %v248 = vmul.f32 %v246, %v246
      %v249 = vsub.f32 %v247, %v248
      %v250 = vmax.f32 %v249, 0.0
      %v251 = vld [vmem:[%s3] sm:$0x1]
      %v252 = vadd.f32 %v250, 1e-05
      %v253 = vrsqrt.pop %v252
      %v254 = vmul.f32 %v251, %v253
      %v255 = vld [vmem:[%s4] sm:$0x1]
      %v256 = vmul.f32 %v246, %v254
      %v257 = vsub.f32 %v255, %v256
      %v258 = vld [vmem:[%s220] sm:$0xf]
      %v259 = vld [vmem:[%s220 + $0x4] sm:$0xf]
      %v260 = vld [vmem:[%s220 + $0x8] sm:$0xf]
      %v261 = vld [vmem:[%s220 + $0xc] sm:$0xf]
      %v262 = vld [vmem:[%s220 + $0x10] sm:$0xf]
      %v263 = vld [vmem:[%s220 + $0x14] sm:$0xf]
      %v264 = vld [vmem:[%s220 + $0x18] sm:$0xf]
      %v265 = vld [vmem:[%s220 + $0x1c] sm:$0xf]
      %v266 = vld [vmem:[%s220 + $0x20] sm:$0xf]
      %v267 = vld [vmem:[%s220 + $0x24] sm:$0xf]
      %v268 = vunpack.c.l.bf16 %v258
      %v269 = vunpack.c.l.bf16 %v259
      %v270 = vunpack.c.l.bf16 %v260
      %v271 = vunpack.c.l.bf16 %v261
      %v272 = vunpack.c.l.bf16 %v262
      %v273 = vunpack.c.l.bf16 %v263
      %v274 = vunpack.c.l.bf16 %v264
      %v275 = vunpack.c.l.bf16 %v265
      %v276 = vunpack.c.l.bf16 %v266
      %v277 = vunpack.c.l.bf16 %v267
      %v279 = vlaneseq
      %v280 = vshrl.u32 %v279, 7
      %v281 = vsub.s32 0, %v280
      %v282 = vrot.slane %v254, %v281
      %v284 = vmul.f32 %v268, %v282
      %v285 = vmul.f32 %v269, %v282
      %v286 = vmul.f32 %v270, %v282
      %v287 = vmul.f32 %v271, %v282
      %v288 = vmul.f32 %v272, %v282
      %v289 = vmul.f32 %v273, %v282
      %v290 = vmul.f32 %v274, %v282
      %v291 = vmul.f32 %v275, %v282
      %v292 = vmul.f32 %v276, %v282
      %v293 = vmul.f32 %v277, %v282
      %v295 = vlaneseq
      %v296 = vshrl.u32 %v295, 7
      %v297 = vsub.s32 0, %v296
      %v298 = vrot.slane %v257, %v297
      %v300 = vadd.f32 %v284, %v298
      %v301 = vadd.f32 %v285, %v298
      %v302 = vadd.f32 %v286, %v298
      %v303 = vadd.f32 %v287, %v298
      %v304 = vadd.f32 %v288, %v298
      %v305 = vadd.f32 %v289, %v298
      %v306 = vadd.f32 %v290, %v298
      %v307 = vadd.f32 %v291, %v298
      %v308 = vadd.f32 %v292, %v298
      %v309 = vadd.f32 %v293, %v298
      %v310 = vmax.f32 %v300, 0.0
      %v311 = vmax.f32 %v301, 0.0
      %v312 = vmax.f32 %v302, 0.0
      %v313 = vmax.f32 %v303, 0.0
      %v314 = vmax.f32 %v304, 0.0
      %v315 = vmax.f32 %v305, 0.0
      %v316 = vmax.f32 %v306, 0.0
      %v317 = vmax.f32 %v307, 0.0
      %v318 = vmax.f32 %v308, 0.0
      %v319 = vmax.f32 %v309, 0.0
      %v320 = vpack.c.bf16 %v311, %v310
      %v321 = vpack.c.bf16 %v313, %v312
      %v322 = vpack.c.bf16 %v315, %v314
      %v323 = vpack.c.bf16 %v317, %v316
      %v324 = vpack.c.bf16 %v319, %v318
      %v330 = vunpack.c.l.b16 %v320
      %v331 = vunpack.c.h.b16 %v320
      %v332 = vunpack.c.l.b16 %v321
      %v333 = vunpack.c.h.b16 %v321
      %v334 = vunpack.c.l.b16 %v322
      %v335 = vunpack.c.h.b16 %v322
      %v336 = vunpack.c.l.b16 %v323
      %v337 = vunpack.c.h.b16 %v323
      %v338 = vunpack.c.l.b16 %v324
      %v339 = vunpack.c.h.b16 %v324
      %v340 = vpack.c.b16 %v330, %v330
      %v341 = vpack.c.b16 %v331, %v331
      %v342 = vpack.c.b16 %v332, %v332
      %v343 = vpack.c.b16 %v333, %v333
      %v344 = vpack.c.b16 %v334, %v334
      %v345 = vpack.c.b16 %v335, %v335
      %v346 = vpack.c.b16 %v336, %v336
      %v347 = vpack.c.b16 %v337, %v337
      %v348 = vpack.c.b16 %v338, %v338
      %v349 = vpack.c.b16 %v339, %v339
      %360 = vst [vmem:[%s226] sm:$0xf] %v340
      %361 = vst [vmem:[%s226 + $0x4] sm:$0xf] %v341
      %362 = vst [vmem:[%s226 + $0x8] sm:$0xf] %v342
      %363 = vst [vmem:[%s226 + $0xc] sm:$0xf] %v343
      %364 = vst [vmem:[%s226 + $0x10] sm:$0xf] %v344
      %365 = vst [vmem:[%s226 + $0x14] sm:$0xf] %v345
      %366 = vst [vmem:[%s226 + $0x18] sm:$0xf] %v346
      %367 = vst [vmem:[%s226 + $0x1c] sm:$0xf] %v347
      %368 = vst [vmem:[%s226 + $0x20] sm:$0xf] %v348
      %369 = vst [vmem:[%s226 + $0x24] sm:$0xf] %v349
      %s370 = smul.u32 10, %s16
      %p371 = scmp.lt.s32.totalorder %s370, 19
      %s372 = scalar_select %p371, %s370, 19
      %s373 = smul.addr %s372, 4
      %s374 = scalar_lea.vmem %s5, %s373
      // Predicated region
      $region41: #{cnn_forward.11} parent=39 // pred_check
        %p375 = pneg %p144
      $region42: #{cnn_forward.11} parent=39 // pred_check_branch
        %377 = sbr.rel (%p375) target = $region44
      $region43: #{cnn_forward.11} parent=39 // pred_region
        %s378 = smul.u32 10, %s16
      $region44: #{cnn_forward.11} parent=39 // pred_fallthru
        _
    $region40: #{cnn_forward.11} parent=5 // pred_fallthru
      _
    %p379 = scmp.le.s32.totalorder 2, %s11
    // Predicated region
    $region45: #{cnn_forward.11} parent=5 // pred_check
      %p380 = pneg %p379
    $region46: #{cnn_forward.11} parent=5 // pred_check_branch
      %382 = sbr.rel (%p380) target = $region48
    $region47: #{cnn_forward.11} parent=5 // pred_region
      %s383 = ssub.s32 %s11, 2
      // Predicated region
      $region49: #{cnn_forward.11} parent=47 // pred_check
        %p384 = pneg %p150
      $region50: #{cnn_forward.11} parent=47 // pred_check_branch
        %386 = sbr.rel (%p384) target = $region52
      $region51: #{cnn_forward.11} parent=47 // pred_region
        %s387 = smul.u32 10, %s17
        %p388 = scmp.lt.s32.totalorder %s387, 19
        %s389 = scalar_select %p388, %s387, 19
        %s390 = smul.addr %s389, 4
        %s391 = scalar_lea.vmem %s5, %s390
      $region52: #{cnn_forward.11} parent=47 // pred_fallthru
        _
    $region48: #{cnn_forward.11} parent=5 // pred_fallthru
      _
  $region6: #{cnn_forward.11} parent=0 // loop_footer
    %s15 = sadd.s32 1, %s11
  $region7: #{cnn_forward.11} parent=0 // loop_footer_branch
    %10 = sbr.rel target = $region3
  $region8: #{cnn_forward.11} parent=0 // loop_exit
    _

// kernel: cnn_forward.10
$region0: #{cnn_forward.10}
  #allocation0 [shape = 'u32[]', space=smem, size = 0x4, offset = 0x4, fixed_abs, tag = 'smem constant byte address 0x4 - core index']
  #allocation1 [shape = 'u32[144,128]{1,0:T(1,128)}', space=vmem, size = 0x12000, scoped, tag = 'internal scratch']
  %s0 = inlined_call_operand.vmem [shape: bf16[160,400], index: 0, kind: input, shape index: {}]
  %s1 = inlined_call_operand.vmem [shape: bf16[400,128], index: 1, kind: input, shape index: {}]
  %s2 = inlined_call_operand.vmem [shape: bf16[160,128], index: 2, kind: output, shape index: {0}]
  %s3 = inlined_call_operand.vmem [shape: f32[16,128], index: 3, kind: output, shape index: {1}]
  %s4 = inlined_call_operand.vmem [shape: f32[16,128], index: 4, kind: output, shape index: {2}]
  %5 = xla_tuple %s2, %s3, %s4
  %s6 = sld [smem:[#allocation0]]
  $region61: #{cnn_forward.10} parent=0
    _
  %s8 = ssub.s32 1, %s6
  %s9 = scalar_select 0, %s8, %s6
  loop: start=0, step=1, limit=4
  $region2: #{cnn_forward.10} parent=0 // loop_pre_header
    _
  $region3: #{cnn_forward.10} parent=0 // loop_header
    %s11 = sphi 0, %s15
    %p12 = scmp.ge.s32.totalorder %s11, 4
    %s18 = sphi 0, %s30
    %s19 = sphi 0, %s26
    %s20 = sphi 0, %s18
    %s21 = sphi 0, %s19
    %s22 = sphi 0, %s20
    %s23 = sphi 0, %s21
    %s35 = sphi 0, %s37
    %s38 = sphi 0, %s35
    %s39 = sphi 0, %s38
    %s55 = sphi 0, %s39
    %s59 = sphi 0, %s59
    %s61 = sphi 0, %s59
    %s62 = sphi 0, %s61
    %s76 = sphi 0, %s62
    %s84 = sphi 0, %s86
    %s87 = sphi 0, %s84
    %s88 = sphi 0, %s87
    %s104 = sphi 0, %s88
    %s110 = sphi 0, %s112
    %s113 = sphi 0, %s110
    %s114 = sphi 0, %s113
    %s130 = sphi 0, %s114
    %s136 = sphi 0, %s138
    %s139 = sphi 0, %s136
    %s140 = sphi 0, %s139
    %s156 = sphi 0, %s140
  $region4: #{cnn_forward.10} parent=0 // loop_header_branch
    %14 = sbr.rel (%p12) target = $region8
  $region5: #{cnn_forward.10} parent=0 // loop_body
    %s16 = ssub.s32 %s11, 1
    %s17 = ssub.s32 %s11, 2
    %s24 = sadd.s32 1, %s19
    %p25 = scmp.ge.s32.totalorder %s24, 1
    %s26 = scalar_select %p25, 0, %s24
    %s27 = sadd.s32 1, %s18
    %s28 = scalar_select %p25, %s27, %s18
    %p29 = scmp.ge.s32.totalorder %s28, 2
    %s30 = scalar_select %p29, 0, %s28
    %s31 = sadd.s32 %s18, %s19
    %s32 = sadd.s32 %s30, %s26
    %s33 = ssub.s32 %s31, %s32
    %p34 = scmp.eq.s32.totalorder %s33, 0
    %s36 = sadd.s32 %s35, 1
    %s37 = scalar_select %p34, %s35, %s36
    %p40 = pneg %p34
    %p41 = scmp.eq.s32.totalorder %s11, 1
    %p42 = por %p40, %p41
    %p43 = scmp.ne.s32.totalorder %s35, %s38
    %p44 = scmp.eq.s32.totalorder %s11, 0
    %p45 = por %p43, %p44
    %p46 = scmp.ne.s32.totalorder %s35, %s38
    %p47 = scmp.eq.s32.totalorder %s16, 1
    %p48 = por %p46, %p47
    %p49 = scmp.ne.s32.totalorder %s38, %s39
    %p50 = scmp.eq.s32.totalorder %s16, 0
    %p51 = por %p49, %p50
    %p52 = scmp.ne.s32.totalorder %s38, %s39
    %p53 = scmp.eq.s32.totalorder %s17, 1
    %p54 = por %p52, %p53
    %p56 = scmp.ne.s32.totalorder %s39, %s55
    %p57 = scmp.eq.s32.totalorder %s17, 0
    %p58 = por %p56, %p57
    %s60 = sadd.s32 %s59, 1
    %p63 = scmp.eq.s32.totalorder %s11, 1
    %p64 = scmp.ne.s32.totalorder %s59, %s61
    %p65 = scmp.eq.s32.totalorder %s11, 0
    %p66 = por %p64, %p65
    %p67 = scmp.ne.s32.totalorder %s59, %s61
    %p68 = scmp.eq.s32.totalorder %s16, 1
    %p69 = por %p67, %p68
    %p70 = scmp.ne.s32.totalorder %s61, %s62
    %p71 = scmp.eq.s32.totalorder %s16, 0
    %p72 = por %p70, %p71
    %p73 = scmp.ne.s32.totalorder %s61, %s62
    %p74 = scmp.eq.s32.totalorder %s17, 1
    %p75 = por %p73, %p74
    %p77 = scmp.ne.s32.totalorder %s62, %s76
    %p78 = scmp.eq.s32.totalorder %s17, 0
    %p79 = por %p77, %p78
    %s80 = sadd.s32 %s18, %s19
    %s81 = sadd.s32 %s30, %s26
    %s82 = ssub.s32 %s80, %s81
    %p83 = scmp.eq.s32.totalorder %s82, 0
    %s85 = sadd.s32 %s84, 1
    %s86 = scalar_select %p83, %s84, %s85
    %p89 = pneg %p83
    %p90 = scmp.eq.s32.totalorder %s11, 1
    %p91 = por %p89, %p90
    %p92 = scmp.ne.s32.totalorder %s84, %s87
    %p93 = scmp.eq.s32.totalorder %s11, 0
    %p94 = por %p92, %p93
    %p95 = scmp.ne.s32.totalorder %s84, %s87
    %p96 = scmp.eq.s32.totalorder %s16, 1
    %p97 = por %p95, %p96
    %p98 = scmp.ne.s32.totalorder %s87, %s88
    %p99 = scmp.eq.s32.totalorder %s16, 0
    %p100 = por %p98, %p99
    %p101 = scmp.ne.s32.totalorder %s87, %s88
    %p102 = scmp.eq.s32.totalorder %s17, 1
    %p103 = por %p101, %p102
    %p105 = scmp.ne.s32.totalorder %s88, %s104
    %p106 = scmp.eq.s32.totalorder %s17, 0
    %p107 = por %p105, %p106
    %s108 = ssub.s32 %s18, %s30
    %p109 = scmp.eq.s32.totalorder %s108, 0
    %s111 = sadd.s32 %s110, 1
    %s112 = scalar_select %p109, %s110, %s111
    %p115 = pneg %p109
    %p116 = scmp.eq.s32.totalorder %s11, 1
    %p117 = por %p115, %p116
    %p118 = scmp.ne.s32.totalorder %s110, %s113
    %p119 = scmp.eq.s32.totalorder %s11, 0
    %p120 = por %p118, %p119
    %p121 = scmp.ne.s32.totalorder %s110, %s113
    %p122 = scmp.eq.s32.totalorder %s16, 1
    %p123 = por %p121, %p122
    %p124 = scmp.ne.s32.totalorder %s113, %s114
    %p125 = scmp.eq.s32.totalorder %s16, 0
    %p126 = por %p124, %p125
    %p127 = scmp.ne.s32.totalorder %s113, %s114
    %p128 = scmp.eq.s32.totalorder %s17, 1
    %p129 = por %p127, %p128
    %p131 = scmp.ne.s32.totalorder %s114, %s130
    %p132 = scmp.eq.s32.totalorder %s17, 0
    %p133 = por %p131, %p132
    %s134 = ssub.s32 %s18, %s30
    %p135 = scmp.eq.s32.totalorder %s134, 0
    %s137 = sadd.s32 %s136, 1
    %s138 = scalar_select %p135, %s136, %s137
    %p141 = pneg %p135
    %p142 = scmp.eq.s32.totalorder %s11, 1
    %p143 = por %p141, %p142
    %p144 = scmp.ne.s32.totalorder %s136, %s139
    %p145 = scmp.eq.s32.totalorder %s11, 0
    %p146 = por %p144, %p145
    %p147 = scmp.ne.s32.totalorder %s136, %s139
    %p148 = scmp.eq.s32.totalorder %s16, 1
    %p149 = por %p147, %p148
    %p150 = scmp.ne.s32.totalorder %s139, %s140
    %p151 = scmp.eq.s32.totalorder %s16, 0
    %p152 = por %p150, %p151
    %p153 = scmp.ne.s32.totalorder %s139, %s140
    %p154 = scmp.eq.s32.totalorder %s17, 1
    %p155 = por %p153, %p154
    %p157 = scmp.ne.s32.totalorder %s140, %s156
    %p158 = scmp.eq.s32.totalorder %s17, 0
    %p159 = por %p157, %p158
    %p160 = scmp.le.s32.totalorder 1, %s11
    %p161 = scmp.lt.s32.totalorder %s11, 3
    %p162 = pnand %p160, %p161
    %p163 = pneg %p162
    // Predicated region
    $region9: #{cnn_forward.10} parent=5 // pred_check
      _
    $region10: #{cnn_forward.10} parent=5 // pred_check_branch
      %165 = sbr.rel (%p162) target = $region12
    $region11: #{cnn_forward.10} parent=5 // pred_region
      %s166 = ssub.s32 %s11, 1
      // Predicated region
      $region13: #{cnn_forward.10} parent=11 // pred_check
        %p167 = pneg %p72
      $region14: #{cnn_forward.10} parent=11 // pred_check_branch
        %169 = sbr.rel (%p167) target = $region16
      $region15: #{cnn_forward.10} parent=11 // pred_region
        _
      $region16: #{cnn_forward.10} parent=11 // pred_fallthru
        _
    $region12: #{cnn_forward.10} parent=5 // pred_fallthru
      _
    %p170 = scmp.lt.s32.totalorder %s11, 2
    // Predicated region
    $region17: #{cnn_forward.10} parent=5 // pred_check
      %p171 = pneg %p170
    $region18: #{cnn_forward.10} parent=5 // pred_check_branch
      %173 = sbr.rel (%p171) target = $region20
    $region19: #{cnn_forward.10} parent=5 // pred_region
      // Predicated region
      $region21: #{cnn_forward.10} parent=19 // pred_check
        %p174 = pneg %p45
      $region22: #{cnn_forward.10} parent=19 // pred_check_branch
        %176 = sbr.rel (%p174) target = $region24
      $region23: #{cnn_forward.10} parent=19 // pred_region
        %s177 = sadd.s32 %s18, %s19
        %s178 = smul.u32 10, %s177
        %p179 = scmp.lt.s32.totalorder %s178, 19
        %s180 = scalar_select %p179, %s178, 19
        %s181 = smul.addr %s180, 4
        %s182 = smul.addr %s181, 4
        %s183 = scalar_lea.vmem %s0, %s182
        %s184 = sadd.s32 %s18, %s19
        %s185 = smul.u32 10, %s184
      $region24: #{cnn_forward.10} parent=19 // pred_fallthru
        _
    $region20: #{cnn_forward.10} parent=5 // pred_fallthru
      _
    %p186 = scmp.le.s32.totalorder 1, %s11
    %p187 = scmp.lt.s32.totalorder %s11, 3
    %p188 = pnand %p186, %p187
    %p189 = pneg %p188
    // Predicated region
    $region25: #{cnn_forward.10} parent=5 // pred_check
      _
    $region26: #{cnn_forward.10} parent=5 // pred_check_branch
      %191 = sbr.rel (%p188) target = $region28
    $region27: #{cnn_forward.10} parent=5 // pred_region
      %s192 = ssub.s32 %s11, 1
      %s193 = sadd.s32 %s20, %s21
      %s194 = smul.u32 10, %s193
      %p195 = scmp.lt.s32.totalorder %s194, 19
      %s196 = scalar_select %p195, %s194, 19
      %s197 = smul.addr %s196, 4
      %s198 = smul.addr %s197, 4
      %s199 = scalar_lea.vmem %s0, %s198
      %p200 = pneg %p51
      %p201 = pneg %p48
      %p202 = pneg %p72
      %p203 = pneg %p69
      %p204 = pneg %p100
      %p205 = pneg %p97
      %s206 = sadd.s32 %s20, %s21
      %s207 = smul.u32 10, %s206
      %p208 = scmp.lt.s32.totalorder %s207, 19
      %s209 = scalar_select %p208, %s207, 19
      %s210 = smul.addr %s209, 4
      %s211 = scalar_lea.vmem %s2, %s210
      %p212 = pneg %p126
      %p213 = pneg %p123
      %p214 = scmp.lt.s32.totalorder %s20, 1
      %s215 = scalar_select %p214, %s20, 1
      %s216 = smul.addr %s215, 8
      %s217 = scalar_lea.vmem %s3, %s216
      %p218 = pneg %p152
      %p219 = pneg %p149
      %p220 = scmp.lt.s32.totalorder %s20, 1
      %s221 = scalar_select %p220, %s20, 1
      %s222 = smul.addr %s221, 8
      %s223 = scalar_lea.vmem %s4, %s222
      %s224 = sadd.s32 %s20, %s21
      %s225 = smul.u32 10, %s224
      %p226 = scmp.lt.s32.totalorder %s225, 19
      %s227 = scalar_select %p226, %s225, 19
      %s228 = smul.addr %s227, 4
      %s229 = smul.addr %s228, 4
      %s230 = scalar_lea.vmem %s0, %s229
      %s231 = sadd.s32 %s20, %s21
      %s232 = smul.u32 10, %s231
      %s233 = sadd.s32 %s20, %s21
      %s234 = smul.u32 10, %s233
      %p235 = scmp.lt.s32.totalorder %s234, 19
      %s236 = scalar_select %p235, %s234, 19
      %s237 = smul.addr %s236, 4
      %s238 = scalar_lea.vmem %s2, %s237
      %s239 = sadd.s32 %s20, %s21
      %s240 = smul.u32 10, %s239
      %p241 = scmp.lt.s32.totalorder %s20, 1
      %s242 = scalar_select %p241, %s20, 1
      %s243 = smul.addr %s242, 8
      %s244 = scalar_lea.vmem %s3, %s243
      %p245 = scmp.lt.s32.totalorder %s20, 1
      %s246 = scalar_select %p245, %s20, 1
      %s247 = smul.addr %s246, 8
      %s248 = scalar_lea.vmem %s4, %s247
      %v250 = vld [vmem:[%s230] sm:$0xff]
      %v251 = vld [vmem:[%s230 + $0x8] sm:$0xff]
      %v252 = vld [vmem:[%s230 + $0x10] sm:$0xff]
      %v253 = vld [vmem:[%s230 + $0x18] sm:$0xff]
      %v254 = vld [vmem:[%s230 + $0x20] sm:$0xff]
      %v255 = vld [vmem:[%s230 + $0x28] sm:$0xff]
      %v256 = vld [vmem:[%s230 + $0x30] sm:$0xff]
      %v257 = vld [vmem:[%s230 + $0x38] sm:$0xff]
      %v258 = vld [vmem:[%s230 + $0x40] sm:$0xff]
      %v259 = vld [vmem:[%s230 + $0x48] sm:$0xff]
      %v260 = vld [vmem:[%s230 + $0x50] sm:$0xff]
      %v261 = vld [vmem:[%s230 + $0x58] sm:$0xff]
      %v262 = vld [vmem:[%s230 + $0x60] sm:$0xff]
      %v263 = vld [vmem:[%s230 + $0x68] sm:$0xff]
      %v264 = vld [vmem:[%s230 + $0x70] sm:$0xff]
      %v265 = vld [vmem:[%s230 + $0x78] sm:$0xff]
      %v266 = vld [vmem:[%s230 + $0x80] sm:$0xff]
      %v267 = vld [vmem:[%s230 + $0x88] sm:$0xff]
      %v268 = vld [vmem:[%s230 + $0x90] sm:$0xff]
      %v269 = vld [vmem:[%s230 + $0x98] sm:$0xff]
      %v270 = vld [vmem:[%s1] sm:$0xf]
      %v271 = vld [vmem:[%s1 + $0x4] sm:$0xf]
      %v272 = vld [vmem:[%s1 + $0x8] sm:$0xf]
      %v273 = vld [vmem:[%s1 + $0xc] sm:$0xf]
      %v274 = vld [vmem:[%s1 + $0x10] sm:$0xf]
      %v275 = vld [vmem:[%s1 + $0x14] sm:$0xf]
      %v276 = vld [vmem:[%s1 + $0x18] sm:$0xf]
      %v277 = vld [vmem:[%s1 + $0x1c] sm:$0xf]
      %v278 = vld [vmem:[%s1 + $0x20] sm:$0xf]
      %v279 = vld [vmem:[%s1 + $0x24] sm:$0xf]
      %v280 = vld [vmem:[%s1 + $0x28] sm:$0xf]
      %v281 = vld [vmem:[%s1 + $0x2c] sm:$0xf]
      %v282 = vld [vmem:[%s1 + $0x30] sm:$0xf]
      %v283 = vld [vmem:[%s1 + $0x34] sm:$0xf]
      %v284 = vld [vmem:[%s1 + $0x38] sm:$0xf]
      %v285 = vld [vmem:[%s1 + $0x3c] sm:$0xf]
      %v286 = vld [vmem:[%s1 + $0x40] sm:$0xf]
      %v287 = vld [vmem:[%s1 + $0x44] sm:$0xf]
      %v288 = vld [vmem:[%s1 + $0x48] sm:$0xf]
      %v289 = vld [vmem:[%s1 + $0x4c] sm:$0xf]
      %v290 = vld [vmem:[%s1 + $0x50] sm:$0xf]
      %v291 = vld [vmem:[%s1 + $0x54] sm:$0xf]
      %v292 = vld [vmem:[%s1 + $0x58] sm:$0xf]
      %v293 = vld [vmem:[%s1 + $0x5c] sm:$0xf]
      %v294 = vld [vmem:[%s1 + $0x60] sm:$0xf]
      %v295 = vld [vmem:[%s1 + $0x64] sm:$0xf]
      %v296 = vld [vmem:[%s1 + $0x68] sm:$0xf]
      %v297 = vld [vmem:[%s1 + $0x6c] sm:$0xf]
      %v298 = vld [vmem:[%s1 + $0x70] sm:$0xf]
      %v299 = vld [vmem:[%s1 + $0x74] sm:$0xf]
      %v300 = vld [vmem:[%s1 + $0x78] sm:$0xf]
      %v301 = vld [vmem:[%s1 + $0x7c] sm:$0xf]
      %v302 = vld [vmem:[%s1 + $0x80] sm:$0xf]
      %v303 = vld [vmem:[%s1 + $0x84] sm:$0xf]
      %v304 = vld [vmem:[%s1 + $0x88] sm:$0xf]
      %v305 = vld [vmem:[%s1 + $0x8c] sm:$0xf]
      %v306 = vld [vmem:[%s1 + $0x90] sm:$0xf]
      %v307 = vld [vmem:[%s1 + $0x94] sm:$0xf]
      %v308 = vld [vmem:[%s1 + $0x98] sm:$0xf]
      %v309 = vld [vmem:[%s1 + $0x9c] sm:$0xf]
      %v310 = vld [vmem:[%s1 + $0xa0] sm:$0xf]
      %v311 = vld [vmem:[%s1 + $0xa4] sm:$0xf]
      %v312 = vld [vmem:[%s1 + $0xa8] sm:$0xf]
      %v313 = vld [vmem:[%s1 + $0xac] sm:$0xf]
      %v314 = vld [vmem:[%s1 + $0xb0] sm:$0xf]
      %v315 = vld [vmem:[%s1 + $0xb4] sm:$0xf]
      %v316 = vld [vmem:[%s1 + $0xb8] sm:$0xf]
      %v317 = vld [vmem:[%s1 + $0xbc] sm:$0xf]
      %v318 = vld [vmem:[%s1 + $0xc0] sm:$0xf]
      %v319 = vld [vmem:[%s1 + $0xc4] sm:$0xf]
      %v340 = vunpack.c.l.b16 %v250
      %v341 = vunpack.c.h.b16 %v250
      %v342 = vunpack.c.l.b16 %v251
      %v343 = vunpack.c.h.b16 %v251
      %v344 = vunpack.c.l.b16 %v252
      %v345 = vunpack.c.h.b16 %v252
      %v346 = vunpack.c.l.b16 %v253
      %v347 = vunpack.c.h.b16 %v253
      %v348 = vunpack.c.l.b16 %v254
      %v349 = vunpack.c.h.b16 %v254
      %v350 = vunpack.c.l.b16 %v255
      %v351 = vunpack.c.h.b16 %v255
      %v352 = vunpack.c.l.b16 %v256
      %v353 = vunpack.c.h.b16 %v256
      %v354 = vunpack.c.l.b16 %v257
      %v355 = vunpack.c.h.b16 %v257
      %v356 = vunpack.c.l.b16 %v258
      %v357 = vunpack.c.h.b16 %v258
      %v358 = vunpack.c.l.b16 %v259
      %v359 = vunpack.c.h.b16 %v259
      %v360 = vunpack.c.l.b16 %v260
      %v361 = vunpack.c.h.b16 %v260
      %v362 = vunpack.c.l.b16 %v261
      %v363 = vunpack.c.h.b16 %v261
      %v364 = vunpack.c.l.b16 %v262
      %v365 = vunpack.c.h.b16 %v262
      %v366 = vunpack.c.l.b16 %v263
      %v367 = vunpack.c.h.b16 %v263
      %v368 = vunpack.c.l.b16 %v264
      %v369 = vunpack.c.h.b16 %v264
      %v370 = vunpack.c.l.b16 %v265
      %v371 = vunpack.c.h.b16 %v265
      %v372 = vunpack.c.l.b16 %v266
      %v373 = vunpack.c.h.b16 %v266
      %v374 = vunpack.c.l.b16 %v267
      %v375 = vunpack.c.h.b16 %v267
      %v376 = vunpack.c.l.b16 %v268
      %v377 = vunpack.c.h.b16 %v268
      %v378 = vunpack.c.l.b16 %v269
      %v379 = vunpack.c.h.b16 %v269
      %v380 = vpack.c.b16 %v344, %v340
      %v381 = vpack.c.b16 %v345, %v341
      %v382 = vpack.c.b16 %v346, %v342
      %v383 = vpack.c.b16 %v347, %v343
      %v384 = vpack.c.b16 %v352, %v348
      %v385 = vpack.c.b16 %v353, %v349
      %v386 = vpack.c.b16 %v354, %v350
      %v387 = vpack.c.b16 %v355, %v351
      %v388 = vpack.c.b16 %v360, %v356
      %v389 = vpack.c.b16 %v361, %v357
      %v390 = vpack.c.b16 %v362, %v358
      %v391 = vpack.c.b16 %v363, %v359
      %v392 = vpack.c.b16 %v368, %v364
      %v393 = vpack.c.b16 %v369, %v365
      %v394 = vpack.c.b16 %v370, %v366
      %v395 = vpack.c.b16 %v371, %v367
      %v396 = vpack.c.b16 %v376, %v372
      %v397 = vpack.c.b16 %v377, %v373
      %v398 = vpack.c.b16 %v378, %v374
      %v399 = vpack.c.b16 %v379, %v375
      %v465 = vunpack.c.l.b16 %v270
      %v466 = vunpack.c.l.b16 %v271
      %v467 = vunpack.c.l.b16 %v272
      %v468 = vunpack.c.l.b16 %v273
      %v469 = vunpack.c.l.b16 %v274
      %v470 = vunpack.c.l.b16 %v275
      %v471 = vunpack.c.l.b16 %v276
      %v472 = vunpack.c.l.b16 %v277
      %v473 = vunpack.c.l.b16 %v278
      %v474 = vunpack.c.l.b16 %v279
      %v475 = vunpack.c.l.b16 %v280
      %v476 = vunpack.c.l.b16 %v281
      %v477 = vunpack.c.l.b16 %v282
      %v478 = vunpack.c.l.b16 %v283
      %v479 = vunpack.c.l.b16 %v284
      %v480 = vunpack.c.l.b16 %v285
      %v481 = vunpack.c.l.b16 %v286
      %v482 = vunpack.c.l.b16 %v287
      %v483 = vunpack.c.l.b16 %v288
      %v484 = vunpack.c.l.b16 %v289
      %v485 = vunpack.c.l.b16 %v290
      %v486 = vunpack.c.l.b16 %v291
      %v487 = vunpack.c.l.b16 %v292
      %v488 = vunpack.c.l.b16 %v293
      %v489 = vunpack.c.l.b16 %v294
      %v490 = vunpack.c.l.b16 %v295
      %v491 = vunpack.c.l.b16 %v296
      %v492 = vunpack.c.l.b16 %v297
      %v493 = vunpack.c.l.b16 %v298
      %v494 = vunpack.c.l.b16 %v299
      %v495 = vunpack.c.l.b16 %v300
      %v496 = vunpack.c.l.b16 %v301
      %v497 = vunpack.c.l.b16 %v302
      %v498 = vunpack.c.l.b16 %v303
      %v499 = vunpack.c.l.b16 %v304
      %v500 = vunpack.c.l.b16 %v305
      %v501 = vunpack.c.l.b16 %v306
      %v502 = vunpack.c.l.b16 %v307
      %v503 = vunpack.c.l.b16 %v308
      %v504 = vunpack.c.l.b16 %v309
      %v505 = vunpack.c.l.b16 %v310
      %v506 = vunpack.c.l.b16 %v311
      %v507 = vunpack.c.l.b16 %v312
      %v508 = vunpack.c.l.b16 %v313
      %v509 = vunpack.c.l.b16 %v314
      %v510 = vunpack.c.l.b16 %v315
      %v511 = vunpack.c.l.b16 %v316
      %v512 = vunpack.c.l.b16 %v317
      %v513 = vunpack.c.l.b16 %v318
      %v514 = vunpack.c.l.b16 %v319
      %v515 = vpack.c.b16 %v466, %v465
      %v516 = vpack.c.b16 %v468, %v467
      %v517 = vpack.c.b16 %v470, %v469
      %v518 = vpack.c.b16 %v472, %v471
      %v519 = vpack.c.b16 %v474, %v473
      %v520 = vpack.c.b16 %v476, %v475
      %v521 = vpack.c.b16 %v478, %v477
      %v522 = vpack.c.b16 %v480, %v479
      %v523 = vpack.c.b16 %v482, %v481
      %v524 = vpack.c.b16 %v484, %v483
      %v525 = vpack.c.b16 %v486, %v485
      %v526 = vpack.c.b16 %v488, %v487
      %v527 = vpack.c.b16 %v490, %v489
      %v528 = vpack.c.b16 %v492, %v491
      %v529 = vpack.c.b16 %v494, %v493
      %v530 = vpack.c.b16 %v496, %v495
      %v531 = vpack.c.b16 %v498, %v497
      %v532 = vpack.c.b16 %v500, %v499
      %v533 = vpack.c.b16 %v502, %v501
      %v534 = vpack.c.b16 %v504, %v503
      %v535 = vpack.c.b16 %v506, %v505
      %v536 = vpack.c.b16 %v508, %v507
      %v537 = vpack.c.b16 %v510, %v509
      %v538 = vpack.c.b16 %v512, %v511
      %v539 = vpack.c.b16 %v514, %v513
      %vm565 = vcmask 130048
      %v567 = vsel %vm565, %v383, 0
      %v570 = vsel %vm565, %v387, 0
      %v573 = vsel %vm565, %v391, 0
      %v576 = vsel %vm565, %v395, 0
      %v579 = vsel %vm565, %v399, 0
      %581 = vmatprep.subr.bf16.mxu0 0
      %582 = vmatpush1.bf16.msra.mxu0 %v522
      %583 = vmatprep.subr.bf16.mxu0 0
      %584 = vmatpush1.bf16.msra.mxu0 %v521
      %585 = vmatprep.subr.bf16.mxu0 0
      %586 = vmatpush1.bf16.msra.mxu0 %v520
      %587 = vmatprep.subr.bf16.mxu0 0
      %588 = vmatpush1.bf16.msra.mxu0 %v519
      %589 = vmatprep.subr.bf16.mxu0 0
      %590 = vmatpush1.bf16.msra.mxu0 %v518
      %591 = vmatprep.subr.bf16.mxu0 0
      %592 = vmatpush1.bf16.msra.mxu0 %v517
      %593 = vmatprep.subr.bf16.mxu0 0
      %594 = vmatpush1.bf16.msra.mxu0 %v516
      %595 = vmatprep.subr.bf16.mxu0 0
      %596 = vmatpush1.bf16.msra.mxu0 %v515
      %597 = vmatprep.subr.bf16.mxu0 0
      %598 = vmatpush2.bf16.msra.mxu0 %v530
      %599 = vmatprep.subr.bf16.mxu0 0
      %600 = vmatpush2.bf16.msra.mxu0 %v529
      %601 = vmatprep.subr.bf16.mxu0 0
      %602 = vmatpush2.bf16.msra.mxu0 %v528
      %603 = vmatprep.subr.bf16.mxu0 0
      %604 = vmatpush2.bf16.msra.mxu0 %v527
      %605 = vmatprep.subr.bf16.mxu0 0
      %606 = vmatpush2.bf16.msra.mxu0 %v526
      %607 = vmatprep.subr.bf16.mxu0 0
      %608 = vmatpush2.bf16.msra.mxu0 %v525
      %609 = vmatprep.subr.bf16.mxu0 0
      %610 = vmatpush2.bf16.msra.mxu0 %v524
      %611 = vmatprep.subr.bf16.mxu0 0
      %612 = vmatpush2.bf16.msra.mxu0 %v523
      %613 = vmatprep.mubr.bf16.mxu0 %v381
      %614 = vmatmul.mubr.bf16.gmra.mxu0 %v380
      %v615 = vpop.f32.mrf.mxu0
      %v616 = vadd.f32 0.0, %v615
      %v617 = vpop.f32.mrf.mxu0
      %v618 = vpop.f32.mrf.mxu0
      %v619 = vadd.f32 0.0, %v618
      %v620 = vpop.f32.mrf.mxu0
      %621 = vmatprep.mubr.bf16.mxu0 %v385
      %622 = vmatmul.mubr.bf16.gmra.mxu0 %v384
      %v623 = vpop.f32.mrf.mxu0
      %v624 = vadd.f32 0.0, %v623
      %v625 = vpop.f32.mrf.mxu0
      %v626 = vpop.f32.mrf.mxu0
      %v627 = vadd.f32 0.0, %v626
      %v628 = vpop.f32.mrf.mxu0
      %629 = vmatprep.mubr.bf16.mxu0 %v389
      %630 = vmatmul.mubr.bf16.gmra.mxu0 %v388
      %v631 = vpop.f32.mrf.mxu0
      %v632 = vadd.f32 0.0, %v631
      %v633 = vpop.f32.mrf.mxu0
      %v634 = vpop.f32.mrf.mxu0
      %v635 = vadd.f32 0.0, %v634
      %v636 = vpop.f32.mrf.mxu0
      %637 = vmatprep.mubr.bf16.mxu0 %v393
      %638 = vmatmul.mubr.bf16.gmra.mxu0 %v392
      %v639 = vpop.f32.mrf.mxu0
      %v640 = vadd.f32 0.0, %v639
      %v641 = vpop.f32.mrf.mxu0
      %v642 = vpop.f32.mrf.mxu0
      %v643 = vadd.f32 0.0, %v642
      %v644 = vpop.f32.mrf.mxu0
      %645 = vmatprep.mubr.bf16.mxu0 %v397
      %646 = vmatmul.mubr.bf16.gmra.mxu0 %v396
      %v647 = vpop.f32.mrf.mxu0
      %v648 = vadd.f32 0.0, %v647
      %v649 = vpop.f32.mrf.mxu0
      %v650 = vpop.f32.mrf.mxu0
      %v651 = vadd.f32 0.0, %v650
      %v652 = vpop.f32.mrf.mxu0
      %653 = vdwg.mxu0
      %654 = vmatprep.subr.bf16.mxu0 0
      %655 = vmatpush1.bf16.msra.mxu0 %v538
      %656 = vmatprep.subr.bf16.mxu0 0
      %657 = vmatpush1.bf16.msra.mxu0 %v537
      %658 = vmatprep.subr.bf16.mxu0 0
      %659 = vmatpush1.bf16.msra.mxu0 %v536
      %660 = vmatprep.subr.bf16.mxu0 0
      %661 = vmatpush1.bf16.msra.mxu0 %v535
      %662 = vmatprep.subr.bf16.mxu0 0
      %663 = vmatpush1.bf16.msra.mxu0 %v534
      %664 = vmatprep.subr.bf16.mxu0 0
      %665 = vmatpush1.bf16.msra.mxu0 %v533
      %666 = vmatprep.subr.bf16.mxu0 0
      %667 = vmatpush1.bf16.msra.mxu0 %v532
      %668 = vmatprep.subr.bf16.mxu0 0
      %669 = vmatpush1.bf16.msra.mxu0 %v531
      %670 = vmatprep.subr.bf16.mxu0 0
      %671 = vmatpush2.bf16.msra.mxu0 0
      %672 = vmatprep.subr.bf16.mxu0 0
      %673 = vmatpush2.bf16.msra.mxu0 0
      %674 = vmatprep.subr.bf16.mxu0 0
      %675 = vmatpush2.bf16.msra.mxu0 0
      %676 = vmatprep.subr.bf16.mxu0 0
      %677 = vmatpush2.bf16.msra.mxu0 0
      %678 = vmatprep.subr.bf16.mxu0 0
      %679 = vmatpush2.bf16.msra.mxu0 0
      %680 = vmatprep.subr.bf16.mxu0 0
      %681 = vmatpush2.bf16.msra.mxu0 0
      %682 = vmatprep.subr.bf16.mxu0 0
      %683 = vmatpush2.bf16.msra.mxu0 0
      %684 = vmatprep.subr.bf16.mxu0 0
      %685 = vmatpush2.bf16.msra.mxu0 %v539
      %686 = vmatprep.mubr.bf16.mxu0 %v567
      %687 = vmatmul.mubr.bf16.gmra.mxu0 %v382
      %v688 = vpop.f32.mrf.mxu0
      %v689 = vadd.f32 %v616, %v688
      %v690 = vpop.f32.mrf.mxu0
      %v691 = vpop.f32.mrf.mxu0
      %v692 = vadd.f32 %v619, %v691
      %v693 = vpop.f32.mrf.mxu0
      %694 = vmatprep.mubr.bf16.mxu0 %v570
      %695 = vmatmul.mubr.bf16.gmra.mxu0 %v386
      %v696 = vpop.f32.mrf.mxu0
      %v697 = vadd.f32 %v624, %v696
      %v698 = vpop.f32.mrf.mxu0
      %v699 = vpop.f32.mrf.mxu0
      %v700 = vadd.f32 %v627, %v699
      %v701 = vpop.f32.mrf.mxu0
      %702 = vmatprep.mubr.bf16.mxu0 %v573
      %703 = vmatmul.mubr.bf16.gmra.mxu0 %v390
      %v704 = vpop.f32.mrf.mxu0
      %v705 = vadd.f32 %v632, %v704
      %v706 = vpop.f32.mrf.mxu0
      %v707 = vpop.f32.mrf.mxu0
      %v708 = vadd.f32 %v635, %v707
      %v709 = vpop.f32.mrf.mxu0
      %710 = vmatprep.mubr.bf16.mxu0 %v576
      %711 = vmatmul.mubr.bf16.gmra.mxu0 %v394
      %v712 = vpop.f32.mrf.mxu0
      %v713 = vadd.f32 %v640, %v712
      %v714 = vpop.f32.mrf.mxu0
      %v715 = vpop.f32.mrf.mxu0
      %v716 = vadd.f32 %v643, %v715
      %v717 = vpop.f32.mrf.mxu0
      %718 = vmatprep.mubr.bf16.mxu0 %v579
      %719 = vmatmul.mubr.bf16.gmra.mxu0 %v398
      %v720 = vpop.f32.mrf.mxu0
      %v721 = vadd.f32 %v648, %v720
      %v722 = vpop.f32.mrf.mxu0
      %v723 = vpop.f32.mrf.mxu0
      %v724 = vadd.f32 %v651, %v723
      %v725 = vpop.f32.mrf.mxu0
      %726 = vdwg.mxu0
      %v727 = vpack.c.bf16 %v692, %v689
      %v728 = vpack.c.bf16 %v700, %v697
      %v729 = vpack.c.bf16 %v708, %v705
      %v730 = vpack.c.bf16 %v716, %v713
      %v731 = vpack.c.bf16 %v724, %v721
      %v737 = vunpack.c.l.b16 %v727
      %v738 = vunpack.c.h.b16 %v727
      %v739 = vunpack.c.l.b16 %v728
      %v740 = vunpack.c.h.b16 %v728
      %v741 = vunpack.c.l.b16 %v729
      %v742 = vunpack.c.h.b16 %v729
      %v743 = vunpack.c.l.b16 %v730
      %v744 = vunpack.c.h.b16 %v730
      %v745 = vunpack.c.l.b16 %v731
      %v746 = vunpack.c.h.b16 %v731
      %v747 = vpack.c.b16 %v737, %v737
      %v748 = vpack.c.b16 %v738, %v738
      %v749 = vpack.c.b16 %v739, %v739
      %v750 = vpack.c.b16 %v740, %v740
      %v751 = vpack.c.b16 %v741, %v741
      %v752 = vpack.c.b16 %v742, %v742
      %v753 = vpack.c.b16 %v743, %v743
      %v754 = vpack.c.b16 %v744, %v744
      %v755 = vpack.c.b16 %v745, %v745
      %v756 = vpack.c.b16 %v746, %v746
      %767 = vst [vmem:[%s238] sm:$0xf] %v747
      %768 = vst [vmem:[%s238 + $0x4] sm:$0xf] %v748
      %769 = vst [vmem:[%s238 + $0x8] sm:$0xf] %v749
      %770 = vst [vmem:[%s238 + $0xc] sm:$0xf] %v750
      %771 = vst [vmem:[%s238 + $0x10] sm:$0xf] %v751
      %772 = vst [vmem:[%s238 + $0x14] sm:$0xf] %v752
      %773 = vst [vmem:[%s238 + $0x18] sm:$0xf] %v753
      %774 = vst [vmem:[%s238 + $0x1c] sm:$0xf] %v754
      %775 = vst [vmem:[%s238 + $0x20] sm:$0xf] %v755
      %776 = vst [vmem:[%s238 + $0x24] sm:$0xf] %v756
      %p777 = scmp.eq.s32.totalorder %s21, 0
      // Predicated region
      $region29: #{cnn_forward.10} parent=27 // pred_check
        %p778 = pneg %p777
      $region30: #{cnn_forward.10} parent=27 // pred_check_branch
        %780 = sbr.rel (%p778) target = $region32
      $region31: #{cnn_forward.10} parent=27 // pred_region
        %781 = vst [vmem:[%s244] sm:$0xff] 0.0
        %782 = vst [vmem:[%s248] sm:$0xff] 0.0
      $region32: #{cnn_forward.10} parent=27 // pred_fallthru
        _
      %v783 = vld [vmem:[%s244] sm:$0xff]
      %v784 = vadd.f32 %v689, %v692
      %v785 = vadd.f32 %v784, %v697
      %v786 = vadd.f32 %v785, %v700
      %v787 = vadd.f32 %v786, %v705
      %v788 = vadd.f32 %v787, %v708
      %v789 = vadd.f32 %v788, %v713
      %v790 = vadd.f32 %v789, %v716
      %v791 = vadd.f32 %v790, %v721
      %v792 = vadd.f32 %v791, %v724
      %v793 = vadd.f32 %v783, %v792
      %794 = vst [vmem:[%s244] sm:$0xff] %v793
      %v795 = vld [vmem:[%s248] sm:$0xff]
      %v796 = vmul.f32 %v689, %v689
      %v797 = vmul.f32 %v692, %v692
      %v798 = vmul.f32 %v697, %v697
      %v799 = vmul.f32 %v700, %v700
      %v800 = vmul.f32 %v705, %v705
      %v801 = vmul.f32 %v708, %v708
      %v802 = vmul.f32 %v713, %v713
      %v803 = vmul.f32 %v716, %v716
      %v804 = vmul.f32 %v721, %v721
      %v805 = vmul.f32 %v724, %v724
      %v806 = vadd.f32 %v796, %v797
      %v807 = vadd.f32 %v806, %v798
      %v808 = vadd.f32 %v807, %v799
      %v809 = vadd.f32 %v808, %v800
      %v810 = vadd.f32 %v809, %v801
      %v811 = vadd.f32 %v810, %v802
      %v812 = vadd.f32 %v811, %v803
      %v813 = vadd.f32 %v812, %v804
      %v814 = vadd.f32 %v813, %v805
      %v815 = vadd.f32 %v795, %v814
      %816 = vst [vmem:[%s248] sm:$0xff] %v815
      %s817 = sadd.s32 %s20, %s21
      %s818 = smul.u32 10, %s817
      %p819 = scmp.lt.s32.totalorder %s818, 19
      %s820 = scalar_select %p819, %s818, 19
      %s821 = smul.addr %s820, 4
      %s822 = scalar_lea.vmem %s2, %s821
      %p823 = scmp.lt.s32.totalorder %s20, 1
      %s824 = scalar_select %p823, %s20, 1
      %s825 = smul.addr %s824, 8
      %s826 = scalar_lea.vmem %s3, %s825
      %p827 = scmp.lt.s32.totalorder %s20, 1
      %s828 = scalar_select %p827, %s20, 1
      %s829 = smul.addr %s828, 8
      %s830 = scalar_lea.vmem %s4, %s829
      // Predicated region
      $region33: #{cnn_forward.10} parent=27 // pred_check
        %p831 = pneg %p97
      $region34: #{cnn_forward.10} parent=27 // pred_check_branch
        %833 = sbr.rel (%p831) target = $region36
      $region35: #{cnn_forward.10} parent=27 // pred_region
        %s834 = sadd.s32 %s20, %s21
        %s835 = smul.u32 10, %s834
      $region36: #{cnn_forward.10} parent=27 // pred_fallthru
        _
      // Predicated region
      $region37: #{cnn_forward.10} parent=27 // pred_check
        %p836 = pneg %p123
      $region38: #{cnn_forward.10} parent=27 // pred_check_branch
        %838 = sbr.rel (%p836) target = $region40
      $region39: #{cnn_forward.10} parent=27 // pred_region
        _
      $region40: #{cnn_forward.10} parent=27 // pred_fallthru
        _
      // Predicated region
      $region41: #{cnn_forward.10} parent=27 // pred_check
        %p839 = pneg %p149
      $region42: #{cnn_forward.10} parent=27 // pred_check_branch
        %841 = sbr.rel (%p839) target = $region44
      $region43: #{cnn_forward.10} parent=27 // pred_region
        _
      $region44: #{cnn_forward.10} parent=27 // pred_fallthru
        _
    $region28: #{cnn_forward.10} parent=5 // pred_fallthru
      _
    %p842 = scmp.le.s32.totalorder 2, %s11
    // Predicated region
    $region45: #{cnn_forward.10} parent=5 // pred_check
      %p843 = pneg %p842
    $region46: #{cnn_forward.10} parent=5 // pred_check_branch
      %845 = sbr.rel (%p843) target = $region48
    $region47: #{cnn_forward.10} parent=5 // pred_region
      %s846 = ssub.s32 %s11, 2
      // Predicated region
      $region49: #{cnn_forward.10} parent=47 // pred_check
        %p847 = pneg %p103
      $region50: #{cnn_forward.10} parent=47 // pred_check_branch
        %849 = sbr.rel (%p847) target = $region52
      $region51: #{cnn_forward.10} parent=47 // pred_region
        %s850 = sadd.s32 %s22, %s23
        %s851 = smul.u32 10, %s850
        %p852 = scmp.lt.s32.totalorder %s851, 19
        %s853 = scalar_select %p852, %s851, 19
        %s854 = smul.addr %s853, 4
        %s855 = scalar_lea.vmem %s2, %s854
      $region52: #{cnn_forward.10} parent=47 // pred_fallthru
        _
      // Predicated region
      $region53: #{cnn_forward.10} parent=47 // pred_check
        %p856 = pneg %p129
      $region54: #{cnn_forward.10} parent=47 // pred_check_branch
        %858 = sbr.rel (%p856) target = $region56
      $region55: #{cnn_forward.10} parent=47 // pred_region
        %p859 = scmp.lt.s32.totalorder %s22, 1
        %s860 = scalar_select %p859, %s22, 1
        %s861 = smul.addr %s860, 8
        %s862 = scalar_lea.vmem %s3, %s861
      $region56: #{cnn_forward.10} parent=47 // pred_fallthru
        _
      // Predicated region
      $region57: #{cnn_forward.10} parent=47 // pred_check
        %p863 = pneg %p155
      $region58: #{cnn_forward.10} parent=47 // pred_check_branch
        %865 = sbr.rel (%p863) target = $region60
      $region59: #{cnn_forward.10} parent=47 // pred_region
        %p866 = scmp.lt.s32.totalorder %s22, 1
        %s867 = scalar_select %p866, %s22, 1
        %s868 = smul.addr %s867, 8
        %s869 = scalar_lea.vmem %s4, %s868
      $region60: #{cnn_forward.10} parent=47 // pred_fallthru
        _
    $region48: #{cnn_forward.10} parent=5 // pred_fallthru
      _
  $region6: #{cnn_forward.10} parent=0 // loop_footer
    %s15 = sadd.s32 1, %s11
  $region7: #{cnn_forward.10} parent=0 // loop_footer_branch
    %10 = sbr.rel target = $region3
  $region8: #{cnn_forward.10} parent=0 // loop_exit
    _

// kernel: cnn_forward.12
$region0: #{cnn_forward.12}
  #allocation0 [shape = 'u32[]', space=smem, size = 0x4, offset = 0x4, fixed_abs, tag = 'smem constant byte address 0x4 - core index']
  #allocation1 [shape = 'u32[144,128]{1,0:T(1,128)}', space=vmem, size = 0x12000, scoped, tag = 'internal scratch']
  %s0 = inlined_call_operand.vmem [shape: bf16[64,288], index: 0, kind: input, shape index: {}]
  %s1 = inlined_call_operand.vmem [shape: bf16[288,128], index: 1, kind: input, shape index: {}]
  %s2 = inlined_call_operand.vmem [shape: bf16[64,128], index: 2, kind: output, shape index: {0}]
  %s3 = inlined_call_operand.vmem [shape: f32[16,128], index: 3, kind: output, shape index: {1}]
  %s4 = inlined_call_operand.vmem [shape: f32[16,128], index: 4, kind: output, shape index: {2}]
  %5 = xla_tuple %s2, %s3, %s4
  %s6 = sld [smem:[#allocation0]]
  $region61: #{cnn_forward.12} parent=0
    _
  %s8 = ssub.s32 1, %s6
  %s9 = scalar_select 0, %s8, %s6
  loop: start=0, step=1, limit=4
  $region2: #{cnn_forward.12} parent=0 // loop_pre_header
    _
  $region3: #{cnn_forward.12} parent=0 // loop_header
    %s11 = sphi 0, %s15
    %p12 = scmp.ge.s32.totalorder %s11, 4
    %s18 = sphi 0, %s30
    %s19 = sphi 0, %s26
    %s20 = sphi 0, %s18
    %s21 = sphi 0, %s19
    %s22 = sphi 0, %s20
    %s23 = sphi 0, %s21
    %s35 = sphi 0, %s37
    %s38 = sphi 0, %s35
    %s39 = sphi 0, %s38
    %s55 = sphi 0, %s39
    %s59 = sphi 0, %s59
    %s61 = sphi 0, %s59
    %s62 = sphi 0, %s61
    %s76 = sphi 0, %s62
    %s84 = sphi 0, %s86
    %s87 = sphi 0, %s84
    %s88 = sphi 0, %s87
    %s104 = sphi 0, %s88
    %s110 = sphi 0, %s112
    %s113 = sphi 0, %s110
    %s114 = sphi 0, %s113
    %s130 = sphi 0, %s114
    %s136 = sphi 0, %s138
    %s139 = sphi 0, %s136
    %s140 = sphi 0, %s139
    %s156 = sphi 0, %s140
  $region4: #{cnn_forward.12} parent=0 // loop_header_branch
    %14 = sbr.rel (%p12) target = $region8
  $region5: #{cnn_forward.12} parent=0 // loop_body
    %s16 = ssub.s32 %s11, 1
    %s17 = ssub.s32 %s11, 2
    %s24 = sadd.s32 1, %s19
    %p25 = scmp.ge.s32.totalorder %s24, 1
    %s26 = scalar_select %p25, 0, %s24
    %s27 = sadd.s32 1, %s18
    %s28 = scalar_select %p25, %s27, %s18
    %p29 = scmp.ge.s32.totalorder %s28, 2
    %s30 = scalar_select %p29, 0, %s28
    %s31 = sadd.s32 %s18, %s19
    %s32 = sadd.s32 %s30, %s26
    %s33 = ssub.s32 %s31, %s32
    %p34 = scmp.eq.s32.totalorder %s33, 0
    %s36 = sadd.s32 %s35, 1
    %s37 = scalar_select %p34, %s35, %s36
    %p40 = pneg %p34
    %p41 = scmp.eq.s32.totalorder %s11, 1
    %p42 = por %p40, %p41
    %p43 = scmp.ne.s32.totalorder %s35, %s38
    %p44 = scmp.eq.s32.totalorder %s11, 0
    %p45 = por %p43, %p44
    %p46 = scmp.ne.s32.totalorder %s35, %s38
    %p47 = scmp.eq.s32.totalorder %s16, 1
    %p48 = por %p46, %p47
    %p49 = scmp.ne.s32.totalorder %s38, %s39
    %p50 = scmp.eq.s32.totalorder %s16, 0
    %p51 = por %p49, %p50
    %p52 = scmp.ne.s32.totalorder %s38, %s39
    %p53 = scmp.eq.s32.totalorder %s17, 1
    %p54 = por %p52, %p53
    %p56 = scmp.ne.s32.totalorder %s39, %s55
    %p57 = scmp.eq.s32.totalorder %s17, 0
    %p58 = por %p56, %p57
    %s60 = sadd.s32 %s59, 1
    %p63 = scmp.eq.s32.totalorder %s11, 1
    %p64 = scmp.ne.s32.totalorder %s59, %s61
    %p65 = scmp.eq.s32.totalorder %s11, 0
    %p66 = por %p64, %p65
    %p67 = scmp.ne.s32.totalorder %s59, %s61
    %p68 = scmp.eq.s32.totalorder %s16, 1
    %p69 = por %p67, %p68
    %p70 = scmp.ne.s32.totalorder %s61, %s62
    %p71 = scmp.eq.s32.totalorder %s16, 0
    %p72 = por %p70, %p71
    %p73 = scmp.ne.s32.totalorder %s61, %s62
    %p74 = scmp.eq.s32.totalorder %s17, 1
    %p75 = por %p73, %p74
    %p77 = scmp.ne.s32.totalorder %s62, %s76
    %p78 = scmp.eq.s32.totalorder %s17, 0
    %p79 = por %p77, %p78
    %s80 = sadd.s32 %s18, %s19
    %s81 = sadd.s32 %s30, %s26
    %s82 = ssub.s32 %s80, %s81
    %p83 = scmp.eq.s32.totalorder %s82, 0
    %s85 = sadd.s32 %s84, 1
    %s86 = scalar_select %p83, %s84, %s85
    %p89 = pneg %p83
    %p90 = scmp.eq.s32.totalorder %s11, 1
    %p91 = por %p89, %p90
    %p92 = scmp.ne.s32.totalorder %s84, %s87
    %p93 = scmp.eq.s32.totalorder %s11, 0
    %p94 = por %p92, %p93
    %p95 = scmp.ne.s32.totalorder %s84, %s87
    %p96 = scmp.eq.s32.totalorder %s16, 1
    %p97 = por %p95, %p96
    %p98 = scmp.ne.s32.totalorder %s87, %s88
    %p99 = scmp.eq.s32.totalorder %s16, 0
    %p100 = por %p98, %p99
    %p101 = scmp.ne.s32.totalorder %s87, %s88
    %p102 = scmp.eq.s32.totalorder %s17, 1
    %p103 = por %p101, %p102
    %p105 = scmp.ne.s32.totalorder %s88, %s104
    %p106 = scmp.eq.s32.totalorder %s17, 0
    %p107 = por %p105, %p106
    %s108 = ssub.s32 %s18, %s30
    %p109 = scmp.eq.s32.totalorder %s108, 0
    %s111 = sadd.s32 %s110, 1
    %s112 = scalar_select %p109, %s110, %s111
    %p115 = pneg %p109
    %p116 = scmp.eq.s32.totalorder %s11, 1
    %p117 = por %p115, %p116
    %p118 = scmp.ne.s32.totalorder %s110, %s113
    %p119 = scmp.eq.s32.totalorder %s11, 0
    %p120 = por %p118, %p119
    %p121 = scmp.ne.s32.totalorder %s110, %s113
    %p122 = scmp.eq.s32.totalorder %s16, 1
    %p123 = por %p121, %p122
    %p124 = scmp.ne.s32.totalorder %s113, %s114
    %p125 = scmp.eq.s32.totalorder %s16, 0
    %p126 = por %p124, %p125
    %p127 = scmp.ne.s32.totalorder %s113, %s114
    %p128 = scmp.eq.s32.totalorder %s17, 1
    %p129 = por %p127, %p128
    %p131 = scmp.ne.s32.totalorder %s114, %s130
    %p132 = scmp.eq.s32.totalorder %s17, 0
    %p133 = por %p131, %p132
    %s134 = ssub.s32 %s18, %s30
    %p135 = scmp.eq.s32.totalorder %s134, 0
    %s137 = sadd.s32 %s136, 1
    %s138 = scalar_select %p135, %s136, %s137
    %p141 = pneg %p135
    %p142 = scmp.eq.s32.totalorder %s11, 1
    %p143 = por %p141, %p142
    %p144 = scmp.ne.s32.totalorder %s136, %s139
    %p145 = scmp.eq.s32.totalorder %s11, 0
    %p146 = por %p144, %p145
    %p147 = scmp.ne.s32.totalorder %s136, %s139
    %p148 = scmp.eq.s32.totalorder %s16, 1
    %p149 = por %p147, %p148
    %p150 = scmp.ne.s32.totalorder %s139, %s140
    %p151 = scmp.eq.s32.totalorder %s16, 0
    %p152 = por %p150, %p151
    %p153 = scmp.ne.s32.totalorder %s139, %s140
    %p154 = scmp.eq.s32.totalorder %s17, 1
    %p155 = por %p153, %p154
    %p157 = scmp.ne.s32.totalorder %s140, %s156
    %p158 = scmp.eq.s32.totalorder %s17, 0
    %p159 = por %p157, %p158
    %p160 = scmp.le.s32.totalorder 1, %s11
    %p161 = scmp.lt.s32.totalorder %s11, 3
    %p162 = pnand %p160, %p161
    %p163 = pneg %p162
    // Predicated region
    $region9: #{cnn_forward.12} parent=5 // pred_check
      _
    $region10: #{cnn_forward.12} parent=5 // pred_check_branch
      %165 = sbr.rel (%p162) target = $region12
    $region11: #{cnn_forward.12} parent=5 // pred_region
      %s166 = ssub.s32 %s11, 1
      // Predicated region
      $region13: #{cnn_forward.12} parent=11 // pred_check
        %p167 = pneg %p72
      $region14: #{cnn_forward.12} parent=11 // pred_check_branch
        %169 = sbr.rel (%p167) target = $region16
      $region15: #{cnn_forward.12} parent=11 // pred_region
        _
      $region16: #{cnn_forward.12} parent=11 // pred_fallthru
        _
    $region12: #{cnn_forward.12} parent=5 // pred_fallthru
      _
    %p170 = scmp.lt.s32.totalorder %s11, 2
    // Predicated region
    $region17: #{cnn_forward.12} parent=5 // pred_check
      %p171 = pneg %p170
    $region18: #{cnn_forward.12} parent=5 // pred_check_branch
      %173 = sbr.rel (%p171) target = $region20
    $region19: #{cnn_forward.12} parent=5 // pred_region
      // Predicated region
      $region21: #{cnn_forward.12} parent=19 // pred_check
        %p174 = pneg %p45
      $region22: #{cnn_forward.12} parent=19 // pred_check_branch
        %176 = sbr.rel (%p174) target = $region24
      $region23: #{cnn_forward.12} parent=19 // pred_region
        %s177 = sadd.s32 %s18, %s19
        %s178 = smul.u32 4, %s177
        %p179 = scmp.lt.s32.totalorder %s178, 7
        %s180 = scalar_select %p179, %s178, 7
        %s181 = smul.addr %s180, 3
        %s182 = smul.addr %s181, 4
        %s183 = scalar_lea.vmem %s0, %s182
        %s184 = sadd.s32 %s18, %s19
        %s185 = smul.u32 4, %s184
      $region24: #{cnn_forward.12} parent=19 // pred_fallthru
        _
    $region20: #{cnn_forward.12} parent=5 // pred_fallthru
      _
    %p186 = scmp.le.s32.totalorder 1, %s11
    %p187 = scmp.lt.s32.totalorder %s11, 3
    %p188 = pnand %p186, %p187
    %p189 = pneg %p188
    // Predicated region
    $region25: #{cnn_forward.12} parent=5 // pred_check
      _
    $region26: #{cnn_forward.12} parent=5 // pred_check_branch
      %191 = sbr.rel (%p188) target = $region28
    $region27: #{cnn_forward.12} parent=5 // pred_region
      %s192 = ssub.s32 %s11, 1
      %s193 = sadd.s32 %s20, %s21
      %s194 = smul.u32 4, %s193
      %p195 = scmp.lt.s32.totalorder %s194, 7
      %s196 = scalar_select %p195, %s194, 7
      %s197 = smul.addr %s196, 3
      %s198 = smul.addr %s197, 4
      %s199 = scalar_lea.vmem %s0, %s198
      %p200 = pneg %p51
      %p201 = pneg %p48
      %p202 = pneg %p72
      %p203 = pneg %p69
      %p204 = pneg %p100
      %p205 = pneg %p97
      %s206 = sadd.s32 %s20, %s21
      %s207 = smul.u32 4, %s206
      %p208 = scmp.lt.s32.totalorder %s207, 7
      %s209 = scalar_select %p208, %s207, 7
      %s210 = smul.addr %s209, 4
      %s211 = scalar_lea.vmem %s2, %s210
      %p212 = pneg %p126
      %p213 = pneg %p123
      %p214 = scmp.lt.s32.totalorder %s20, 1
      %s215 = scalar_select %p214, %s20, 1
      %s216 = smul.addr %s215, 8
      %s217 = scalar_lea.vmem %s3, %s216
      %p218 = pneg %p152
      %p219 = pneg %p149
      %p220 = scmp.lt.s32.totalorder %s20, 1
      %s221 = scalar_select %p220, %s20, 1
      %s222 = smul.addr %s221, 8
      %s223 = scalar_lea.vmem %s4, %s222
      %s224 = sadd.s32 %s20, %s21
      %s225 = smul.u32 4, %s224
      %p226 = scmp.lt.s32.totalorder %s225, 7
      %s227 = scalar_select %p226, %s225, 7
      %s228 = smul.addr %s227, 3
      %s229 = smul.addr %s228, 4
      %s230 = scalar_lea.vmem %s0, %s229
      %s231 = sadd.s32 %s20, %s21
      %s232 = smul.u32 4, %s231
      %s233 = sadd.s32 %s20, %s21
      %s234 = smul.u32 4, %s233
      %p235 = scmp.lt.s32.totalorder %s234, 7
      %s236 = scalar_select %p235, %s234, 7
      %s237 = smul.addr %s236, 4
      %s238 = scalar_lea.vmem %s2, %s237
      %s239 = sadd.s32 %s20, %s21
      %s240 = smul.u32 4, %s239
      %p241 = scmp.lt.s32.totalorder %s20, 1
      %s242 = scalar_select %p241, %s20, 1
      %s243 = smul.addr %s242, 8
      %s244 = scalar_lea.vmem %s3, %s243
      %p245 = scmp.lt.s32.totalorder %s20, 1
      %s246 = scalar_select %p245, %s20, 1
      %s247 = smul.addr %s246, 8
      %s248 = scalar_lea.vmem %s4, %s247
      %v250 = vld [vmem:[%s230] sm:$0xff]
      %v251 = vld [vmem:[%s230 + $0x8] sm:$0xf]
      %v252 = vld [vmem:[%s230 + $0xc] sm:$0xff]
      %v253 = vld [vmem:[%s230 + $0x14] sm:$0xf]
      %v254 = vld [vmem:[%s230 + $0x18] sm:$0xff]
      %v255 = vld [vmem:[%s230 + $0x20] sm:$0xf]
      %v256 = vld [vmem:[%s230 + $0x24] sm:$0xff]
      %v257 = vld [vmem:[%s230 + $0x2c] sm:$0xf]
      %v258 = vld [vmem:[%s1] sm:$0xf]
      %v259 = vld [vmem:[%s1 + $0x4] sm:$0xf]
      %v260 = vld [vmem:[%s1 + $0x8] sm:$0xf]
      %v261 = vld [vmem:[%s1 + $0xc] sm:$0xf]
      %v262 = vld [vmem:[%s1 + $0x10] sm:$0xf]
      %v263 = vld [vmem:[%s1 + $0x14] sm:$0xf]
      %v264 = vld [vmem:[%s1 + $0x18] sm:$0xf]
      %v265 = vld [vmem:[%s1 + $0x1c] sm:$0xf]
      %v266 = vld [vmem:[%s1 + $0x20] sm:$0xf]
      %v267 = vld [vmem:[%s1 + $0x24] sm:$0xf]
      %v268 = vld [vmem:[%s1 + $0x28] sm:$0xf]
      %v269 = vld [vmem:[%s1 + $0x2c] sm:$0xf]
      %v270 = vld [vmem:[%s1 + $0x30] sm:$0xf]
      %v271 = vld [vmem:[%s1 + $0x34] sm:$0xf]
      %v272 = vld [vmem:[%s1 + $0x38] sm:$0xf]
      %v273 = vld [vmem:[%s1 + $0x3c] sm:$0xf]
      %v274 = vld [vmem:[%s1 + $0x40] sm:$0xf]
      %v275 = vld [vmem:[%s1 + $0x44] sm:$0xf]
      %v276 = vld [vmem:[%s1 + $0x48] sm:$0xf]
      %v277 = vld [vmem:[%s1 + $0x4c] sm:$0xf]
      %v278 = vld [vmem:[%s1 + $0x50] sm:$0xf]
      %v279 = vld [vmem:[%s1 + $0x54] sm:$0xf]
      %v280 = vld [vmem:[%s1 + $0x58] sm:$0xf]
      %v281 = vld [vmem:[%s1 + $0x5c] sm:$0xf]
      %v282 = vld [vmem:[%s1 + $0x60] sm:$0xf]
      %v283 = vld [vmem:[%s1 + $0x64] sm:$0xf]
      %v284 = vld [vmem:[%s1 + $0x68] sm:$0xf]
      %v285 = vld [vmem:[%s1 + $0x6c] sm:$0xf]
      %v286 = vld [vmem:[%s1 + $0x70] sm:$0xf]
      %v287 = vld [vmem:[%s1 + $0x74] sm:$0xf]
      %v288 = vld [vmem:[%s1 + $0x78] sm:$0xf]
      %v289 = vld [vmem:[%s1 + $0x7c] sm:$0xf]
      %v290 = vld [vmem:[%s1 + $0x80] sm:$0xf]
      %v291 = vld [vmem:[%s1 + $0x84] sm:$0xf]
      %v292 = vld [vmem:[%s1 + $0x88] sm:$0xf]
      %v293 = vld [vmem:[%s1 + $0x8c] sm:$0xf]
      %v302 = vunpack.c.l.b16 %v250
      %v303 = vunpack.c.h.b16 %v250
      %v304 = vunpack.c.l.b16 %v251
      %v305 = vunpack.c.l.b16 %v252
      %v306 = vunpack.c.h.b16 %v252
      %v307 = vunpack.c.l.b16 %v253
      %v308 = vunpack.c.l.b16 %v254
      %v309 = vunpack.c.h.b16 %v254
      %v310 = vunpack.c.l.b16 %v255
      %v311 = vunpack.c.l.b16 %v256
      %v312 = vunpack.c.h.b16 %v256
      %v313 = vunpack.c.l.b16 %v257
      %v314 = vpack.c.b16 %v305, %v302
      %v315 = vpack.c.b16 %v306, %v303
      %v316 = vpack.c.b16 %v307, %v304
      %v317 = vpack.c.b16 %v311, %v308
      %v318 = vpack.c.b16 %v312, %v309
      %v319 = vpack.c.b16 %v313, %v310
      %v360 = vunpack.c.l.b16 %v258
      %v361 = vunpack.c.l.b16 %v259
      %v362 = vunpack.c.l.b16 %v260
      %v363 = vunpack.c.l.b16 %v261
      %v364 = vunpack.c.l.b16 %v262
      %v365 = vunpack.c.l.b16 %v263
      %v366 = vunpack.c.l.b16 %v264
      %v367 = vunpack.c.l.b16 %v265
      %v368 = vunpack.c.l.b16 %v266
      %v369 = vunpack.c.l.b16 %v267
      %v370 = vunpack.c.l.b16 %v268
      %v371 = vunpack.c.l.b16 %v269
      %v372 = vunpack.c.l.b16 %v270
      %v373 = vunpack.c.l.b16 %v271
      %v374 = vunpack.c.l.b16 %v272
      %v375 = vunpack.c.l.b16 %v273
      %v376 = vunpack.c.l.b16 %v274
      %v377 = vunpack.c.l.b16 %v275
      %v378 = vunpack.c.l.b16 %v276
      %v379 = vunpack.c.l.b16 %v277
      %v380 = vunpack.c.l.b16 %v278
      %v381 = vunpack.c.l.b16 %v279
      %v382 = vunpack.c.l.b16 %v280
      %v383 = vunpack.c.l.b16 %v281
      %v384 = vunpack.c.l.b16 %v282
      %v385 = vunpack.c.l.b16 %v283
      %v386 = vunpack.c.l.b16 %v284
      %v387 = vunpack.c.l.b16 %v285
      %v388 = vunpack.c.l.b16 %v286
      %v389 = vunpack.c.l.b16 %v287
      %v390 = vunpack.c.l.b16 %v288
      %v391 = vunpack.c.l.b16 %v289
      %v392 = vunpack.c.l.b16 %v290
      %v393 = vunpack.c.l.b16 %v291
      %v394 = vunpack.c.l.b16 %v292
      %v395 = vunpack.c.l.b16 %v293
      %v396 = vpack.c.b16 %v361, %v360
      %v397 = vpack.c.b16 %v363, %v362
      %v398 = vpack.c.b16 %v365, %v364
      %v399 = vpack.c.b16 %v367, %v366
      %v400 = vpack.c.b16 %v369, %v368
      %v401 = vpack.c.b16 %v371, %v370
      %v402 = vpack.c.b16 %v373, %v372
      %v403 = vpack.c.b16 %v375, %v374
      %v404 = vpack.c.b16 %v377, %v376
      %v405 = vpack.c.b16 %v379, %v378
      %v406 = vpack.c.b16 %v381, %v380
      %v407 = vpack.c.b16 %v383, %v382
      %v408 = vpack.c.b16 %v385, %v384
      %v409 = vpack.c.b16 %v387, %v386
      %v410 = vpack.c.b16 %v389, %v388
      %v411 = vpack.c.b16 %v391, %v390
      %v412 = vpack.c.b16 %v393, %v392
      %v413 = vpack.c.b16 %v395, %v394
      %vm432 = vcmask 261120
      %v434 = vsel %vm432, %v316, 0
      %v437 = vsel %vm432, %v319, 0
      %439 = vmatprep.subr.bf16.mxu0 0
      %440 = vmatpush1.bf16.msra.mxu0 %v403
      %441 = vmatprep.subr.bf16.mxu0 0
      %442 = vmatpush1.bf16.msra.mxu0 %v402
      %443 = vmatprep.subr.bf16.mxu0 0
      %444 = vmatpush1.bf16.msra.mxu0 %v401
      %445 = vmatprep.subr.bf16.mxu0 0
      %446 = vmatpush1.bf16.msra.mxu0 %v400
      %447 = vmatprep.subr.bf16.mxu0 0
      %448 = vmatpush1.bf16.msra.mxu0 %v399
      %449 = vmatprep.subr.bf16.mxu0 0
      %450 = vmatpush1.bf16.msra.mxu0 %v398
      %451 = vmatprep.subr.bf16.mxu0 0
      %452 = vmatpush1.bf16.msra.mxu0 %v397
      %453 = vmatprep.subr.bf16.mxu0 0
      %454 = vmatpush1.bf16.msra.mxu0 %v396
      %455 = vmatprep.subr.bf16.mxu0 0
      %456 = vmatpush2.bf16.msra.mxu0 %v411
      %457 = vmatprep.subr.bf16.mxu0 0
      %458 = vmatpush2.bf16.msra.mxu0 %v410
      %459 = vmatprep.subr.bf16.mxu0 0
      %460 = vmatpush2.bf16.msra.mxu0 %v409
      %461 = vmatprep.subr.bf16.mxu0 0
      %462 = vmatpush2.bf16.msra.mxu0 %v408
      %463 = vmatprep.subr.bf16.mxu0 0
      %464 = vmatpush2.bf16.msra.mxu0 %v407
      %465 = vmatprep.subr.bf16.mxu0 0
      %466 = vmatpush2.bf16.msra.mxu0 %v406
      %467 = vmatprep.subr.bf16.mxu0 0
      %468 = vmatpush2.bf16.msra.mxu0 %v405
      %469 = vmatprep.subr.bf16.mxu0 0
      %470 = vmatpush2.bf16.msra.mxu0 %v404
      %471 = vmatprep.mubr.bf16.mxu0 %v315
      %472 = vmatmul.mubr.bf16.gmra.mxu0 %v314
      %v473 = vpop.f32.mrf.mxu0
      %v474 = vadd.f32 0.0, %v473
      %v475 = vpop.f32.mrf.mxu0
      %v476 = vpop.f32.mrf.mxu0
      %v477 = vadd.f32 0.0, %v476
      %v478 = vpop.f32.mrf.mxu0
      %479 = vmatprep.mubr.bf16.mxu0 %v318
      %480 = vmatmul.mubr.bf16.gmra.mxu0 %v317
      %v481 = vpop.f32.mrf.mxu0
      %v482 = vadd.f32 0.0, %v481
      %v483 = vpop.f32.mrf.mxu0
      %v484 = vpop.f32.mrf.mxu0
      %v485 = vadd.f32 0.0, %v484
      %v486 = vpop.f32.mrf.mxu0
      %487 = vdwg.mxu0
      %488 = vmatprep.subr.bf16.mxu0 0
      %489 = vmatpush1.bf16.msra.mxu0 0
      %490 = vmatprep.subr.bf16.mxu0 0
      %491 = vmatpush1.bf16.msra.mxu0 0
      %492 = vmatprep.subr.bf16.mxu0 0
      %493 = vmatpush1.bf16.msra.mxu0 0
      %494 = vmatprep.subr.bf16.mxu0 0
      %495 = vmatpush1.bf16.msra.mxu0 0
      %496 = vmatprep.subr.bf16.mxu0 0
      %497 = vmatpush1.bf16.msra.mxu0 0
      %498 = vmatprep.subr.bf16.mxu0 0
      %499 = vmatpush1.bf16.msra.mxu0 0
      %500 = vmatprep.subr.bf16.mxu0 0
      %501 = vmatpush1.bf16.msra.mxu0 %v413
      %502 = vmatprep.subr.bf16.mxu0 0
      %503 = vmatpush1.bf16.msra.mxu0 %v412
      %504 = vmatprep.subr.bf16.mxu0 0
      %505 = vmatpush2.bf16.msra.mxu0 0
      %506 = vmatprep.subr.bf16.mxu0 0
      %507 = vmatpush2.bf16.msra.mxu0 0
      %508 = vmatprep.subr.bf16.mxu0 0
      %509 = vmatpush2.bf16.msra.mxu0 0
      %510 = vmatprep.subr.bf16.mxu0 0
      %511 = vmatpush2.bf16.msra.mxu0 0
      %512 = vmatprep.subr.bf16.mxu0 0
      %513 = vmatpush2.bf16.msra.mxu0 0
      %514 = vmatprep.subr.bf16.mxu0 0
      %515 = vmatpush2.bf16.msra.mxu0 0
      %516 = vmatprep.subr.bf16.mxu0 0
      %517 = vmatpush2.bf16.msra.mxu0 0
      %518 = vmatprep.subr.bf16.mxu0 0
      %519 = vmatpush2.bf16.msra.mxu0 0
      %520 = vmatprep.mubr.bf16.mxu0 0
      %521 = vmatmul.mubr.bf16.gmra.mxu0 %v434
      %v522 = vpop.f32.mrf.mxu0
      %v523 = vadd.f32 %v474, %v522
      %v524 = vpop.f32.mrf.mxu0
      %v525 = vpop.f32.mrf.mxu0
      %v526 = vadd.f32 %v477, %v525
      %v527 = vpop.f32.mrf.mxu0
      %528 = vmatprep.mubr.bf16.mxu0 0
      %529 = vmatmul.mubr.bf16.gmra.mxu0 %v437
      %v530 = vpop.f32.mrf.mxu0
      %v531 = vadd.f32 %v482, %v530
      %v532 = vpop.f32.mrf.mxu0
      %v533 = vpop.f32.mrf.mxu0
      %v534 = vadd.f32 %v485, %v533
      %v535 = vpop.f32.mrf.mxu0
      %536 = vdwg.mxu0
      %v537 = vpack.c.bf16 %v526, %v523
      %v538 = vpack.c.bf16 %v534, %v531
      %v541 = vunpack.c.l.b16 %v537
      %v542 = vunpack.c.h.b16 %v537
      %v543 = vunpack.c.l.b16 %v538
      %v544 = vunpack.c.h.b16 %v538
      %v545 = vpack.c.b16 %v541, %v541
      %v546 = vpack.c.b16 %v542, %v542
      %v547 = vpack.c.b16 %v543, %v543
      %v548 = vpack.c.b16 %v544, %v544
      %553 = vst [vmem:[%s238] sm:$0xf] %v545
      %554 = vst [vmem:[%s238 + $0x4] sm:$0xf] %v546
      %555 = vst [vmem:[%s238 + $0x8] sm:$0xf] %v547
      %556 = vst [vmem:[%s238 + $0xc] sm:$0xf] %v548
      %p557 = scmp.eq.s32.totalorder %s21, 0
      // Predicated region
      $region29: #{cnn_forward.12} parent=27 // pred_check
        %p558 = pneg %p557
      $region30: #{cnn_forward.12} parent=27 // pred_check_branch
        %560 = sbr.rel (%p558) target = $region32
      $region31: #{cnn_forward.12} parent=27 // pred_region
        %561 = vst [vmem:[%s244] sm:$0xff] 0.0
        %562 = vst [vmem:[%s248] sm:$0xff] 0.0
      $region32: #{cnn_forward.12} parent=27 // pred_fallthru
        _
      %v563 = vld [vmem:[%s244] sm:$0xff]
      %v564 = vadd.f32 %v523, %v526
      %v565 = vadd.f32 %v564, %v531
      %v566 = vadd.f32 %v565, %v534
      %v567 = vadd.f32 %v563, %v566
      %568 = vst [vmem:[%s244] sm:$0xff] %v567
      %v569 = vld [vmem:[%s248] sm:$0xff]
      %v570 = vmul.f32 %v523, %v523
      %v571 = vmul.f32 %v526, %v526
      %v572 = vmul.f32 %v531, %v531
      %v573 = vmul.f32 %v534, %v534
      %v574 = vadd.f32 %v570, %v571
      %v575 = vadd.f32 %v574, %v572
      %v576 = vadd.f32 %v575, %v573
      %v577 = vadd.f32 %v569, %v576
      %578 = vst [vmem:[%s248] sm:$0xff] %v577
      %s579 = sadd.s32 %s20, %s21
      %s580 = smul.u32 4, %s579
      %p581 = scmp.lt.s32.totalorder %s580, 7
      %s582 = scalar_select %p581, %s580, 7
      %s583 = smul.addr %s582, 4
      %s584 = scalar_lea.vmem %s2, %s583
      %p585 = scmp.lt.s32.totalorder %s20, 1
      %s586 = scalar_select %p585, %s20, 1
      %s587 = smul.addr %s586, 8
      %s588 = scalar_lea.vmem %s3, %s587
      %p589 = scmp.lt.s32.totalorder %s20, 1
      %s590 = scalar_select %p589, %s20, 1
      %s591 = smul.addr %s590, 8
      %s592 = scalar_lea.vmem %s4, %s591
      // Predicated region
      $region33: #{cnn_forward.12} parent=27 // pred_check
        %p593 = pneg %p97
      $region34: #{cnn_forward.12} parent=27 // pred_check_branch
        %595 = sbr.rel (%p593) target = $region36
      $region35: #{cnn_forward.12} parent=27 // pred_region
        %s596 = sadd.s32 %s20, %s21
        %s597 = smul.u32 4, %s596
      $region36: #{cnn_forward.12} parent=27 // pred_fallthru
        _
      // Predicated region
      $region37: #{cnn_forward.12} parent=27 // pred_check
        %p598 = pneg %p123
      $region38: #{cnn_forward.12} parent=27 // pred_check_branch
        %600 = sbr.rel (%p598) target = $region40
      $region39: #{cnn_forward.12} parent=27 // pred_region
        _
      $region40: #{cnn_forward.12} parent=27 // pred_fallthru
        _
      // Predicated region
      $region41: #{cnn_forward.12} parent=27 // pred_check
        %p601 = pneg %p149
      $region42: #{cnn_forward.12} parent=27 // pred_check_branch
        %603 = sbr.rel (%p601) target = $region44
      $region43: #{cnn_forward.12} parent=27 // pred_region
        _
      $region44: #{cnn_forward.12} parent=27 // pred_fallthru
        _
    $region28: #{cnn_forward.12} parent=5 // pred_fallthru
      _
    %p604 = scmp.le.s32.totalorder 2, %s11
    // Predicated region
    $region45: #{cnn_forward.12} parent=5 // pred_check
      %p605 = pneg %p604
    $region46: #{cnn_forward.12} parent=5 // pred_check_branch
      %607 = sbr.rel (%p605) target = $region48
    $region47: #{cnn_forward.12} parent=5 // pred_region
      %s608 = ssub.s32 %s11, 2
      // Predicated region
      $region49: #{cnn_forward.12} parent=47 // pred_check
        %p609 = pneg %p103
      $region50: #{cnn_forward.12} parent=47 // pred_check_branch
        %611 = sbr.rel (%p609) target = $region52
      $region51: #{cnn_forward.12} parent=47 // pred_region
        %s612 = sadd.s32 %s22, %s23
        %s613 = smul.u32 4, %s612
        %p614 = scmp.lt.s32.totalorder %s613, 7
        %s615 = scalar_select %p614, %s613, 7
        %s616 = smul.addr %s615, 4
        %s617 = scalar_lea.vmem %s2, %s616
      $region52: #{cnn_forward.12} parent=47 // pred_fallthru
        _
      // Predicated region
      $region53: #{cnn_forward.12} parent=47 // pred_check
        %p618 = pneg %p129
      $region54: #{cnn_forward.12} parent=47 // pred_check_branch
        %620 = sbr.rel (%p618) target = $region56
      $region55: #{cnn_forward.12} parent=47 // pred_region
        %p621 = scmp.lt.s32.totalorder %s22, 1
        %s622 = scalar_select %p621, %s22, 1
        %s623 = smul.addr %s622, 8
        %s624 = scalar_lea.vmem %s3, %s623
      $region56: #{cnn_forward.12} parent=47 // pred_fallthru
        _
      // Predicated region
      $region57: #{cnn_forward.12} parent=47 // pred_check
        %p625 = pneg %p155
      $region58: #{cnn_forward.12} parent=47 // pred_check_branch
        %627 = sbr.rel (%p625) target = $region60
      $region59: #{cnn_forward.12} parent=47 // pred_region
        %p628 = scmp.lt.s32.totalorder %s22, 1
        %s629 = scalar_select %p628, %s22, 1
        %s630 = smul.addr %s629, 8
        %s631 = scalar_lea.vmem %s4, %s630
      $region60: #{cnn_forward.12} parent=47 // pred_fallthru
        _
    $region48: #{cnn_forward.12} parent=5 // pred_fallthru
      _
  $region6: #{cnn_forward.12} parent=0 // loop_footer
    %s15 = sadd.s32 1, %s11
  $region7: #{cnn_forward.12} parent=0 // loop_footer_branch
    %10 = sbr.rel target = $region3
  $region8: #{cnn_forward.12} parent=0 // loop_exit
    _

// kernel: cnn_forward.13
$region0: #{cnn_forward.13}
  #allocation0 [shape = 'u32[]', space=smem, size = 0x4, offset = 0x4, fixed_abs, tag = 'smem constant byte address 0x4 - core index']
  #allocation1 [shape = 'u32[144,128]{1,0:T(1,128)}', space=vmem, size = 0x12000, scoped, tag = 'internal scratch']
  %s0 = inlined_call_operand.vmem [shape: bf16[64,128], index: 0, kind: input, shape index: {}]
  %s1 = inlined_call_operand.vmem [shape: f32[16,128], index: 1, kind: input, shape index: {}]
  %s2 = inlined_call_operand.vmem [shape: f32[16,128], index: 2, kind: input, shape index: {}]
  %s3 = inlined_call_operand.vmem [shape: f32[1,128], index: 3, kind: input, shape index: {}]
  %s4 = inlined_call_operand.vmem [shape: f32[1,128], index: 4, kind: input, shape index: {}]
  %s5 = inlined_call_operand.vmem [shape: bf16[64,128], index: 5, kind: output, shape index: {}]
  %s6 = sld [smem:[#allocation0]]
  $region53: #{cnn_forward.13} parent=0
    _
  %s8 = ssub.s32 1, %s6
  %s9 = scalar_select 0, %s8, %s6
  loop: start=0, step=1, limit=4
  $region2: #{cnn_forward.13} parent=0 // loop_pre_header
    _
  $region3: #{cnn_forward.13} parent=0 // loop_header
    %s11 = sphi 0, %s15
    %p12 = scmp.ge.s32.totalorder %s11, 4
    %s21 = sphi 0, %s23
    %s24 = sphi 0, %s21
    %s25 = sphi 0, %s24
    %s41 = sphi 0, %s25
    %s45 = sphi 0, %s45
    %s47 = sphi 0, %s45
    %s48 = sphi 0, %s47
    %s62 = sphi 0, %s48
    %s66 = sphi 0, %s66
    %s68 = sphi 0, %s66
    %s69 = sphi 0, %s68
    %s83 = sphi 0, %s69
    %s87 = sphi 0, %s87
    %s89 = sphi 0, %s87
    %s90 = sphi 0, %s89
    %s104 = sphi 0, %s90
    %s108 = sphi 0, %s108
    %s110 = sphi 0, %s108
    %s111 = sphi 0, %s110
    %s125 = sphi 0, %s111
    %s131 = sphi 0, %s133
    %s134 = sphi 0, %s131
    %s135 = sphi 0, %s134
    %s151 = sphi 0, %s135
  $region4: #{cnn_forward.13} parent=0 // loop_header_branch
    %14 = sbr.rel (%p12) target = $region8
  $region5: #{cnn_forward.13} parent=0 // loop_body
    %s16 = ssub.s32 %s11, 1
    %s17 = ssub.s32 %s11, 2
    %s18 = sadd.s32 %s11, 1
    %s19 = ssub.s32 %s11, %s18
    %p20 = scmp.eq.s32.totalorder %s19, 0
    %s22 = sadd.s32 %s21, 1
    %s23 = scalar_select %p20, %s21, %s22
    %p26 = pneg %p20
    %p27 = scmp.eq.s32.totalorder %s11, 1
    %p28 = por %p26, %p27
    %p29 = scmp.ne.s32.totalorder %s21, %s24
    %p30 = scmp.eq.s32.totalorder %s11, 0
    %p31 = por %p29, %p30
    %p32 = scmp.ne.s32.totalorder %s21, %s24
    %p33 = scmp.eq.s32.totalorder %s16, 1
    %p34 = por %p32, %p33
    %p35 = scmp.ne.s32.totalorder %s24, %s25
    %p36 = scmp.eq.s32.totalorder %s16, 0
    %p37 = por %p35, %p36
    %p38 = scmp.ne.s32.totalorder %s24, %s25
    %p39 = scmp.eq.s32.totalorder %s17, 1
    %p40 = por %p38, %p39
    %p42 = scmp.ne.s32.totalorder %s25, %s41
    %p43 = scmp.eq.s32.totalorder %s17, 0
    %p44 = por %p42, %p43
    %s46 = sadd.s32 %s45, 1
    %p49 = scmp.eq.s32.totalorder %s11, 1
    %p50 = scmp.ne.s32.totalorder %s45, %s47
    %p51 = scmp.eq.s32.totalorder %s11, 0
    %p52 = por %p50, %p51
    %p53 = scmp.ne.s32.totalorder %s45, %s47
    %p54 = scmp.eq.s32.totalorder %s16, 1
    %p55 = por %p53, %p54
    %p56 = scmp.ne.s32.totalorder %s47, %s48
    %p57 = scmp.eq.s32.totalorder %s16, 0
    %p58 = por %p56, %p57
    %p59 = scmp.ne.s32.totalorder %s47, %s48
    %p60 = scmp.eq.s32.totalorder %s17, 1
    %p61 = por %p59, %p60
    %p63 = scmp.ne.s32.totalorder %s48, %s62
    %p64 = scmp.eq.s32.totalorder %s17, 0
    %p65 = por %p63, %p64
    %s67 = sadd.s32 %s66, 1
    %p70 = scmp.eq.s32.totalorder %s11, 1
    %p71 = scmp.ne.s32.totalorder %s66, %s68
    %p72 = scmp.eq.s32.totalorder %s11, 0
    %p73 = por %p71, %p72
    %p74 = scmp.ne.s32.totalorder %s66, %s68
    %p75 = scmp.eq.s32.totalorder %s16, 1
    %p76 = por %p74, %p75
    %p77 = scmp.ne.s32.totalorder %s68, %s69
    %p78 = scmp.eq.s32.totalorder %s16, 0
    %p79 = por %p77, %p78
    %p80 = scmp.ne.s32.totalorder %s68, %s69
    %p81 = scmp.eq.s32.totalorder %s17, 1
    %p82 = por %p80, %p81
    %p84 = scmp.ne.s32.totalorder %s69, %s83
    %p85 = scmp.eq.s32.totalorder %s17, 0
    %p86 = por %p84, %p85
    %s88 = sadd.s32 %s87, 1
    %p91 = scmp.eq.s32.totalorder %s11, 1
    %p92 = scmp.ne.s32.totalorder %s87, %s89
    %p93 = scmp.eq.s32.totalorder %s11, 0
    %p94 = por %p92, %p93
    %p95 = scmp.ne.s32.totalorder %s87, %s89
    %p96 = scmp.eq.s32.totalorder %s16, 1
    %p97 = por %p95, %p96
    %p98 = scmp.ne.s32.totalorder %s89, %s90
    %p99 = scmp.eq.s32.totalorder %s16, 0
    %p100 = por %p98, %p99
    %p101 = scmp.ne.s32.totalorder %s89, %s90
    %p102 = scmp.eq.s32.totalorder %s17, 1
    %p103 = por %p101, %p102
    %p105 = scmp.ne.s32.totalorder %s90, %s104
    %p106 = scmp.eq.s32.totalorder %s17, 0
    %p107 = por %p105, %p106
    %s109 = sadd.s32 %s108, 1
    %p112 = scmp.eq.s32.totalorder %s11, 1
    %p113 = scmp.ne.s32.totalorder %s108, %s110
    %p114 = scmp.eq.s32.totalorder %s11, 0
    %p115 = por %p113, %p114
    %p116 = scmp.ne.s32.totalorder %s108, %s110
    %p117 = scmp.eq.s32.totalorder %s16, 1
    %p118 = por %p116, %p117
    %p119 = scmp.ne.s32.totalorder %s110, %s111
    %p120 = scmp.eq.s32.totalorder %s16, 0
    %p121 = por %p119, %p120
    %p122 = scmp.ne.s32.totalorder %s110, %s111
    %p123 = scmp.eq.s32.totalorder %s17, 1
    %p124 = por %p122, %p123
    %p126 = scmp.ne.s32.totalorder %s111, %s125
    %p127 = scmp.eq.s32.totalorder %s17, 0
    %p128 = por %p126, %p127
    %s129 = ssub.s32 %s11, %s18
    %p130 = scmp.eq.s32.totalorder %s129, 0
    %s132 = sadd.s32 %s131, 1
    %s133 = scalar_select %p130, %s131, %s132
    %p136 = pneg %p130
    %p137 = scmp.eq.s32.totalorder %s11, 1
    %p138 = por %p136, %p137
    %p139 = scmp.ne.s32.totalorder %s131, %s134
    %p140 = scmp.eq.s32.totalorder %s11, 0
    %p141 = por %p139, %p140
    %p142 = scmp.ne.s32.totalorder %s131, %s134
    %p143 = scmp.eq.s32.totalorder %s16, 1
    %p144 = por %p142, %p143
    %p145 = scmp.ne.s32.totalorder %s134, %s135
    %p146 = scmp.eq.s32.totalorder %s16, 0
    %p147 = por %p145, %p146
    %p148 = scmp.ne.s32.totalorder %s134, %s135
    %p149 = scmp.eq.s32.totalorder %s17, 1
    %p150 = por %p148, %p149
    %p152 = scmp.ne.s32.totalorder %s135, %s151
    %p153 = scmp.eq.s32.totalorder %s17, 0
    %p154 = por %p152, %p153
    %p155 = scmp.le.s32.totalorder 1, %s11
    %p156 = scmp.lt.s32.totalorder %s11, 3
    %p157 = pnand %p155, %p156
    %p158 = pneg %p157
    // Predicated region
    $region9: #{cnn_forward.13} parent=5 // pred_check
      _
    $region10: #{cnn_forward.13} parent=5 // pred_check_branch
      %160 = sbr.rel (%p157) target = $region12
    $region11: #{cnn_forward.13} parent=5 // pred_region
      %s161 = ssub.s32 %s11, 1
      // Predicated region
      $region13: #{cnn_forward.13} parent=11 // pred_check
        %p162 = pneg %p58
      $region14: #{cnn_forward.13} parent=11 // pred_check_branch
        %164 = sbr.rel (%p162) target = $region16
      $region15: #{cnn_forward.13} parent=11 // pred_region
        _
      $region16: #{cnn_forward.13} parent=11 // pred_fallthru
        _
      // Predicated region
      $region17: #{cnn_forward.13} parent=11 // pred_check
        %p165 = pneg %p79
      $region18: #{cnn_forward.13} parent=11 // pred_check_branch
        %167 = sbr.rel (%p165) target = $region20
      $region19: #{cnn_forward.13} parent=11 // pred_region
        _
      $region20: #{cnn_forward.13} parent=11 // pred_fallthru
        _
      // Predicated region
      $region21: #{cnn_forward.13} parent=11 // pred_check
        %p168 = pneg %p100
      $region22: #{cnn_forward.13} parent=11 // pred_check_branch
        %170 = sbr.rel (%p168) target = $region24
      $region23: #{cnn_forward.13} parent=11 // pred_region
        _
      $region24: #{cnn_forward.13} parent=11 // pred_fallthru
        _
      // Predicated region
      $region25: #{cnn_forward.13} parent=11 // pred_check
        %p171 = pneg %p121
      $region26: #{cnn_forward.13} parent=11 // pred_check_branch
        %173 = sbr.rel (%p171) target = $region28
      $region27: #{cnn_forward.13} parent=11 // pred_region
        _
      $region28: #{cnn_forward.13} parent=11 // pred_fallthru
        _
    $region12: #{cnn_forward.13} parent=5 // pred_fallthru
      _
    %p174 = scmp.lt.s32.totalorder %s11, 2
    // Predicated region
    $region29: #{cnn_forward.13} parent=5 // pred_check
      %p175 = pneg %p174
    $region30: #{cnn_forward.13} parent=5 // pred_check_branch
      %177 = sbr.rel (%p175) target = $region32
    $region31: #{cnn_forward.13} parent=5 // pred_region
      // Predicated region
      $region33: #{cnn_forward.13} parent=31 // pred_check
        %p178 = pneg %p31
      $region34: #{cnn_forward.13} parent=31 // pred_check_branch
        %180 = sbr.rel (%p178) target = $region36
      $region35: #{cnn_forward.13} parent=31 // pred_region
        %s181 = smul.u32 4, %s11
        %p182 = scmp.lt.s32.totalorder %s181, 7
        %s183 = scalar_select %p182, %s181, 7
        %s184 = smul.addr %s183, 4
        %s185 = scalar_lea.vmem %s0, %s184
        %s186 = smul.u32 4, %s11
      $region36: #{cnn_forward.13} parent=31 // pred_fallthru
        _
    $region32: #{cnn_forward.13} parent=5 // pred_fallthru
      _
    %p187 = scmp.le.s32.totalorder 1, %s11
    %p188 = scmp.lt.s32.totalorder %s11, 3
    %p189 = pnand %p187, %p188
    %p190 = pneg %p189
    // Predicated region
    $region37: #{cnn_forward.13} parent=5 // pred_check
      _
    $region38: #{cnn_forward.13} parent=5 // pred_check_branch
      %192 = sbr.rel (%p189) target = $region40
    $region39: #{cnn_forward.13} parent=5 // pred_region
      %s193 = ssub.s32 %s11, 1
      %s194 = smul.u32 4, %s16
      %p195 = scmp.lt.s32.totalorder %s194, 7
      %s196 = scalar_select %p195, %s194, 7
      %s197 = smul.addr %s196, 4
      %s198 = scalar_lea.vmem %s0, %s197
      %p199 = pneg %p37
      %p200 = pneg %p34
      %p201 = pneg %p58
      %p202 = pneg %p55
      %p203 = pneg %p79
      %p204 = pneg %p76
      %p205 = pneg %p100
      %p206 = pneg %p97
      %p207 = pneg %p121
      %p208 = pneg %p118
      %p209 = pneg %p147
      %p210 = pneg %p144
      %s211 = smul.u32 4, %s16
      %p212 = scmp.lt.s32.totalorder %s211, 7
      %s213 = scalar_select %p212, %s211, 7
      %s214 = smul.addr %s213, 4
      %s215 = scalar_lea.vmem %s5, %s214
      %s216 = smul.u32 4, %s16
      %p217 = scmp.lt.s32.totalorder %s216, 7
      %s218 = scalar_select %p217, %s216, 7
      %s219 = smul.addr %s218, 4
      %s220 = scalar_lea.vmem %s0, %s219
      %s221 = smul.u32 4, %s16
      %s222 = smul.u32 4, %s16
      %p223 = scmp.lt.s32.totalorder %s222, 7
      %s224 = scalar_select %p223, %s222, 7
      %s225 = smul.addr %s224, 4
      %s226 = scalar_lea.vmem %s5, %s225
      %s227 = smul.u32 4, %s16
      %v228 = vld [vmem:[%s1] sm:$0xff]
      %v229 = vld [vmem:[%s1 + $0x8] sm:$0xff]
      %v230 = vadd.f32 %v228, %v229
      %v231 = vrot.slane %v230, 4
      %v232 = vadd.f32 %v230, %v231
      %v233 = vrot.slane %v232, 2
      %v234 = vadd.f32 %v232, %v233
      %v235 = vrot.slane %v234, 1
      %v236 = vadd.f32 %v234, %v235
      %v237 = vld [vmem:[%s2] sm:$0xff]
      %v238 = vld [vmem:[%s2 + $0x8] sm:$0xff]
      %v239 = vadd.f32 %v237, %v238
      %v240 = vrot.slane %v239, 4
      %v241 = vadd.f32 %v239, %v240
      %v242 = vrot.slane %v241, 2
      %v243 = vadd.f32 %v241, %v242
      %v244 = vrot.slane %v243, 1
      %v245 = vadd.f32 %v243, %v244
      %v246 = vmul.f32 %v236, 0.055555556
      %v247 = vmul.f32 %v245, 0.055555556
      %v248 = vmul.f32 %v246, %v246
      %v249 = vsub.f32 %v247, %v248
      %v250 = vmax.f32 %v249, 0.0
      %v251 = vld [vmem:[%s3] sm:$0x1]
      %v252 = vadd.f32 %v250, 1e-05
      %v253 = vrsqrt.pop %v252
      %v254 = vmul.f32 %v251, %v253
      %v255 = vld [vmem:[%s4] sm:$0x1]
      %v256 = vmul.f32 %v246, %v254
      %v257 = vsub.f32 %v255, %v256
      %v258 = vld [vmem:[%s220] sm:$0xf]
      %v259 = vld [vmem:[%s220 + $0x4] sm:$0xf]
      %v260 = vld [vmem:[%s220 + $0x8] sm:$0xf]
      %v261 = vld [vmem:[%s220 + $0xc] sm:$0xf]
      %v262 = vunpack.c.l.bf16 %v258
      %v263 = vunpack.c.l.bf16 %v259
      %v264 = vunpack.c.l.bf16 %v260
      %v265 = vunpack.c.l.bf16 %v261
      %v267 = vlaneseq
      %v268 = vshrl.u32 %v267, 7
      %v269 = vsub.s32 0, %v268
      %v270 = vrot.slane %v254, %v269
      %v272 = vmul.f32 %v262, %v270
      %v273 = vmul.f32 %v263, %v270
      %v274 = vmul.f32 %v264, %v270
      %v275 = vmul.f32 %v265, %v270
      %v277 = vlaneseq
      %v278 = vshrl.u32 %v277, 7
      %v279 = vsub.s32 0, %v278
      %v280 = vrot.slane %v257, %v279
      %v282 = vadd.f32 %v272, %v280
      %v283 = vadd.f32 %v273, %v280
      %v284 = vadd.f32 %v274, %v280
      %v285 = vadd.f32 %v275, %v280
      %v286 = vmax.f32 %v282, 0.0
      %v287 = vmax.f32 %v283, 0.0
      %v288 = vmax.f32 %v284, 0.0
      %v289 = vmax.f32 %v285, 0.0
      %v290 = vpack.c.bf16 %v287, %v286
      %v291 = vpack.c.bf16 %v289, %v288
      %v294 = vunpack.c.l.b16 %v290
      %v295 = vunpack.c.h.b16 %v290
      %v296 = vunpack.c.l.b16 %v291
      %v297 = vunpack.c.h.b16 %v291
      %v298 = vpack.c.b16 %v294, %v294
      %v299 = vpack.c.b16 %v295, %v295
      %v300 = vpack.c.b16 %v296, %v296
      %v301 = vpack.c.b16 %v297, %v297
      %306 = vst [vmem:[%s226] sm:$0xf] %v298
      %307 = vst [vmem:[%s226 + $0x4] sm:$0xf] %v299
      %308 = vst [vmem:[%s226 + $0x8] sm:$0xf] %v300
      %309 = vst [vmem:[%s226 + $0xc] sm:$0xf] %v301
      %s310 = smul.u32 4, %s16
      %p311 = scmp.lt.s32.totalorder %s310, 7
      %s312 = scalar_select %p311, %s310, 7
      %s313 = smul.addr %s312, 4
      %s314 = scalar_lea.vmem %s5, %s313
      // Predicated region
      $region41: #{cnn_forward.13} parent=39 // pred_check
        %p315 = pneg %p144
      $region42: #{cnn_forward.13} parent=39 // pred_check_branch
        %317 = sbr.rel (%p315) target = $region44
      $region43: #{cnn_forward.13} parent=39 // pred_region
        %s318 = smul.u32 4, %s16
      $region44: #{cnn_forward.13} parent=39 // pred_fallthru
        _
    $region40: #{cnn_forward.13} parent=5 // pred_fallthru
      _
    %p319 = scmp.le.s32.totalorder 2, %s11
    // Predicated region
    $region45: #{cnn_forward.13} parent=5 // pred_check
      %p320 = pneg %p319
    $region46: #{cnn_forward.13} parent=5 // pred_check_branch
      %322 = sbr.rel (%p320) target = $region48
    $region47: #{cnn_forward.13} parent=5 // pred_region
      %s323 = ssub.s32 %s11, 2
      // Predicated region
      $region49: #{cnn_forward.13} parent=47 // pred_check
        %p324 = pneg %p150
      $region50: #{cnn_forward.13} parent=47 // pred_check_branch
        %326 = sbr.rel (%p324) target = $region52
      $region51: #{cnn_forward.13} parent=47 // pred_region
        %s327 = smul.u32 4, %s17
        %p328 = scmp.lt.s32.totalorder %s327, 7
        %s329 = scalar_select %p328, %s327, 7
        %s330 = smul.addr %s329, 4
        %s331 = scalar_lea.vmem %s5, %s330
      $region52: #{cnn_forward.13} parent=47 // pred_fallthru
        _
    $region48: #{cnn_forward.13} parent=5 // pred_fallthru
      _
  $region6: #{cnn_forward.13} parent=0 // loop_footer
    %s15 = sadd.s32 1, %s11
  $region7: #{cnn_forward.13} parent=0 // loop_footer_branch
    %10 = sbr.rel target = $region3
  $region8: #{cnn_forward.13} parent=0 // loop_exit
    _

// kernel: cnn_forward.15
$region0: #{cnn_forward.15}
  #allocation0 [shape = 'u32[]', space=smem, size = 0x4, offset = 0x4, fixed_abs, tag = 'smem constant byte address 0x4 - core index']
  #allocation1 [shape = 'u32[144,128]{1,0:T(1,128)}', space=vmem, size = 0x12000, scoped, tag = 'internal scratch']
  %s0 = inlined_call_operand.vmem [shape: bf16[32,128], index: 0, kind: input, shape index: {}]
  %s1 = inlined_call_operand.vmem [shape: f32[16,128], index: 1, kind: input, shape index: {}]
  %s2 = inlined_call_operand.vmem [shape: f32[16,128], index: 2, kind: input, shape index: {}]
  %s3 = inlined_call_operand.vmem [shape: f32[1,128], index: 3, kind: input, shape index: {}]
  %s4 = inlined_call_operand.vmem [shape: f32[1,128], index: 4, kind: input, shape index: {}]
  %s5 = inlined_call_operand.vmem [shape: bf16[32,128], index: 5, kind: output, shape index: {}]
  %s6 = sld [smem:[#allocation0]]
  $region53: #{cnn_forward.15} parent=0
    _
  %s8 = ssub.s32 1, %s6
  %s9 = scalar_select 0, %s8, %s6
  loop: start=0, step=1, limit=4
  $region2: #{cnn_forward.15} parent=0 // loop_pre_header
    _
  $region3: #{cnn_forward.15} parent=0 // loop_header
    %s11 = sphi 0, %s15
    %p12 = scmp.ge.s32.totalorder %s11, 4
    %s21 = sphi 0, %s23
    %s24 = sphi 0, %s21
    %s25 = sphi 0, %s24
    %s41 = sphi 0, %s25
    %s45 = sphi 0, %s45
    %s47 = sphi 0, %s45
    %s48 = sphi 0, %s47
    %s62 = sphi 0, %s48
    %s66 = sphi 0, %s66
    %s68 = sphi 0, %s66
    %s69 = sphi 0, %s68
    %s83 = sphi 0, %s69
    %s87 = sphi 0, %s87
    %s89 = sphi 0, %s87
    %s90 = sphi 0, %s89
    %s104 = sphi 0, %s90
    %s108 = sphi 0, %s108
    %s110 = sphi 0, %s108
    %s111 = sphi 0, %s110
    %s125 = sphi 0, %s111
    %s131 = sphi 0, %s133
    %s134 = sphi 0, %s131
    %s135 = sphi 0, %s134
    %s151 = sphi 0, %s135
  $region4: #{cnn_forward.15} parent=0 // loop_header_branch
    %14 = sbr.rel (%p12) target = $region8
  $region5: #{cnn_forward.15} parent=0 // loop_body
    %s16 = ssub.s32 %s11, 1
    %s17 = ssub.s32 %s11, 2
    %s18 = sadd.s32 %s11, 1
    %s19 = ssub.s32 %s11, %s18
    %p20 = scmp.eq.s32.totalorder %s19, 0
    %s22 = sadd.s32 %s21, 1
    %s23 = scalar_select %p20, %s21, %s22
    %p26 = pneg %p20
    %p27 = scmp.eq.s32.totalorder %s11, 1
    %p28 = por %p26, %p27
    %p29 = scmp.ne.s32.totalorder %s21, %s24
    %p30 = scmp.eq.s32.totalorder %s11, 0
    %p31 = por %p29, %p30
    %p32 = scmp.ne.s32.totalorder %s21, %s24
    %p33 = scmp.eq.s32.totalorder %s16, 1
    %p34 = por %p32, %p33
    %p35 = scmp.ne.s32.totalorder %s24, %s25
    %p36 = scmp.eq.s32.totalorder %s16, 0
    %p37 = por %p35, %p36
    %p38 = scmp.ne.s32.totalorder %s24, %s25
    %p39 = scmp.eq.s32.totalorder %s17, 1
    %p40 = por %p38, %p39
    %p42 = scmp.ne.s32.totalorder %s25, %s41
    %p43 = scmp.eq.s32.totalorder %s17, 0
    %p44 = por %p42, %p43
    %s46 = sadd.s32 %s45, 1
    %p49 = scmp.eq.s32.totalorder %s11, 1
    %p50 = scmp.ne.s32.totalorder %s45, %s47
    %p51 = scmp.eq.s32.totalorder %s11, 0
    %p52 = por %p50, %p51
    %p53 = scmp.ne.s32.totalorder %s45, %s47
    %p54 = scmp.eq.s32.totalorder %s16, 1
    %p55 = por %p53, %p54
    %p56 = scmp.ne.s32.totalorder %s47, %s48
    %p57 = scmp.eq.s32.totalorder %s16, 0
    %p58 = por %p56, %p57
    %p59 = scmp.ne.s32.totalorder %s47, %s48
    %p60 = scmp.eq.s32.totalorder %s17, 1
    %p61 = por %p59, %p60
    %p63 = scmp.ne.s32.totalorder %s48, %s62
    %p64 = scmp.eq.s32.totalorder %s17, 0
    %p65 = por %p63, %p64
    %s67 = sadd.s32 %s66, 1
    %p70 = scmp.eq.s32.totalorder %s11, 1
    %p71 = scmp.ne.s32.totalorder %s66, %s68
    %p72 = scmp.eq.s32.totalorder %s11, 0
    %p73 = por %p71, %p72
    %p74 = scmp.ne.s32.totalorder %s66, %s68
    %p75 = scmp.eq.s32.totalorder %s16, 1
    %p76 = por %p74, %p75
    %p77 = scmp.ne.s32.totalorder %s68, %s69
    %p78 = scmp.eq.s32.totalorder %s16, 0
    %p79 = por %p77, %p78
    %p80 = scmp.ne.s32.totalorder %s68, %s69
    %p81 = scmp.eq.s32.totalorder %s17, 1
    %p82 = por %p80, %p81
    %p84 = scmp.ne.s32.totalorder %s69, %s83
    %p85 = scmp.eq.s32.totalorder %s17, 0
    %p86 = por %p84, %p85
    %s88 = sadd.s32 %s87, 1
    %p91 = scmp.eq.s32.totalorder %s11, 1
    %p92 = scmp.ne.s32.totalorder %s87, %s89
    %p93 = scmp.eq.s32.totalorder %s11, 0
    %p94 = por %p92, %p93
    %p95 = scmp.ne.s32.totalorder %s87, %s89
    %p96 = scmp.eq.s32.totalorder %s16, 1
    %p97 = por %p95, %p96
    %p98 = scmp.ne.s32.totalorder %s89, %s90
    %p99 = scmp.eq.s32.totalorder %s16, 0
    %p100 = por %p98, %p99
    %p101 = scmp.ne.s32.totalorder %s89, %s90
    %p102 = scmp.eq.s32.totalorder %s17, 1
    %p103 = por %p101, %p102
    %p105 = scmp.ne.s32.totalorder %s90, %s104
    %p106 = scmp.eq.s32.totalorder %s17, 0
    %p107 = por %p105, %p106
    %s109 = sadd.s32 %s108, 1
    %p112 = scmp.eq.s32.totalorder %s11, 1
    %p113 = scmp.ne.s32.totalorder %s108, %s110
    %p114 = scmp.eq.s32.totalorder %s11, 0
    %p115 = por %p113, %p114
    %p116 = scmp.ne.s32.totalorder %s108, %s110
    %p117 = scmp.eq.s32.totalorder %s16, 1
    %p118 = por %p116, %p117
    %p119 = scmp.ne.s32.totalorder %s110, %s111
    %p120 = scmp.eq.s32.totalorder %s16, 0
    %p121 = por %p119, %p120
    %p122 = scmp.ne.s32.totalorder %s110, %s111
    %p123 = scmp.eq.s32.totalorder %s17, 1
    %p124 = por %p122, %p123
    %p126 = scmp.ne.s32.totalorder %s111, %s125
    %p127 = scmp.eq.s32.totalorder %s17, 0
    %p128 = por %p126, %p127
    %s129 = ssub.s32 %s11, %s18
    %p130 = scmp.eq.s32.totalorder %s129, 0
    %s132 = sadd.s32 %s131, 1
    %s133 = scalar_select %p130, %s131, %s132
    %p136 = pneg %p130
    %p137 = scmp.eq.s32.totalorder %s11, 1
    %p138 = por %p136, %p137
    %p139 = scmp.ne.s32.totalorder %s131, %s134
    %p140 = scmp.eq.s32.totalorder %s11, 0
    %p141 = por %p139, %p140
    %p142 = scmp.ne.s32.totalorder %s131, %s134
    %p143 = scmp.eq.s32.totalorder %s16, 1
    %p144 = por %p142, %p143
    %p145 = scmp.ne.s32.totalorder %s134, %s135
    %p146 = scmp.eq.s32.totalorder %s16, 0
    %p147 = por %p145, %p146
    %p148 = scmp.ne.s32.totalorder %s134, %s135
    %p149 = scmp.eq.s32.totalorder %s17, 1
    %p150 = por %p148, %p149
    %p152 = scmp.ne.s32.totalorder %s135, %s151
    %p153 = scmp.eq.s32.totalorder %s17, 0
    %p154 = por %p152, %p153
    %p155 = scmp.le.s32.totalorder 1, %s11
    %p156 = scmp.lt.s32.totalorder %s11, 3
    %p157 = pnand %p155, %p156
    %p158 = pneg %p157
    // Predicated region
    $region9: #{cnn_forward.15} parent=5 // pred_check
      _
    $region10: #{cnn_forward.15} parent=5 // pred_check_branch
      %160 = sbr.rel (%p157) target = $region12
    $region11: #{cnn_forward.15} parent=5 // pred_region
      %s161 = ssub.s32 %s11, 1
      // Predicated region
      $region13: #{cnn_forward.15} parent=11 // pred_check
        %p162 = pneg %p58
      $region14: #{cnn_forward.15} parent=11 // pred_check_branch
        %164 = sbr.rel (%p162) target = $region16
      $region15: #{cnn_forward.15} parent=11 // pred_region
        _
      $region16: #{cnn_forward.15} parent=11 // pred_fallthru
        _
      // Predicated region
      $region17: #{cnn_forward.15} parent=11 // pred_check
        %p165 = pneg %p79
      $region18: #{cnn_forward.15} parent=11 // pred_check_branch
        %167 = sbr.rel (%p165) target = $region20
      $region19: #{cnn_forward.15} parent=11 // pred_region
        _
      $region20: #{cnn_forward.15} parent=11 // pred_fallthru
        _
      // Predicated region
      $region21: #{cnn_forward.15} parent=11 // pred_check
        %p168 = pneg %p100
      $region22: #{cnn_forward.15} parent=11 // pred_check_branch
        %170 = sbr.rel (%p168) target = $region24
      $region23: #{cnn_forward.15} parent=11 // pred_region
        _
      $region24: #{cnn_forward.15} parent=11 // pred_fallthru
        _
      // Predicated region
      $region25: #{cnn_forward.15} parent=11 // pred_check
        %p171 = pneg %p121
      $region26: #{cnn_forward.15} parent=11 // pred_check_branch
        %173 = sbr.rel (%p171) target = $region28
      $region27: #{cnn_forward.15} parent=11 // pred_region
        _
      $region28: #{cnn_forward.15} parent=11 // pred_fallthru
        _
    $region12: #{cnn_forward.15} parent=5 // pred_fallthru
      _
    %p174 = scmp.lt.s32.totalorder %s11, 2
    // Predicated region
    $region29: #{cnn_forward.15} parent=5 // pred_check
      %p175 = pneg %p174
    $region30: #{cnn_forward.15} parent=5 // pred_check_branch
      %177 = sbr.rel (%p175) target = $region32
    $region31: #{cnn_forward.15} parent=5 // pred_region
      // Predicated region
      $region33: #{cnn_forward.15} parent=31 // pred_check
        %p178 = pneg %p31
      $region34: #{cnn_forward.15} parent=31 // pred_check_branch
        %180 = sbr.rel (%p178) target = $region36
      $region35: #{cnn_forward.15} parent=31 // pred_region
        %s181 = smul.u32 2, %s11
        %p182 = scmp.lt.s32.totalorder %s181, 3
        %s183 = scalar_select %p182, %s181, 3
        %s184 = smul.addr %s183, 4
        %s185 = scalar_lea.vmem %s0, %s184
        %s186 = smul.u32 2, %s11
      $region36: #{cnn_forward.15} parent=31 // pred_fallthru
        _
    $region32: #{cnn_forward.15} parent=5 // pred_fallthru
      _
    %p187 = scmp.le.s32.totalorder 1, %s11
    %p188 = scmp.lt.s32.totalorder %s11, 3
    %p189 = pnand %p187, %p188
    %p190 = pneg %p189
    // Predicated region
    $region37: #{cnn_forward.15} parent=5 // pred_check
      _
    $region38: #{cnn_forward.15} parent=5 // pred_check_branch
      %192 = sbr.rel (%p189) target = $region40
    $region39: #{cnn_forward.15} parent=5 // pred_region
      %s193 = ssub.s32 %s11, 1
      %s194 = smul.u32 2, %s16
      %p195 = scmp.lt.s32.totalorder %s194, 3
      %s196 = scalar_select %p195, %s194, 3
      %s197 = smul.addr %s196, 4
      %s198 = scalar_lea.vmem %s0, %s197
      %p199 = pneg %p37
      %p200 = pneg %p34
      %p201 = pneg %p58
      %p202 = pneg %p55
      %p203 = pneg %p79
      %p204 = pneg %p76
      %p205 = pneg %p100
      %p206 = pneg %p97
      %p207 = pneg %p121
      %p208 = pneg %p118
      %p209 = pneg %p147
      %p210 = pneg %p144
      %s211 = smul.u32 2, %s16
      %p212 = scmp.lt.s32.totalorder %s211, 3
      %s213 = scalar_select %p212, %s211, 3
      %s214 = smul.addr %s213, 4
      %s215 = scalar_lea.vmem %s5, %s214
      %s216 = smul.u32 2, %s16
      %p217 = scmp.lt.s32.totalorder %s216, 3
      %s218 = scalar_select %p217, %s216, 3
      %s219 = smul.addr %s218, 4
      %s220 = scalar_lea.vmem %s0, %s219
      %s221 = smul.u32 2, %s16
      %s222 = smul.u32 2, %s16
      %p223 = scmp.lt.s32.totalorder %s222, 3
      %s224 = scalar_select %p223, %s222, 3
      %s225 = smul.addr %s224, 4
      %s226 = scalar_lea.vmem %s5, %s225
      %s227 = smul.u32 2, %s16
      %v228 = vld [vmem:[%s1] sm:$0xff]
      %v229 = vld [vmem:[%s1 + $0x8] sm:$0xff]
      %v230 = vadd.f32 %v228, %v229
      %v231 = vrot.slane %v230, 4
      %v232 = vadd.f32 %v230, %v231
      %v233 = vrot.slane %v232, 2
      %v234 = vadd.f32 %v232, %v233
      %v235 = vrot.slane %v234, 1
      %v236 = vadd.f32 %v234, %v235
      %v237 = vld [vmem:[%s2] sm:$0xff]
      %v238 = vld [vmem:[%s2 + $0x8] sm:$0xff]
      %v239 = vadd.f32 %v237, %v238
      %v240 = vrot.slane %v239, 4
      %v241 = vadd.f32 %v239, %v240
      %v242 = vrot.slane %v241, 2
      %v243 = vadd.f32 %v241, %v242
      %v244 = vrot.slane %v243, 1
      %v245 = vadd.f32 %v243, %v244
      %v246 = vmul.f32 %v236, 0.5
      %v247 = vmul.f32 %v245, 0.5
      %v248 = vmul.f32 %v246, %v246
      %v249 = vsub.f32 %v247, %v248
      %v250 = vmax.f32 %v249, 0.0
      %v251 = vld [vmem:[%s3] sm:$0x1]
      %v252 = vadd.f32 %v250, 1e-05
      %v253 = vrsqrt.pop %v252
      %v254 = vmul.f32 %v251, %v253
      %v255 = vld [vmem:[%s4] sm:$0x1]
      %v256 = vmul.f32 %v246, %v254
      %v257 = vsub.f32 %v255, %v256
      %v258 = vld [vmem:[%s220] sm:$0xf]
      %v259 = vld [vmem:[%s220 + $0x4] sm:$0xf]
      %v260 = vunpack.c.l.bf16 %v258
      %v261 = vunpack.c.l.bf16 %v259
      %v263 = vlaneseq
      %v264 = vshrl.u32 %v263, 7
      %v265 = vsub.s32 0, %v264
      %v266 = vrot.slane %v254, %v265
      %v268 = vmul.f32 %v260, %v266
      %v269 = vmul.f32 %v261, %v266
      %v271 = vlaneseq
      %v272 = vshrl.u32 %v271, 7
      %v273 = vsub.s32 0, %v272
      %v274 = vrot.slane %v257, %v273
      %v276 = vadd.f32 %v268, %v274
      %v277 = vadd.f32 %v269, %v274
      %v278 = vpack.c.bf16 %v277, %v276
      %v280 = vunpack.c.l.b16 %v278
      %v281 = vunpack.c.h.b16 %v278
      %v282 = vpack.c.b16 %v280, %v280
      %v283 = vpack.c.b16 %v281, %v281
      %286 = vst [vmem:[%s226] sm:$0xf] %v282
      %287 = vst [vmem:[%s226 + $0x4] sm:$0xf] %v283
      %s288 = smul.u32 2, %s16
      %p289 = scmp.lt.s32.totalorder %s288, 3
      %s290 = scalar_select %p289, %s288, 3
      %s291 = smul.addr %s290, 4
      %s292 = scalar_lea.vmem %s5, %s291
      // Predicated region
      $region41: #{cnn_forward.15} parent=39 // pred_check
        %p293 = pneg %p144
      $region42: #{cnn_forward.15} parent=39 // pred_check_branch
        %295 = sbr.rel (%p293) target = $region44
      $region43: #{cnn_forward.15} parent=39 // pred_region
        %s296 = smul.u32 2, %s16
      $region44: #{cnn_forward.15} parent=39 // pred_fallthru
        _
    $region40: #{cnn_forward.15} parent=5 // pred_fallthru
      _
    %p297 = scmp.le.s32.totalorder 2, %s11
    // Predicated region
    $region45: #{cnn_forward.15} parent=5 // pred_check
      %p298 = pneg %p297
    $region46: #{cnn_forward.15} parent=5 // pred_check_branch
      %300 = sbr.rel (%p298) target = $region48
    $region47: #{cnn_forward.15} parent=5 // pred_region
      %s301 = ssub.s32 %s11, 2
      // Predicated region
      $region49: #{cnn_forward.15} parent=47 // pred_check
        %p302 = pneg %p150
      $region50: #{cnn_forward.15} parent=47 // pred_check_branch
        %304 = sbr.rel (%p302) target = $region52
      $region51: #{cnn_forward.15} parent=47 // pred_region
        %s305 = smul.u32 2, %s17
        %p306 = scmp.lt.s32.totalorder %s305, 3
        %s307 = scalar_select %p306, %s305, 3
        %s308 = smul.addr %s307, 4
        %s309 = scalar_lea.vmem %s5, %s308
      $region52: #{cnn_forward.15} parent=47 // pred_fallthru
        _
    $region48: #{cnn_forward.15} parent=5 // pred_fallthru
      _
  $region6: #{cnn_forward.15} parent=0 // loop_footer
    %s15 = sadd.s32 1, %s11
  $region7: #{cnn_forward.15} parent=0 // loop_footer_branch
    %10 = sbr.rel target = $region3
  $region8: #{cnn_forward.15} parent=0 // loop_exit
    _

// kernel: cnn_forward.14
$region0: #{cnn_forward.14}
  #allocation0 [shape = 'u32[]', space=smem, size = 0x4, offset = 0x4, fixed_abs, tag = 'smem constant byte address 0x4 - core index']
  #allocation1 [shape = 'u32[144,128]{1,0:T(1,128)}', space=vmem, size = 0x12000, scoped, tag = 'internal scratch']
  %s0 = inlined_call_operand.vmem [shape: bf16[32,576], index: 0, kind: input, shape index: {}]
  %s1 = inlined_call_operand.vmem [shape: bf16[576,128], index: 1, kind: input, shape index: {}]
  %s2 = inlined_call_operand.vmem [shape: bf16[32,128], index: 2, kind: output, shape index: {0}]
  %s3 = inlined_call_operand.vmem [shape: f32[16,128], index: 3, kind: output, shape index: {1}]
  %s4 = inlined_call_operand.vmem [shape: f32[16,128], index: 4, kind: output, shape index: {2}]
  %5 = xla_tuple %s2, %s3, %s4
  %s6 = sld [smem:[#allocation0]]
  $region61: #{cnn_forward.14} parent=0
    _
  %s8 = ssub.s32 1, %s6
  %s9 = scalar_select 0, %s8, %s6
  loop: start=0, step=1, limit=4
  $region2: #{cnn_forward.14} parent=0 // loop_pre_header
    _
  $region3: #{cnn_forward.14} parent=0 // loop_header
    %s11 = sphi 0, %s15
    %p12 = scmp.ge.s32.totalorder %s11, 4
    %s18 = sphi 0, %s30
    %s19 = sphi 0, %s26
    %s20 = sphi 0, %s18
    %s21 = sphi 0, %s19
    %s22 = sphi 0, %s20
    %s23 = sphi 0, %s21
    %s35 = sphi 0, %s37
    %s38 = sphi 0, %s35
    %s39 = sphi 0, %s38
    %s55 = sphi 0, %s39
    %s59 = sphi 0, %s59
    %s61 = sphi 0, %s59
    %s62 = sphi 0, %s61
    %s76 = sphi 0, %s62
    %s84 = sphi 0, %s86
    %s87 = sphi 0, %s84
    %s88 = sphi 0, %s87
    %s104 = sphi 0, %s88
    %s110 = sphi 0, %s112
    %s113 = sphi 0, %s110
    %s114 = sphi 0, %s113
    %s130 = sphi 0, %s114
    %s136 = sphi 0, %s138
    %s139 = sphi 0, %s136
    %s140 = sphi 0, %s139
    %s156 = sphi 0, %s140
  $region4: #{cnn_forward.14} parent=0 // loop_header_branch
    %14 = sbr.rel (%p12) target = $region8
  $region5: #{cnn_forward.14} parent=0 // loop_body
    %s16 = ssub.s32 %s11, 1
    %s17 = ssub.s32 %s11, 2
    %s24 = sadd.s32 1, %s19
    %p25 = scmp.ge.s32.totalorder %s24, 1
    %s26 = scalar_select %p25, 0, %s24
    %s27 = sadd.s32 1, %s18
    %s28 = scalar_select %p25, %s27, %s18
    %p29 = scmp.ge.s32.totalorder %s28, 2
    %s30 = scalar_select %p29, 0, %s28
    %s31 = sadd.s32 %s18, %s19
    %s32 = sadd.s32 %s30, %s26
    %s33 = ssub.s32 %s31, %s32
    %p34 = scmp.eq.s32.totalorder %s33, 0
    %s36 = sadd.s32 %s35, 1
    %s37 = scalar_select %p34, %s35, %s36
    %p40 = pneg %p34
    %p41 = scmp.eq.s32.totalorder %s11, 1
    %p42 = por %p40, %p41
    %p43 = scmp.ne.s32.totalorder %s35, %s38
    %p44 = scmp.eq.s32.totalorder %s11, 0
    %p45 = por %p43, %p44
    %p46 = scmp.ne.s32.totalorder %s35, %s38
    %p47 = scmp.eq.s32.totalorder %s16, 1
    %p48 = por %p46, %p47
    %p49 = scmp.ne.s32.totalorder %s38, %s39
    %p50 = scmp.eq.s32.totalorder %s16, 0
    %p51 = por %p49, %p50
    %p52 = scmp.ne.s32.totalorder %s38, %s39
    %p53 = scmp.eq.s32.totalorder %s17, 1
    %p54 = por %p52, %p53
    %p56 = scmp.ne.s32.totalorder %s39, %s55
    %p57 = scmp.eq.s32.totalorder %s17, 0
    %p58 = por %p56, %p57
    %s60 = sadd.s32 %s59, 1
    %p63 = scmp.eq.s32.totalorder %s11, 1
    %p64 = scmp.ne.s32.totalorder %s59, %s61
    %p65 = scmp.eq.s32.totalorder %s11, 0
    %p66 = por %p64, %p65
    %p67 = scmp.ne.s32.totalorder %s59, %s61
    %p68 = scmp.eq.s32.totalorder %s16, 1
    %p69 = por %p67, %p68
    %p70 = scmp.ne.s32.totalorder %s61, %s62
    %p71 = scmp.eq.s32.totalorder %s16, 0
    %p72 = por %p70, %p71
    %p73 = scmp.ne.s32.totalorder %s61, %s62
    %p74 = scmp.eq.s32.totalorder %s17, 1
    %p75 = por %p73, %p74
    %p77 = scmp.ne.s32.totalorder %s62, %s76
    %p78 = scmp.eq.s32.totalorder %s17, 0
    %p79 = por %p77, %p78
    %s80 = sadd.s32 %s18, %s19
    %s81 = sadd.s32 %s30, %s26
    %s82 = ssub.s32 %s80, %s81
    %p83 = scmp.eq.s32.totalorder %s82, 0
    %s85 = sadd.s32 %s84, 1
    %s86 = scalar_select %p83, %s84, %s85
    %p89 = pneg %p83
    %p90 = scmp.eq.s32.totalorder %s11, 1
    %p91 = por %p89, %p90
    %p92 = scmp.ne.s32.totalorder %s84, %s87
    %p93 = scmp.eq.s32.totalorder %s11, 0
    %p94 = por %p92, %p93
    %p95 = scmp.ne.s32.totalorder %s84, %s87
    %p96 = scmp.eq.s32.totalorder %s16, 1
    %p97 = por %p95, %p96
    %p98 = scmp.ne.s32.totalorder %s87, %s88
    %p99 = scmp.eq.s32.totalorder %s16, 0
    %p100 = por %p98, %p99
    %p101 = scmp.ne.s32.totalorder %s87, %s88
    %p102 = scmp.eq.s32.totalorder %s17, 1
    %p103 = por %p101, %p102
    %p105 = scmp.ne.s32.totalorder %s88, %s104
    %p106 = scmp.eq.s32.totalorder %s17, 0
    %p107 = por %p105, %p106
    %s108 = ssub.s32 %s18, %s30
    %p109 = scmp.eq.s32.totalorder %s108, 0
    %s111 = sadd.s32 %s110, 1
    %s112 = scalar_select %p109, %s110, %s111
    %p115 = pneg %p109
    %p116 = scmp.eq.s32.totalorder %s11, 1
    %p117 = por %p115, %p116
    %p118 = scmp.ne.s32.totalorder %s110, %s113
    %p119 = scmp.eq.s32.totalorder %s11, 0
    %p120 = por %p118, %p119
    %p121 = scmp.ne.s32.totalorder %s110, %s113
    %p122 = scmp.eq.s32.totalorder %s16, 1
    %p123 = por %p121, %p122
    %p124 = scmp.ne.s32.totalorder %s113, %s114
    %p125 = scmp.eq.s32.totalorder %s16, 0
    %p126 = por %p124, %p125
    %p127 = scmp.ne.s32.totalorder %s113, %s114
    %p128 = scmp.eq.s32.totalorder %s17, 1
    %p129 = por %p127, %p128
    %p131 = scmp.ne.s32.totalorder %s114, %s130
    %p132 = scmp.eq.s32.totalorder %s17, 0
    %p133 = por %p131, %p132
    %s134 = ssub.s32 %s18, %s30
    %p135 = scmp.eq.s32.totalorder %s134, 0
    %s137 = sadd.s32 %s136, 1
    %s138 = scalar_select %p135, %s136, %s137
    %p141 = pneg %p135
    %p142 = scmp.eq.s32.totalorder %s11, 1
    %p143 = por %p141, %p142
    %p144 = scmp.ne.s32.totalorder %s136, %s139
    %p145 = scmp.eq.s32.totalorder %s11, 0
    %p146 = por %p144, %p145
    %p147 = scmp.ne.s32.totalorder %s136, %s139
    %p148 = scmp.eq.s32.totalorder %s16, 1
    %p149 = por %p147, %p148
    %p150 = scmp.ne.s32.totalorder %s139, %s140
    %p151 = scmp.eq.s32.totalorder %s16, 0
    %p152 = por %p150, %p151
    %p153 = scmp.ne.s32.totalorder %s139, %s140
    %p154 = scmp.eq.s32.totalorder %s17, 1
    %p155 = por %p153, %p154
    %p157 = scmp.ne.s32.totalorder %s140, %s156
    %p158 = scmp.eq.s32.totalorder %s17, 0
    %p159 = por %p157, %p158
    %p160 = scmp.le.s32.totalorder 1, %s11
    %p161 = scmp.lt.s32.totalorder %s11, 3
    %p162 = pnand %p160, %p161
    %p163 = pneg %p162
    // Predicated region
    $region9: #{cnn_forward.14} parent=5 // pred_check
      _
    $region10: #{cnn_forward.14} parent=5 // pred_check_branch
      %165 = sbr.rel (%p162) target = $region12
    $region11: #{cnn_forward.14} parent=5 // pred_region
      %s166 = ssub.s32 %s11, 1
      // Predicated region
      $region13: #{cnn_forward.14} parent=11 // pred_check
        %p167 = pneg %p72
      $region14: #{cnn_forward.14} parent=11 // pred_check_branch
        %169 = sbr.rel (%p167) target = $region16
      $region15: #{cnn_forward.14} parent=11 // pred_region
        _
      $region16: #{cnn_forward.14} parent=11 // pred_fallthru
        _
    $region12: #{cnn_forward.14} parent=5 // pred_fallthru
      _
    %p170 = scmp.lt.s32.totalorder %s11, 2
    // Predicated region
    $region17: #{cnn_forward.14} parent=5 // pred_check
      %p171 = pneg %p170
    $region18: #{cnn_forward.14} parent=5 // pred_check_branch
      %173 = sbr.rel (%p171) target = $region20
    $region19: #{cnn_forward.14} parent=5 // pred_region
      // Predicated region
      $region21: #{cnn_forward.14} parent=19 // pred_check
        %p174 = pneg %p45
      $region22: #{cnn_forward.14} parent=19 // pred_check_branch
        %176 = sbr.rel (%p174) target = $region24
      $region23: #{cnn_forward.14} parent=19 // pred_region
        %s177 = sadd.s32 %s18, %s19
        %s178 = smul.u32 2, %s177
        %p179 = scmp.lt.s32.totalorder %s178, 3
        %s180 = scalar_select %p179, %s178, 3
        %s181 = smul.addr %s180, 5
        %s182 = smul.addr %s181, 4
        %s183 = scalar_lea.vmem %s0, %s182
        %s184 = sadd.s32 %s18, %s19
        %s185 = smul.u32 2, %s184
      $region24: #{cnn_forward.14} parent=19 // pred_fallthru
        _
    $region20: #{cnn_forward.14} parent=5 // pred_fallthru
      _
    %p186 = scmp.le.s32.totalorder 1, %s11
    %p187 = scmp.lt.s32.totalorder %s11, 3
    %p188 = pnand %p186, %p187
    %p189 = pneg %p188
    // Predicated region
    $region25: #{cnn_forward.14} parent=5 // pred_check
      _
    $region26: #{cnn_forward.14} parent=5 // pred_check_branch
      %191 = sbr.rel (%p188) target = $region28
    $region27: #{cnn_forward.14} parent=5 // pred_region
      %s192 = ssub.s32 %s11, 1
      %s193 = sadd.s32 %s20, %s21
      %s194 = smul.u32 2, %s193
      %p195 = scmp.lt.s32.totalorder %s194, 3
      %s196 = scalar_select %p195, %s194, 3
      %s197 = smul.addr %s196, 5
      %s198 = smul.addr %s197, 4
      %s199 = scalar_lea.vmem %s0, %s198
      %p200 = pneg %p51
      %p201 = pneg %p48
      %p202 = pneg %p72
      %p203 = pneg %p69
      %p204 = pneg %p100
      %p205 = pneg %p97
      %s206 = sadd.s32 %s20, %s21
      %s207 = smul.u32 2, %s206
      %p208 = scmp.lt.s32.totalorder %s207, 3
      %s209 = scalar_select %p208, %s207, 3
      %s210 = smul.addr %s209, 4
      %s211 = scalar_lea.vmem %s2, %s210
      %p212 = pneg %p126
      %p213 = pneg %p123
      %p214 = scmp.lt.s32.totalorder %s20, 1
      %s215 = scalar_select %p214, %s20, 1
      %s216 = smul.addr %s215, 8
      %s217 = scalar_lea.vmem %s3, %s216
      %p218 = pneg %p152
      %p219 = pneg %p149
      %p220 = scmp.lt.s32.totalorder %s20, 1
      %s221 = scalar_select %p220, %s20, 1
      %s222 = smul.addr %s221, 8
      %s223 = scalar_lea.vmem %s4, %s222
      %s224 = sadd.s32 %s20, %s21
      %s225 = smul.u32 2, %s224
      %p226 = scmp.lt.s32.totalorder %s225, 3
      %s227 = scalar_select %p226, %s225, 3
      %s228 = smul.addr %s227, 5
      %s229 = smul.addr %s228, 4
      %s230 = scalar_lea.vmem %s0, %s229
      %s231 = sadd.s32 %s20, %s21
      %s232 = smul.u32 2, %s231
      %s233 = sadd.s32 %s20, %s21
      %s234 = smul.u32 2, %s233
      %p235 = scmp.lt.s32.totalorder %s234, 3
      %s236 = scalar_select %p235, %s234, 3
      %s237 = smul.addr %s236, 4
      %s238 = scalar_lea.vmem %s2, %s237
      %s239 = sadd.s32 %s20, %s21
      %s240 = smul.u32 2, %s239
      %p241 = scmp.lt.s32.totalorder %s20, 1
      %s242 = scalar_select %p241, %s20, 1
      %s243 = smul.addr %s242, 8
      %s244 = scalar_lea.vmem %s3, %s243
      %p245 = scmp.lt.s32.totalorder %s20, 1
      %s246 = scalar_select %p245, %s20, 1
      %s247 = smul.addr %s246, 8
      %s248 = scalar_lea.vmem %s4, %s247
      %v250 = vld [vmem:[%s230] sm:$0xff]
      %v251 = vld [vmem:[%s230 + $0x8] sm:$0xff]
      %v252 = vld [vmem:[%s230 + $0x10] sm:$0xf]
      %v253 = vld [vmem:[%s230 + $0x14] sm:$0xff]
      %v254 = vld [vmem:[%s230 + $0x1c] sm:$0xff]
      %v255 = vld [vmem:[%s230 + $0x24] sm:$0xf]
      %v256 = vld [vmem:[%s1] sm:$0xf]
      %v257 = vld [vmem:[%s1 + $0x4] sm:$0xf]
      %v258 = vld [vmem:[%s1 + $0x8] sm:$0xf]
      %v259 = vld [vmem:[%s1 + $0xc] sm:$0xf]
      %v260 = vld [vmem:[%s1 + $0x10] sm:$0xf]
      %v261 = vld [vmem:[%s1 + $0x14] sm:$0xf]
      %v262 = vld [vmem:[%s1 + $0x18] sm:$0xf]
      %v263 = vld [vmem:[%s1 + $0x1c] sm:$0xf]
      %v264 = vld [vmem:[%s1 + $0x20] sm:$0xf]
      %v265 = vld [vmem:[%s1 + $0x24] sm:$0xf]
      %v266 = vld [vmem:[%s1 + $0x28] sm:$0xf]
      %v267 = vld [vmem:[%s1 + $0x2c] sm:$0xf]
      %v268 = vld [vmem:[%s1 + $0x30] sm:$0xf]
      %v269 = vld [vmem:[%s1 + $0x34] sm:$0xf]
      %v270 = vld [vmem:[%s1 + $0x38] sm:$0xf]
      %v271 = vld [vmem:[%s1 + $0x3c] sm:$0xf]
      %v272 = vld [vmem:[%s1 + $0x40] sm:$0xf]
      %v273 = vld [vmem:[%s1 + $0x44] sm:$0xf]
      %v274 = vld [vmem:[%s1 + $0x48] sm:$0xf]
      %v275 = vld [vmem:[%s1 + $0x4c] sm:$0xf]
      %v276 = vld [vmem:[%s1 + $0x50] sm:$0xf]
      %v277 = vld [vmem:[%s1 + $0x54] sm:$0xf]
      %v278 = vld [vmem:[%s1 + $0x58] sm:$0xf]
      %v279 = vld [vmem:[%s1 + $0x5c] sm:$0xf]
      %v280 = vld [vmem:[%s1 + $0x60] sm:$0xf]
      %v281 = vld [vmem:[%s1 + $0x64] sm:$0xf]
      %v282 = vld [vmem:[%s1 + $0x68] sm:$0xf]
      %v283 = vld [vmem:[%s1 + $0x6c] sm:$0xf]
      %v284 = vld [vmem:[%s1 + $0x70] sm:$0xf]
      %v285 = vld [vmem:[%s1 + $0x74] sm:$0xf]
      %v286 = vld [vmem:[%s1 + $0x78] sm:$0xf]
      %v287 = vld [vmem:[%s1 + $0x7c] sm:$0xf]
      %v288 = vld [vmem:[%s1 + $0x80] sm:$0xf]
      %v289 = vld [vmem:[%s1 + $0x84] sm:$0xf]
      %v290 = vld [vmem:[%s1 + $0x88] sm:$0xf]
      %v291 = vld [vmem:[%s1 + $0x8c] sm:$0xf]
      %v292 = vld [vmem:[%s1 + $0x90] sm:$0xf]
      %v293 = vld [vmem:[%s1 + $0x94] sm:$0xf]
      %v294 = vld [vmem:[%s1 + $0x98] sm:$0xf]
      %v295 = vld [vmem:[%s1 + $0x9c] sm:$0xf]
      %v296 = vld [vmem:[%s1 + $0xa0] sm:$0xf]
      %v297 = vld [vmem:[%s1 + $0xa4] sm:$0xf]
      %v298 = vld [vmem:[%s1 + $0xa8] sm:$0xf]
      %v299 = vld [vmem:[%s1 + $0xac] sm:$0xf]
      %v300 = vld [vmem:[%s1 + $0xb0] sm:$0xf]
      %v301 = vld [vmem:[%s1 + $0xb4] sm:$0xf]
      %v302 = vld [vmem:[%s1 + $0xb8] sm:$0xf]
      %v303 = vld [vmem:[%s1 + $0xbc] sm:$0xf]
      %v304 = vld [vmem:[%s1 + $0xc0] sm:$0xf]
      %v305 = vld [vmem:[%s1 + $0xc4] sm:$0xf]
      %v306 = vld [vmem:[%s1 + $0xc8] sm:$0xf]
      %v307 = vld [vmem:[%s1 + $0xcc] sm:$0xf]
      %v308 = vld [vmem:[%s1 + $0xd0] sm:$0xf]
      %v309 = vld [vmem:[%s1 + $0xd4] sm:$0xf]
      %v310 = vld [vmem:[%s1 + $0xd8] sm:$0xf]
      %v311 = vld [vmem:[%s1 + $0xdc] sm:$0xf]
      %v312 = vld [vmem:[%s1 + $0xe0] sm:$0xf]
      %v313 = vld [vmem:[%s1 + $0xe4] sm:$0xf]
      %v314 = vld [vmem:[%s1 + $0xe8] sm:$0xf]
      %v315 = vld [vmem:[%s1 + $0xec] sm:$0xf]
      %v316 = vld [vmem:[%s1 + $0xf0] sm:$0xf]
      %v317 = vld [vmem:[%s1 + $0xf4] sm:$0xf]
      %v318 = vld [vmem:[%s1 + $0xf8] sm:$0xf]
      %v319 = vld [vmem:[%s1 + $0xfc] sm:$0xf]
      %v320 = vld [vmem:[%s1 + $0x100] sm:$0xf]
      %v321 = vld [vmem:[%s1 + $0x104] sm:$0xf]
      %v322 = vld [vmem:[%s1 + $0x108] sm:$0xf]
      %v323 = vld [vmem:[%s1 + $0x10c] sm:$0xf]
      %v324 = vld [vmem:[%s1 + $0x110] sm:$0xf]
      %v325 = vld [vmem:[%s1 + $0x114] sm:$0xf]
      %v326 = vld [vmem:[%s1 + $0x118] sm:$0xf]
      %v327 = vld [vmem:[%s1 + $0x11c] sm:$0xf]
      %v334 = vunpack.c.l.b16 %v250
      %v335 = vunpack.c.h.b16 %v250
      %v336 = vunpack.c.l.b16 %v251
      %v337 = vunpack.c.h.b16 %v251
      %v338 = vunpack.c.l.b16 %v252
      %v339 = vunpack.c.l.b16 %v253
      %v340 = vunpack.c.h.b16 %v253
      %v341 = vunpack.c.l.b16 %v254
      %v342 = vunpack.c.h.b16 %v254
      %v343 = vunpack.c.l.b16 %v255
      %v344 = vpack.c.b16 %v339, %v334
      %v345 = vpack.c.b16 %v340, %v335
      %v346 = vpack.c.b16 %v341, %v336
      %v347 = vpack.c.b16 %v342, %v337
      %v348 = vpack.c.b16 %v343, %v338
      %v425 = vunpack.c.l.b16 %v256
      %v426 = vunpack.c.l.b16 %v257
      %v427 = vunpack.c.l.b16 %v258
      %v428 = vunpack.c.l.b16 %v259
      %v429 = vunpack.c.l.b16 %v260
      %v430 = vunpack.c.l.b16 %v261
      %v431 = vunpack.c.l.b16 %v262
      %v432 = vunpack.c.l.b16 %v263
      %v433 = vunpack.c.l.b16 %v264
      %v434 = vunpack.c.l.b16 %v265
      %v435 = vunpack.c.l.b16 %v266
      %v436 = vunpack.c.l.b16 %v267
      %v437 = vunpack.c.l.b16 %v268
      %v438 = vunpack.c.l.b16 %v269
      %v439 = vunpack.c.l.b16 %v270
      %v440 = vunpack.c.l.b16 %v271
      %v441 = vunpack.c.l.b16 %v272
      %v442 = vunpack.c.l.b16 %v273
      %v443 = vunpack.c.l.b16 %v274
      %v444 = vunpack.c.l.b16 %v275
      %v445 = vunpack.c.l.b16 %v276
      %v446 = vunpack.c.l.b16 %v277
      %v447 = vunpack.c.l.b16 %v278
      %v448 = vunpack.c.l.b16 %v279
      %v449 = vunpack.c.l.b16 %v280
      %v450 = vunpack.c.l.b16 %v281
      %v451 = vunpack.c.l.b16 %v282
      %v452 = vunpack.c.l.b16 %v283
      %v453 = vunpack.c.l.b16 %v284
      %v454 = vunpack.c.l.b16 %v285
      %v455 = vunpack.c.l.b16 %v286
      %v456 = vunpack.c.l.b16 %v287
      %v457 = vunpack.c.l.b16 %v288
      %v458 = vunpack.c.l.b16 %v289
      %v459 = vunpack.c.l.b16 %v290
      %v460 = vunpack.c.l.b16 %v291
      %v461 = vunpack.c.l.b16 %v292
      %v462 = vunpack.c.l.b16 %v293
      %v463 = vunpack.c.l.b16 %v294
      %v464 = vunpack.c.l.b16 %v295
      %v465 = vunpack.c.l.b16 %v296
      %v466 = vunpack.c.l.b16 %v297
      %v467 = vunpack.c.l.b16 %v298
      %v468 = vunpack.c.l.b16 %v299
      %v469 = vunpack.c.l.b16 %v300
      %v470 = vunpack.c.l.b16 %v301
      %v471 = vunpack.c.l.b16 %v302
      %v472 = vunpack.c.l.b16 %v303
      %v473 = vunpack.c.l.b16 %v304
      %v474 = vunpack.c.l.b16 %v305
      %v475 = vunpack.c.l.b16 %v306
      %v476 = vunpack.c.l.b16 %v307
      %v477 = vunpack.c.l.b16 %v308
      %v478 = vunpack.c.l.b16 %v309
      %v479 = vunpack.c.l.b16 %v310
      %v480 = vunpack.c.l.b16 %v311
      %v481 = vunpack.c.l.b16 %v312
      %v482 = vunpack.c.l.b16 %v313
      %v483 = vunpack.c.l.b16 %v314
      %v484 = vunpack.c.l.b16 %v315
      %v485 = vunpack.c.l.b16 %v316
      %v486 = vunpack.c.l.b16 %v317
      %v487 = vunpack.c.l.b16 %v318
      %v488 = vunpack.c.l.b16 %v319
      %v489 = vunpack.c.l.b16 %v320
      %v490 = vunpack.c.l.b16 %v321
      %v491 = vunpack.c.l.b16 %v322
      %v492 = vunpack.c.l.b16 %v323
      %v493 = vunpack.c.l.b16 %v324
      %v494 = vunpack.c.l.b16 %v325
      %v495 = vunpack.c.l.b16 %v326
      %v496 = vunpack.c.l.b16 %v327
      %v497 = vpack.c.b16 %v426, %v425
      %v498 = vpack.c.b16 %v428, %v427
      %v499 = vpack.c.b16 %v430, %v429
      %v500 = vpack.c.b16 %v432, %v431
      %v501 = vpack.c.b16 %v434, %v433
      %v502 = vpack.c.b16 %v436, %v435
      %v503 = vpack.c.b16 %v438, %v437
      %v504 = vpack.c.b16 %v440, %v439
      %v505 = vpack.c.b16 %v442, %v441
      %v506 = vpack.c.b16 %v444, %v443
      %v507 = vpack.c.b16 %v446, %v445
      %v508 = vpack.c.b16 %v448, %v447
      %v509 = vpack.c.b16 %v450, %v449
      %v510 = vpack.c.b16 %v452, %v451
      %v511 = vpack.c.b16 %v454, %v453
      %v512 = vpack.c.b16 %v456, %v455
      %v513 = vpack.c.b16 %v458, %v457
      %v514 = vpack.c.b16 %v460, %v459
      %v515 = vpack.c.b16 %v462, %v461
      %v516 = vpack.c.b16 %v464, %v463
      %v517 = vpack.c.b16 %v466, %v465
      %v518 = vpack.c.b16 %v468, %v467
      %v519 = vpack.c.b16 %v470, %v469
      %v520 = vpack.c.b16 %v472, %v471
      %v521 = vpack.c.b16 %v474, %v473
      %v522 = vpack.c.b16 %v476, %v475
      %v523 = vpack.c.b16 %v478, %v477
      %v524 = vpack.c.b16 %v480, %v479
      %v525 = vpack.c.b16 %v482, %v481
      %v526 = vpack.c.b16 %v484, %v483
      %v527 = vpack.c.b16 %v486, %v485
      %v528 = vpack.c.b16 %v488, %v487
      %v529 = vpack.c.b16 %v490, %v489
      %v530 = vpack.c.b16 %v492, %v491
      %v531 = vpack.c.b16 %v494, %v493
      %v532 = vpack.c.b16 %v496, %v495
      %vm569 = vcmask 523264
      %v571 = vsel %vm569, %v348, 0
      %573 = vmatprep.subr.bf16.mxu0 0
      %574 = vmatpush1.bf16.msra.mxu0 %v504
      %575 = vmatprep.subr.bf16.mxu0 0
      %576 = vmatpush1.bf16.msra.mxu0 %v503
      %577 = vmatprep.subr.bf16.mxu0 0
      %578 = vmatpush1.bf16.msra.mxu0 %v502
      %579 = vmatprep.subr.bf16.mxu0 0
      %580 = vmatpush1.bf16.msra.mxu0 %v501
      %581 = vmatprep.subr.bf16.mxu0 0
      %582 = vmatpush1.bf16.msra.mxu0 %v500
      %583 = vmatprep.subr.bf16.mxu0 0
      %584 = vmatpush1.bf16.msra.mxu0 %v499
      %585 = vmatprep.subr.bf16.mxu0 0
      %586 = vmatpush1.bf16.msra.mxu0 %v498
      %587 = vmatprep.subr.bf16.mxu0 0
      %588 = vmatpush1.bf16.msra.mxu0 %v497
      %589 = vmatprep.subr.bf16.mxu0 0
      %590 = vmatpush2.bf16.msra.mxu0 %v512
      %591 = vmatprep.subr.bf16.mxu0 0
      %592 = vmatpush2.bf16.msra.mxu0 %v511
      %593 = vmatprep.subr.bf16.mxu0 0
      %594 = vmatpush2.bf16.msra.mxu0 %v510
      %595 = vmatprep.subr.bf16.mxu0 0
      %596 = vmatpush2.bf16.msra.mxu0 %v509
      %597 = vmatprep.subr.bf16.mxu0 0
      %598 = vmatpush2.bf16.msra.mxu0 %v508
      %599 = vmatprep.subr.bf16.mxu0 0
      %600 = vmatpush2.bf16.msra.mxu0 %v507
      %601 = vmatprep.subr.bf16.mxu0 0
      %602 = vmatpush2.bf16.msra.mxu0 %v506
      %603 = vmatprep.subr.bf16.mxu0 0
      %604 = vmatpush2.bf16.msra.mxu0 %v505
      %605 = vmatprep.mubr.bf16.mxu0 %v345
      %606 = vmatmul.mubr.bf16.gmra.mxu0 %v344
      %v607 = vpop.f32.mrf.mxu0
      %v608 = vadd.f32 0.0, %v607
      %v609 = vpop.f32.mrf.mxu0
      %v610 = vpop.f32.mrf.mxu0
      %v611 = vadd.f32 0.0, %v610
      %v612 = vpop.f32.mrf.mxu0
      %613 = vdwg.mxu0
      %614 = vmatprep.subr.bf16.mxu0 0
      %615 = vmatpush1.bf16.msra.mxu0 %v520
      %616 = vmatprep.subr.bf16.mxu0 0
      %617 = vmatpush1.bf16.msra.mxu0 %v519
      %618 = vmatprep.subr.bf16.mxu0 0
      %619 = vmatpush1.bf16.msra.mxu0 %v518
      %620 = vmatprep.subr.bf16.mxu0 0
      %621 = vmatpush1.bf16.msra.mxu0 %v517
      %622 = vmatprep.subr.bf16.mxu0 0
      %623 = vmatpush1.bf16.msra.mxu0 %v516
      %624 = vmatprep.subr.bf16.mxu0 0
      %625 = vmatpush1.bf16.msra.mxu0 %v515
      %626 = vmatprep.subr.bf16.mxu0 0
      %627 = vmatpush1.bf16.msra.mxu0 %v514
      %628 = vmatprep.subr.bf16.mxu0 0
      %629 = vmatpush1.bf16.msra.mxu0 %v513
      %630 = vmatprep.subr.bf16.mxu0 0
      %631 = vmatpush2.bf16.msra.mxu0 %v528
      %632 = vmatprep.subr.bf16.mxu0 0
      %633 = vmatpush2.bf16.msra.mxu0 %v527
      %634 = vmatprep.subr.bf16.mxu0 0
      %635 = vmatpush2.bf16.msra.mxu0 %v526
      %636 = vmatprep.subr.bf16.mxu0 0
      %637 = vmatpush2.bf16.msra.mxu0 %v525
      %638 = vmatprep.subr.bf16.mxu0 0
      %639 = vmatpush2.bf16.msra.mxu0 %v524
      %640 = vmatprep.subr.bf16.mxu0 0
      %641 = vmatpush2.bf16.msra.mxu0 %v523
      %642 = vmatprep.subr.bf16.mxu0 0
      %643 = vmatpush2.bf16.msra.mxu0 %v522
      %644 = vmatprep.subr.bf16.mxu0 0
      %645 = vmatpush2.bf16.msra.mxu0 %v521
      %646 = vmatprep.mubr.bf16.mxu0 %v347
      %647 = vmatmul.mubr.bf16.gmra.mxu0 %v346
      %v648 = vpop.f32.mrf.mxu0
      %v649 = vadd.f32 %v608, %v648
      %v650 = vpop.f32.mrf.mxu0
      %v651 = vpop.f32.mrf.mxu0
      %v652 = vadd.f32 %v611, %v651
      %v653 = vpop.f32.mrf.mxu0
      %654 = vdwg.mxu0
      %655 = vmatprep.subr.bf16.mxu0 0
      %656 = vmatpush1.bf16.msra.mxu0 0
      %657 = vmatprep.subr.bf16.mxu0 0
      %658 = vmatpush1.bf16.msra.mxu0 0
      %659 = vmatprep.subr.bf16.mxu0 0
      %660 = vmatpush1.bf16.msra.mxu0 0
      %661 = vmatprep.subr.bf16.mxu0 0
      %662 = vmatpush1.bf16.msra.mxu0 0
      %663 = vmatprep.subr.bf16.mxu0 0
      %664 = vmatpush1.bf16.msra.mxu0 %v532
      %665 = vmatprep.subr.bf16.mxu0 0
      %666 = vmatpush1.bf16.msra.mxu0 %v531
      %667 = vmatprep.subr.bf16.mxu0 0
      %668 = vmatpush1.bf16.msra.mxu0 %v530
      %669 = vmatprep.subr.bf16.mxu0 0
      %670 = vmatpush1.bf16.msra.mxu0 %v529
      %671 = vmatprep.subr.bf16.mxu0 0
      %672 = vmatpush2.bf16.msra.mxu0 0
      %673 = vmatprep.subr.bf16.mxu0 0
      %674 = vmatpush2.bf16.msra.mxu0 0
      %675 = vmatprep.subr.bf16.mxu0 0
      %676 = vmatpush2.bf16.msra.mxu0 0
      %677 = vmatprep.subr.bf16.mxu0 0
      %678 = vmatpush2.bf16.msra.mxu0 0
      %679 = vmatprep.subr.bf16.mxu0 0
      %680 = vmatpush2.bf16.msra.mxu0 0
      %681 = vmatprep.subr.bf16.mxu0 0
      %682 = vmatpush2.bf16.msra.mxu0 0
      %683 = vmatprep.subr.bf16.mxu0 0
      %684 = vmatpush2.bf16.msra.mxu0 0
      %685 = vmatprep.subr.bf16.mxu0 0
      %686 = vmatpush2.bf16.msra.mxu0 0
      %687 = vmatprep.mubr.bf16.mxu0 0
      %688 = vmatmul.mubr.bf16.gmra.mxu0 %v571
      %v689 = vpop.f32.mrf.mxu0
      %v690 = vadd.f32 %v649, %v689
      %v691 = vpop.f32.mrf.mxu0
      %v692 = vpop.f32.mrf.mxu0
      %v693 = vadd.f32 %v652, %v692
      %v694 = vpop.f32.mrf.mxu0
      %695 = vdwg.mxu0
      %v696 = vpack.c.bf16 %v693, %v690
      %v698 = vunpack.c.l.b16 %v696
      %v699 = vunpack.c.h.b16 %v696
      %v700 = vpack.c.b16 %v698, %v698
      %v701 = vpack.c.b16 %v699, %v699
      %704 = vst [vmem:[%s238] sm:$0xf] %v700
      %705 = vst [vmem:[%s238 + $0x4] sm:$0xf] %v701
      %p706 = scmp.eq.s32.totalorder %s21, 0
      // Predicated region
      $region29: #{cnn_forward.14} parent=27 // pred_check
        %p707 = pneg %p706
      $region30: #{cnn_forward.14} parent=27 // pred_check_branch
        %709 = sbr.rel (%p707) target = $region32
      $region31: #{cnn_forward.14} parent=27 // pred_region
        %710 = vst [vmem:[%s244] sm:$0xff] 0.0
        %711 = vst [vmem:[%s248] sm:$0xff] 0.0
      $region32: #{cnn_forward.14} parent=27 // pred_fallthru
        _
      %v712 = vld [vmem:[%s244] sm:$0xff]
      %v713 = vadd.f32 %v690, %v693
      %v714 = vadd.f32 %v712, %v713
      %715 = vst [vmem:[%s244] sm:$0xff] %v714
      %v716 = vld [vmem:[%s248] sm:$0xff]
      %v717 = vmul.f32 %v690, %v690
      %v718 = vmul.f32 %v693, %v693
      %v719 = vadd.f32 %v717, %v718
      %v720 = vadd.f32 %v716, %v719
      %721 = vst [vmem:[%s248] sm:$0xff] %v720
      %s722 = sadd.s32 %s20, %s21
      %s723 = smul.u32 2, %s722
      %p724 = scmp.lt.s32.totalorder %s723, 3
      %s725 = scalar_select %p724, %s723, 3
      %s726 = smul.addr %s725, 4
      %s727 = scalar_lea.vmem %s2, %s726
      %p728 = scmp.lt.s32.totalorder %s20, 1
      %s729 = scalar_select %p728, %s20, 1
      %s730 = smul.addr %s729, 8
      %s731 = scalar_lea.vmem %s3, %s730
      %p732 = scmp.lt.s32.totalorder %s20, 1
      %s733 = scalar_select %p732, %s20, 1
      %s734 = smul.addr %s733, 8
      %s735 = scalar_lea.vmem %s4, %s734
      // Predicated region
      $region33: #{cnn_forward.14} parent=27 // pred_check
        %p736 = pneg %p97
      $region34: #{cnn_forward.14} parent=27 // pred_check_branch
        %738 = sbr.rel (%p736) target = $region36
      $region35: #{cnn_forward.14} parent=27 // pred_region
        %s739 = sadd.s32 %s20, %s21
        %s740 = smul.u32 2, %s739
      $region36: #{cnn_forward.14} parent=27 // pred_fallthru
        _
      // Predicated region
      $region37: #{cnn_forward.14} parent=27 // pred_check
        %p741 = pneg %p123
      $region38: #{cnn_forward.14} parent=27 // pred_check_branch
        %743 = sbr.rel (%p741) target = $region40
      $region39: #{cnn_forward.14} parent=27 // pred_region
        _
      $region40: #{cnn_forward.14} parent=27 // pred_fallthru
        _
      // Predicated region
      $region41: #{cnn_forward.14} parent=27 // pred_check
        %p744 = pneg %p149
      $region42: #{cnn_forward.14} parent=27 // pred_check_branch
        %746 = sbr.rel (%p744) target = $region44
      $region43: #{cnn_forward.14} parent=27 // pred_region
        _
      $region44: #{cnn_forward.14} parent=27 // pred_fallthru
        _
    $region28: #{cnn_forward.14} parent=5 // pred_fallthru
      _
    %p747 = scmp.le.s32.totalorder 2, %s11
    // Predicated region
    $region45: #{cnn_forward.14} parent=5 // pred_check
      %p748 = pneg %p747
    $region46: #{cnn_forward.14} parent=5 // pred_check_branch
      %750 = sbr.rel (%p748) target = $region48
    $region47: #{cnn_forward.14} parent=5 // pred_region
      %s751 = ssub.s32 %s11, 2
      // Predicated region
      $region49: #{cnn_forward.14} parent=47 // pred_check
        %p752 = pneg %p103
      $region50: #{cnn_forward.14} parent=47 // pred_check_branch
        %754 = sbr.rel (%p752) target = $region52
      $region51: #{cnn_forward.14} parent=47 // pred_region
        %s755 = sadd.s32 %s22, %s23
        %s756 = smul.u32 2, %s755
        %p757 = scmp.lt.s32.totalorder %s756, 3
        %s758 = scalar_select %p757, %s756, 3
        %s759 = smul.addr %s758, 4
        %s760 = scalar_lea.vmem %s2, %s759
      $region52: #{cnn_forward.14} parent=47 // pred_fallthru
        _
      // Predicated region
      $region53: #{cnn_forward.14} parent=47 // pred_check
        %p761 = pneg %p129
      $region54: #{cnn_forward.14} parent=47 // pred_check_branch
        %763 = sbr.rel (%p761) target = $region56
      $region55: #{cnn_forward.14} parent=47 // pred_region
        %p764 = scmp.lt.s32.totalorder %s22, 1
        %s765 = scalar_select %p764, %s22, 1
        %s766 = smul.addr %s765, 8
        %s767 = scalar_lea.vmem %s3, %s766
      $region56: #{cnn_forward.14} parent=47 // pred_fallthru
        _
      // Predicated region
      $region57: #{cnn_forward.14} parent=47 // pred_check
        %p768 = pneg %p155
      $region58: #{cnn_forward.14} parent=47 // pred_check_branch
        %770 = sbr.rel (%p768) target = $region60
      $region59: #{cnn_forward.14} parent=47 // pred_region
        %p771 = scmp.lt.s32.totalorder %s22, 1
        %s772 = scalar_select %p771, %s22, 1
        %s773 = smul.addr %s772, 8
        %s774 = scalar_lea.vmem %s4, %s773
      $region60: #{cnn_forward.14} parent=47 // pred_fallthru
        _
    $region48: #{cnn_forward.14} parent=5 // pred_fallthru
      _
  $region6: #{cnn_forward.14} parent=0 // loop_footer
    %s15 = sadd.s32 1, %s11
  $region7: #{cnn_forward.14} parent=0 // loop_footer_branch
    %10 = sbr.rel target = $region3
  $region8: #{cnn_forward.14} parent=0 // loop_exit
    _

</llo_original>
